<compile_context>
chip_gen: v7x
topology: tpu7x:2x2x1
jax: 0.10.0
libtpu: 0.0.40
codegen_flags: <defaults>
</compile_context>

<pallas_src>
import functools

import numpy as np
import jax
import jax.numpy as jnp
from jax.experimental import pallas as pl
from jax.experimental.pallas import tpu as pltpu

NUM_QUBITS = 6
NUM_LAYERS = 6
NUM_CLASSES = 10
STATE_DIM = 2 ** NUM_QUBITS          # 64
PACKED_DIM = 2 * STATE_DIM           # 128  ([Re | Im] packed statevector)
CONV_CH = 64                         # backbone stand-in conv channels
FEATURE_DIM = 2048                   # resnet50 fc.in_features
PAD_CLASSES = 128                    # lane-dense padded logits width
IN_CH = 3                            # RGB input
VMEM_LIMIT = 32 * 1024 * 1024        # safe on v5e/v6e/v7x
NT_MAX = 2048                        # stem position-tile (lane) size cap


def _round_up(n, m):
    return -(-n // m) * m


# ----------------------------------------------------------------------------
# Parameter setup (plain numpy / JAX glue)
# ----------------------------------------------------------------------------
def _strongly_entangling_unitary(weights):
    """Exact 64x64 unitary of qml.StronglyEntanglingLayers(weights, wires=range(6)).

    PennyLane conventions: Rot(phi, theta, omega) = RZ(omega) RY(theta) RZ(phi),
    CNOT ring entanglers with range r_l = (l % (n-1)) + 1, wire 0 = most significant bit.
    """
    n = NUM_QUBITS
    dim = STATE_DIM
    I2 = np.eye(2, dtype=np.complex128)
    U = np.eye(dim, dtype=np.complex128)

    def rot(phi, theta, omega):
        c = np.cos(theta / 2.0)
        s = np.sin(theta / 2.0)
        return np.array(
            [[np.exp(-1j * (phi + omega) / 2.0) * c, -np.exp(1j * (phi - omega) / 2.0) * s],
             [np.exp(-1j * (phi - omega) / 2.0) * s, np.exp(1j * (phi + omega) / 2.0) * c]],
            dtype=np.complex128)

    def expand_1q(g, wire):
        m = np.array([[1.0 + 0.0j]], dtype=np.complex128)
        for w in range(n):
            m = np.kron(m, g if w == wire else I2)
        return m

    def cnot_full(control, target):
        m = np.zeros((dim, dim), dtype=np.complex128)
        for b in range(dim):
            cb = (b >> (n - 1 - control)) & 1
            b2 = b ^ ((1 << (n - 1 - target)) if cb else 0)
            m[b2, b] = 1.0
        return m

    for l in range(weights.shape[0]):
        for q in range(n):
            U = expand_1q(rot(*weights[l, q]), q) @ U
        r = (l % (n - 1)) + 1
        for q in range(n):
            U = cnot_full(q, (q + r) % n) @ U
    return U


def _make_zdiag():
    z = np.zeros((STATE_DIM, NUM_QUBITS), dtype=np.float32)
    for b in range(STATE_DIM):
        for q in range(NUM_QUBITS):
            z[b, q] = 1.0 - 2.0 * ((b >> (NUM_QUBITS - 1 - q)) & 1)
    return z


def init_params(key):
    ks = jax.random.split(key, 8)

    def linear(k, fan_in, fan_out):
        bound = 1.0 / np.sqrt(fan_in)
        kw, kb = jax.random.split(k)
        w = jax.random.uniform(kw, (fan_in, fan_out), jnp.float32, -bound, bound)
        b = jax.random.uniform(kb, (1, fan_out), jnp.float32, -bound, bound)
        return w, b

    wc, bc = linear(ks[0], IN_CH * 9, CONV_CH)       # conv stem, columns ordered (k=3*di+dj, c)
    wf, bf = linear(ks[1], CONV_CH, FEATURE_DIM)     # backbone feature projection
    w1, b1 = linear(ks[2], FEATURE_DIM, 128)         # dim_reduction Linear(2048,128)
    w2, b2 = linear(ks[3], 128, NUM_QUBITS)          # dim_reduction Linear(128,6)
    w3, b3 = linear(ks[4], NUM_QUBITS, 32)           # classifier Linear(6,32)
    w4, b4 = linear(ks[5], 32, NUM_CLASSES)          # classifier Linear(32,num_classes)

    # BatchNorm1d(128), eval mode, PyTorch defaults — fold into w1/b1 (exact).
    gamma = jnp.ones((1, 128), jnp.float32)
    beta = jnp.zeros((1, 128), jnp.float32)
    rmean = jnp.zeros((1, 128), jnp.float32)
    rvar = jnp.ones((1, 128), jnp.float32)
    inv = gamma * jax.lax.rsqrt(rvar + 1e-5)
    w1f = (w1 * inv).astype(jnp.bfloat16)
    b1f = (b1 - rmean) * inv + beta

    # EnhancedQuantumLayer.scale (init 0.1) is applied to the qnode INPUT in the
    # torch module (scaled_input = x * scale), so it folds exactly into w2/b2.
    scale = 0.1
    w2s = w2 * scale
    b2s = b2 * scale

    # StronglyEntanglingLayers unitary packed as a real (128,128) block matrix so
    # the kernel does [Re|Im] @ [[ReU^T, ImU^T], [-ImU^T, ReU^T]] = [Re'|Im'].
    # The RX-embedding phase (-i)^popcount(basis) is a per-column constant of the
    # packed statevector, so it is folded into the ROWS of that matrix.
    qw = np.asarray(jax.random.uniform(ks[6], (NUM_LAYERS, NUM_QUBITS, 3),
                                       jnp.float32, 0.0, 2.0 * np.pi), np.float64)
    U = _strongly_entangling_unitary(qw)
    uret = U.real.T
    uimt = U.imag.T
    upack = np.block([[uret, uimt], [-uimt, uret]])                      # (128,128)
    ph = np.zeros((PACKED_DIM, 1), np.float64)
    for j in range(PACKED_DIM):
        p = bin(j & (STATE_DIM - 1)).count("1") & 3
        ph[j, 0] = (1.0, 0.0, -1.0, 0.0)[p] if j < STATE_DIM else (0.0, -1.0, 0.0, 1.0)[p]
    upack_ph = jnp.asarray((ph * upack).astype(np.float32))              # (128,128)

    # <Z_q> readout folded with classifier Linear(6,32): zw3 = [zdiag; zdiag] @ w3 (exact).
    zdiag2 = np.concatenate([_make_zdiag(), _make_zdiag()], axis=0)      # (128, 6)
    zw3 = jnp.asarray(zdiag2) @ w3                                       # (128, 32)

    # Pad the final classifier to a lane-dense 128-wide output (sliced outside).
    w4p = jnp.zeros((32, PAD_CLASSES), jnp.float32).at[:, :NUM_CLASSES].set(w4)
    b4p = jnp.zeros((1, PAD_CLASSES), jnp.float32).at[:, :NUM_CLASSES].set(b4)

    return dict(
        wcT=wc.T.astype(jnp.bfloat16),   # (64, 27) bf16
        bcT=bc.T,                        # (64, 1)  f32
        wf=wf.astype(jnp.bfloat16), bf=bf,
        w1f=w1f, b1f=b1f, w2s=w2s, b2s=b2s,
        upack_ph=upack_ph, zw3=zw3, b3=b3, w4p=w4p, b4p=b4p)


# ----------------------------------------------------------------------------
# Pallas kernels
# ----------------------------------------------------------------------------
def _stem_kernel(x_ref, mask_ref, wc_ref, bc_ref, pooled_ref, *, bb, n_tiles, nt, wp):
    """Fused conv3x3 (in-kernel window build) + ReLU + global average pool.

    x_ref    : (bb, 3, Lbuf) bf16 — padded image, rows flattened (p = row*Wp + col),
               zero tail.  The 9 taps of a window at base position p live at
               p + di*Wp + dj, so each tap set is a *static* lane-shifted slice.
    mask_ref : (1, Npad) f32 — 1/(H*W) on valid output positions, 0 on the
               wrap-around "garbage" columns and the tail padding.
    wc_ref   : (64, 27) bf16, columns ordered (k = 3*di + dj, c).
    bc_ref   : (64, 1) f32.
    pooled_ref: (bb, 64, 1) f32 — global-average-pooled features (written once).
    """
    for bi in range(bb):
        pool = jnp.zeros((CONV_CH, 1), jnp.float32)
        for t in range(n_tiles):
            base = t * nt
            acc = jnp.zeros((CONV_CH, nt), jnp.float32)
            for di in range(3):
                for dj in range(3):
                    off = base + di * wp + dj
                    sl = x_ref[bi, :, off:off + nt]            # (3, nt) bf16, static slice
                    k = di * 3 + dj
                    wk = wc_ref[:, 3 * k:3 * k + 3]            # (64, 3) bf16
                    # K=3 underfills the MXU, but the stem is HBM-bound.
                    acc = acc + jnp.dot(wk, sl, preferred_element_type=jnp.float32)
            act = jnp.maximum(acc + bc_ref[...], 0.0) * mask_ref[:, base:base + nt]
            pool = pool + jnp.sum(act, axis=1, keepdims=True)  # (64, 1)
        pooled_ref[bi, :, :] = pool


def _head_kernel(pooled_ref, wf_ref, bf_ref, w1_ref, b1_ref, w2_ref, b2_ref,
                 up_ref, zw3_ref, b3_ref, w4_ref, b4_ref, out_ref):
    """Backbone projection + dim_reduction (BN folded) + quantum layer + classifier."""
    # ---- backbone tail: Linear(64,2048) + ReLU (bf16 MXU, f32 accumulate) ----
    pooled = pooled_ref[...].astype(jnp.bfloat16)                          # (Bt, 64)
    feat = jnp.maximum(
        jnp.dot(pooled, wf_ref[...], preferred_element_type=jnp.float32)
        + bf_ref[...], 0.0).astype(jnp.bfloat16)                           # (Bt, 2048) bf16

    # ---- dim_reduction: Linear(2048,128)[BN folded] -> ReLU -> Dropout(id) -> Linear(128,6)
    h = jnp.maximum(
        jnp.dot(feat, w1_ref[...], preferred_element_type=jnp.float32)
        + b1_ref[...], 0.0)                                                # (Bt, 128) f32
    # quantum scale already folded into w2/b2: x = (h @ w2 + b2) * scale
    x = jnp.dot(h, w2_ref[...], preferred_element_type=jnp.float32) + b2_ref[...]  # (Bt, 6)

    # ---- EnhancedQuantumLayer: AngleEmbedding(RX) -> entangling unitary -> <Z_i>
    # |psi_b| = prod_q (cos(x_q/2) if bit=0 else sin(x_q/2)); the (-i)^popcount
    # phase is folded into up_ref's rows, so only magnitudes are built here.
    c = jnp.cos(0.5 * x)
    s = jnp.sin(0.5 * x)
    bsz = x.shape[0]
    idx = jax.lax.broadcasted_iota(jnp.int32, (bsz, PACKED_DIM), 1)
    basis = idx & (STATE_DIM - 1)                     # basis index (same for Re/Im halves)
    mag = None
    for q in range(NUM_QUBITS):
        bit = (basis >> (NUM_QUBITS - 1 - q)) & 1
        term = jnp.where(bit == 1, s[:, q:q + 1], c[:, q:q + 1])
        mag = term if mag is None else mag * term                          # (Bt, 128)

    # one lane-dense 128x128 matmul for the complex statevector evolution
    opacked = jnp.dot(mag, up_ref[...], preferred_element_type=jnp.float32)  # [Re'|Im']
    # <Z> readout and Linear(6,32) folded: h2 = ReLU((Re'^2+Im'^2) @ (zdiag2 @ w3) + b3)
    h2 = jnp.maximum(
        jnp.dot(opacked * opacked, zw3_ref[...], preferred_element_type=jnp.float32)
        + b3_ref[...], 0.0)                                                # (Bt, 32)

    # ---- classifier tail: Dropout(id) -> Linear(32,num_classes) (128-padded, lane-dense)
    out_ref[...] = jnp.dot(h2, w4_ref[...], preferred_element_type=jnp.float32) + b4_ref[...]


# ----------------------------------------------------------------------------
# Wrappers
# ----------------------------------------------------------------------------
def _stem_tiling(B, H, W):
    Hp, Wp = H + 2, W + 2
    n_eval = H * Wp                                  # base positions evaluated per image
    nt = min(_round_up(n_eval, 128), NT_MAX)         # lane-dense position tile
    n_pad = _round_up(n_eval, nt)
    n_tiles = n_pad // nt
    lbuf = _round_up(n_pad + 2 * Wp + 2, 128)        # flat buffer (taps stay in-bounds)
    bb = next(c for c in (8, 4, 2, 1) if B % c == 0)
    while bb > 1 and B // bb < 2:                    # >=2 grid steps -> v7x megacore
        bb //= 2
    while bb > 1 and bb * IN_CH * lbuf * 2 * 2 > (8 << 20):   # VMEM guard (bf16, 2 buffers)
        bb //= 2
    return Hp, Wp, nt, n_pad, n_tiles, lbuf, bb


def _pick_head_tile(B):
    bt = B
    for c in (512, 256, 128, 64, 32, 16, 8):         # multiples of 8 keep (8,128) rule happy
        if B % c == 0:
            bt = c
            break
    if bt == B and B % 16 == 0:                      # force >=2 grid steps (v7x megacore)
        bt = B // 2
    return bt


def quantum_hybrid_forward(x, params):
    B, C, H, W = x.shape
    assert C == IN_CH, "stand-in backbone stem expects 3 input channels"
    Hp, Wp, nt, n_pad, n_tiles, lbuf, bb = _stem_tiling(B, H, W)

    # Raw-image layout for the stem: pad spatially, flatten rows, zero tail, bf16.
    # Only ~1x image bytes go through HBM (no im2col materialization).
    xp = jnp.pad(x.astype(jnp.bfloat16), ((0, 0), (0, 0), (1, 1), (1, 1)))   # (B,3,Hp,Wp)
    xflat = xp.reshape(B, C, Hp * Wp)
    xflat = jnp.pad(xflat, ((0, 0), (0, 0), (0, lbuf - Hp * Wp)))            # (B,3,Lbuf)

    # Valid-position mask with the 1/(H*W) pool scale folded in (trace-time constant).
    q = np.arange(n_pad)
    mask_np = (((q % Wp) < W) & (q < H * Wp)).astype(np.float32) / float(H * W)
    mask = jnp.asarray(mask_np[None, :])                                     # (1, Npad)

    pooled3 = pl.pallas_call(
        functools.partial(_stem_kernel, bb=bb, n_tiles=n_tiles, nt=nt, wp=Wp),
        out_shape=jax.ShapeDtypeStruct((B, CONV_CH, 1), jnp.float32),
        grid=(B // bb,),
        in_specs=[
            pl.BlockSpec((bb, C, lbuf), lambda b: (b, 0, 0)),
            pl.BlockSpec((1, n_pad), lambda b: (0, 0)),
            pl.BlockSpec((CONV_CH, IN_CH * 9), lambda b: (0, 0)),
            pl.BlockSpec((CONV_CH, 1), lambda b: (0, 0)),
        ],
        out_specs=pl.BlockSpec((bb, CONV_CH, 1), lambda b: (b, 0, 0)),
        compiler_params=pltpu.CompilerParams(
            dimension_semantics=("parallel",),
            vmem_limit_bytes=VMEM_LIMIT),
    )(xflat, mask, params["wcT"], params["bcT"])
    pooled = pooled3.reshape(B, CONV_CH)                                     # (B, 64)

    # --- head: projection + dim_reduction + quantum layer + classifier ---
    Bt = _pick_head_tile(B)
    logits_pad = pl.pallas_call(
        _head_kernel,
        out_shape=jax.ShapeDtypeStruct((B, PAD_CLASSES), jnp.float32),
        grid=(B // Bt,),
        in_specs=[
            pl.BlockSpec((Bt, CONV_CH), lambda i: (i, 0)),
            pl.BlockSpec((CONV_CH, FEATURE_DIM), lambda i: (0, 0)),
            pl.BlockSpec((1, FEATURE_DIM), lambda i: (0, 0)),
            pl.BlockSpec((FEATURE_DIM, 128), lambda i: (0, 0)),
            pl.BlockSpec((1, 128), lambda i: (0, 0)),
            pl.BlockSpec((128, NUM_QUBITS), lambda i: (0, 0)),
            pl.BlockSpec((1, NUM_QUBITS), lambda i: (0, 0)),
            pl.BlockSpec((PACKED_DIM, PACKED_DIM), lambda i: (0, 0)),
            pl.BlockSpec((PACKED_DIM, 32), lambda i: (0, 0)),
            pl.BlockSpec((1, 32), lambda i: (0, 0)),
            pl.BlockSpec((32, PAD_CLASSES), lambda i: (0, 0)),
            pl.BlockSpec((1, PAD_CLASSES), lambda i: (0, 0)),
        ],
        out_specs=pl.BlockSpec((Bt, PAD_CLASSES), lambda i: (i, 0)),
        compiler_params=pltpu.CompilerParams(
            dimension_semantics=("parallel",),
            vmem_limit_bytes=VMEM_LIMIT),
    )(pooled, params["wf"], params["bf"], params["w1f"], params["b1f"],
      params["w2s"], params["b2s"], params["upack_ph"], params["zw3"],
      params["b3"], params["w4p"], params["b4p"])

    return logits_pad[:, :NUM_CLASSES]


# ----------------------------------------------------------------------------
if __name__ == "__main__":
    x = jax.random.normal(jax.random.PRNGKey(0), (2, 3, 16, 16), jnp.float32)
    params = init_params(jax.random.PRNGKey(1))

    logits = jax.jit(quantum_hybrid_forward)(x, params)
    logits = jax.block_until_ready(logits)

    assert logits.shape == (2, NUM_CLASSES)
    assert bool(jnp.all(jnp.isfinite(logits)))
    print("KERNEL_OK")
</pallas_src>

<mosaic_0001>
module attributes {stable_mosaic.version = 11 : i64} {
  func.func @_stem_kernel(%arg0: i32, %arg1: memref<1x3x512xbf16, #tpu.memory_space<vmem>>, %arg2: memref<1x384xf32, #tpu.memory_space<vmem>>, %arg3: memref<64x27xbf16, #tpu.memory_space<vmem>>, %arg4: memref<64x1xf32, #tpu.memory_space<vmem>>, %arg5: memref<1x64x1xf32, #tpu.memory_space<vmem>>) attributes {dimension_semantics = [#tpu.dimension_semantics<parallel>], iteration_bounds = array<i64: 2>, scalar_prefetch = 0 : i64, scratch_operands = 0 : i64, tpu.core_type = #tpu.core_type<tc>, window_params = [{transform_indices = @transform_0, window_bounds = array<i64: 1, 3, 512>}, {pipeline_mode = #tpu.pipeline_mode<synchronous>, transform_indices = @transform_1, window_bounds = array<i64: 1, 384>}, {pipeline_mode = #tpu.pipeline_mode<synchronous>, transform_indices = @transform_2, window_bounds = array<i64: 64, 27>}, {pipeline_mode = #tpu.pipeline_mode<synchronous>, transform_indices = @transform_3, window_bounds = array<i64: 64, 1>}, {transform_indices = @transform_4, window_bounds = array<i64: 1, 64, 1>}]} {
    %cst = arith.constant 0.000000e+00 : f32
    %0 = vector.broadcast %cst : f32 to vector<64x1xf32>
    %cst_0 = arith.constant 0.000000e+00 : f32
    %1 = vector.broadcast %cst_0 : f32 to vector<64x384xf32>
    %c0 = arith.constant 0 : index
    %c0_1 = arith.constant 0 : index
    %c0_2 = arith.constant 0 : index
    %2 = vector.load %arg1[%c0, %c0_1, %c0_2] : memref<1x3x512xbf16, #tpu.memory_space<vmem>>, vector<1x3x384xbf16>
    %3 = vector.shape_cast %2 : vector<1x3x384xbf16> to vector<3x384xbf16>
    %c0_3 = arith.constant 0 : index
    %c0_4 = arith.constant 0 : index
    %4 = vector.load %arg3[%c0_3, %c0_4] : memref<64x27xbf16, #tpu.memory_space<vmem>>, vector<64x3xbf16>
    %cst_5 = arith.constant dense<0.000000e+00> : vector<64x384xf32>
    %5 = tpu.matmul %4, %3, %cst_5 {dimension_numbers = #tpu.dot_dimension_numbers<[1], [0], [0], [1], [0, 0, 1, 1], [], []>} : vector<64x3xbf16>, vector<3x384xbf16>, vector<64x384xf32> -> vector<64x384xf32>
    %6 = arith.addf %1, %5 : vector<64x384xf32>
    %c0_6 = arith.constant 0 : index
    %c0_7 = arith.constant 0 : index
    %c1 = arith.constant 1 : index
    %7 = vector.load %arg1[%c0_6, %c0_7, %c1] : memref<1x3x512xbf16, #tpu.memory_space<vmem>>, vector<1x3x384xbf16>
    %8 = vector.shape_cast %7 : vector<1x3x384xbf16> to vector<3x384xbf16>
    %c0_8 = arith.constant 0 : index
    %c3 = arith.constant 3 : index
    %9 = vector.load %arg3[%c0_8, %c3] : memref<64x27xbf16, #tpu.memory_space<vmem>>, vector<64x3xbf16>
    %cst_9 = arith.constant dense<0.000000e+00> : vector<64x384xf32>
    %10 = tpu.matmul %9, %8, %cst_9 {dimension_numbers = #tpu.dot_dimension_numbers<[1], [0], [0], [1], [0, 0, 1, 1], [], []>} : vector<64x3xbf16>, vector<3x384xbf16>, vector<64x384xf32> -> vector<64x384xf32>
    %11 = arith.addf %6, %10 : vector<64x384xf32>
    %c0_10 = arith.constant 0 : index
    %c0_11 = arith.constant 0 : index
    %c2 = arith.constant 2 : index
    %12 = vector.load %arg1[%c0_10, %c0_11, %c2] : memref<1x3x512xbf16, #tpu.memory_space<vmem>>, vector<1x3x384xbf16>
    %13 = vector.shape_cast %12 : vector<1x3x384xbf16> to vector<3x384xbf16>
    %c0_12 = arith.constant 0 : index
    %c6 = arith.constant 6 : index
    %14 = vector.load %arg3[%c0_12, %c6] : memref<64x27xbf16, #tpu.memory_space<vmem>>, vector<64x3xbf16>
    %cst_13 = arith.constant dense<0.000000e+00> : vector<64x384xf32>
    %15 = tpu.matmul %14, %13, %cst_13 {dimension_numbers = #tpu.dot_dimension_numbers<[1], [0], [0], [1], [0, 0, 1, 1], [], []>} : vector<64x3xbf16>, vector<3x384xbf16>, vector<64x384xf32> -> vector<64x384xf32>
    %16 = arith.addf %11, %15 : vector<64x384xf32>
    %c0_14 = arith.constant 0 : index
    %c0_15 = arith.constant 0 : index
    %c18 = arith.constant 18 : index
    %17 = vector.load %arg1[%c0_14, %c0_15, %c18] : memref<1x3x512xbf16, #tpu.memory_space<vmem>>, vector<1x3x384xbf16>
    %18 = vector.shape_cast %17 : vector<1x3x384xbf16> to vector<3x384xbf16>
    %c0_16 = arith.constant 0 : index
    %c9 = arith.constant 9 : index
    %19 = vector.load %arg3[%c0_16, %c9] : memref<64x27xbf16, #tpu.memory_space<vmem>>, vector<64x3xbf16>
    %cst_17 = arith.constant dense<0.000000e+00> : vector<64x384xf32>
    %20 = tpu.matmul %19, %18, %cst_17 {dimension_numbers = #tpu.dot_dimension_numbers<[1], [0], [0], [1], [0, 0, 1, 1], [], []>} : vector<64x3xbf16>, vector<3x384xbf16>, vector<64x384xf32> -> vector<64x384xf32>
    %21 = arith.addf %16, %20 : vector<64x384xf32>
    %c0_18 = arith.constant 0 : index
    %c0_19 = arith.constant 0 : index
    %c19 = arith.constant 19 : index
    %22 = vector.load %arg1[%c0_18, %c0_19, %c19] : memref<1x3x512xbf16, #tpu.memory_space<vmem>>, vector<1x3x384xbf16>
    %23 = vector.shape_cast %22 : vector<1x3x384xbf16> to vector<3x384xbf16>
    %c0_20 = arith.constant 0 : index
    %c12 = arith.constant 12 : index
    %24 = vector.load %arg3[%c0_20, %c12] : memref<64x27xbf16, #tpu.memory_space<vmem>>, vector<64x3xbf16>
    %cst_21 = arith.constant dense<0.000000e+00> : vector<64x384xf32>
    %25 = tpu.matmul %24, %23, %cst_21 {dimension_numbers = #tpu.dot_dimension_numbers<[1], [0], [0], [1], [0, 0, 1, 1], [], []>} : vector<64x3xbf16>, vector<3x384xbf16>, vector<64x384xf32> -> vector<64x384xf32>
    %26 = arith.addf %21, %25 : vector<64x384xf32>
    %c0_22 = arith.constant 0 : index
    %c0_23 = arith.constant 0 : index
    %c20 = arith.constant 20 : index
    %27 = vector.load %arg1[%c0_22, %c0_23, %c20] : memref<1x3x512xbf16, #tpu.memory_space<vmem>>, vector<1x3x384xbf16>
    %28 = vector.shape_cast %27 : vector<1x3x384xbf16> to vector<3x384xbf16>
    %c0_24 = arith.constant 0 : index
    %c15 = arith.constant 15 : index
    %29 = vector.load %arg3[%c0_24, %c15] : memref<64x27xbf16, #tpu.memory_space<vmem>>, vector<64x3xbf16>
    %cst_25 = arith.constant dense<0.000000e+00> : vector<64x384xf32>
    %30 = tpu.matmul %29, %28, %cst_25 {dimension_numbers = #tpu.dot_dimension_numbers<[1], [0], [0], [1], [0, 0, 1, 1], [], []>} : vector<64x3xbf16>, vector<3x384xbf16>, vector<64x384xf32> -> vector<64x384xf32>
    %31 = arith.addf %26, %30 : vector<64x384xf32>
    %c0_26 = arith.constant 0 : index
    %c0_27 = arith.constant 0 : index
    %c36 = arith.constant 36 : index
    %32 = vector.load %arg1[%c0_26, %c0_27, %c36] : memref<1x3x512xbf16, #tpu.memory_space<vmem>>, vector<1x3x384xbf16>
    %33 = vector.shape_cast %32 : vector<1x3x384xbf16> to vector<3x384xbf16>
    %c0_28 = arith.constant 0 : index
    %c18_29 = arith.constant 18 : index
    %34 = vector.load %arg3[%c0_28, %c18_29] : memref<64x27xbf16, #tpu.memory_space<vmem>>, vector<64x3xbf16>
    %cst_30 = arith.constant dense<0.000000e+00> : vector<64x384xf32>
    %35 = tpu.matmul %34, %33, %cst_30 {dimension_numbers = #tpu.dot_dimension_numbers<[1], [0], [0], [1], [0, 0, 1, 1], [], []>} : vector<64x3xbf16>, vector<3x384xbf16>, vector<64x384xf32> -> vector<64x384xf32>
    %36 = arith.addf %31, %35 : vector<64x384xf32>
    %c0_31 = arith.constant 0 : index
    %c0_32 = arith.constant 0 : index
    %c37 = arith.constant 37 : index
    %37 = vector.load %arg1[%c0_31, %c0_32, %c37] : memref<1x3x512xbf16, #tpu.memory_space<vmem>>, vector<1x3x384xbf16>
    %38 = vector.shape_cast %37 : vector<1x3x384xbf16> to vector<3x384xbf16>
    %c0_33 = arith.constant 0 : index
    %c21 = arith.constant 21 : index
    %39 = vector.load %arg3[%c0_33, %c21] : memref<64x27xbf16, #tpu.memory_space<vmem>>, vector<64x3xbf16>
    %cst_34 = arith.constant dense<0.000000e+00> : vector<64x384xf32>
    %40 = tpu.matmul %39, %38, %cst_34 {dimension_numbers = #tpu.dot_dimension_numbers<[1], [0], [0], [1], [0, 0, 1, 1], [], []>} : vector<64x3xbf16>, vector<3x384xbf16>, vector<64x384xf32> -> vector<64x384xf32>
    %41 = arith.addf %36, %40 : vector<64x384xf32>
    %c0_35 = arith.constant 0 : index
    %c0_36 = arith.constant 0 : index
    %c38 = arith.constant 38 : index
    %42 = vector.load %arg1[%c0_35, %c0_36, %c38] : memref<1x3x512xbf16, #tpu.memory_space<vmem>>, vector<1x3x384xbf16>
    %43 = vector.shape_cast %42 : vector<1x3x384xbf16> to vector<3x384xbf16>
    %c0_37 = arith.constant 0 : index
    %c24 = arith.constant 24 : index
    %44 = vector.load %arg3[%c0_37, %c24] : memref<64x27xbf16, #tpu.memory_space<vmem>>, vector<64x3xbf16>
    %cst_38 = arith.constant dense<0.000000e+00> : vector<64x384xf32>
    %45 = tpu.matmul %44, %43, %cst_38 {dimension_numbers = #tpu.dot_dimension_numbers<[1], [0], [0], [1], [0, 0, 1, 1], [], []>} : vector<64x3xbf16>, vector<3x384xbf16>, vector<64x384xf32> -> vector<64x384xf32>
    %46 = arith.addf %41, %45 : vector<64x384xf32>
    %c0_39 = arith.constant 0 : index
    %c0_40 = arith.constant 0 : index
    %47 = vector.load %arg4[%c0_39, %c0_40] : memref<64x1xf32, #tpu.memory_space<vmem>>, vector<64x1xf32>
    %48 = vector.broadcast %47 : vector<64x1xf32> to vector<64x384xf32>
    %49 = arith.addf %46, %48 : vector<64x384xf32>
    %cst_41 = arith.constant 0.000000e+00 : f32
    %50 = vector.broadcast %cst_41 : f32 to vector<64x384xf32>
    %51 = arith.maximumf %49, %50 : vector<64x384xf32>
    %c0_42 = arith.constant 0 : index
    %c0_43 = arith.constant 0 : index
    %52 = vector.load %arg2[%c0_42, %c0_43] : memref<1x384xf32, #tpu.memory_space<vmem>>, vector<1x384xf32>
    %53 = vector.broadcast %52 : vector<1x384xf32> to vector<64x384xf32>
    %54 = arith.mulf %51, %53 : vector<64x384xf32>
    %cst_44 = arith.constant dense<0.000000e+00> : vector<64xf32>
    %55 = vector.multi_reduction <add>, %54, %cst_44 [1] : vector<64x384xf32> to vector<64xf32>
    %56 = vector.shape_cast %55 : vector<64xf32> to vector<64x1xf32>
    %57 = arith.addf %0, %56 : vector<64x1xf32>
    %c0_45 = arith.constant 0 : index
    %c0_46 = arith.constant 0 : index
    %c0_47 = arith.constant 0 : index
    %58 = vector.load %arg5[%c0_45, %c0_46, %c0_47] : memref<1x64x1xf32, #tpu.memory_space<vmem>>, vector<1x64x1xf32>
    %59 = vector.shape_cast %58 : vector<1x64x1xf32> to vector<64x1xf32>
    %60 = vector.shape_cast %57 : vector<64x1xf32> to vector<1x64x1xf32>
    tpu.vector_store %arg5[%c0_45, %c0_46, %c0_47], %60 {strides = array<i32>} : memref<1x64x1xf32, #tpu.memory_space<vmem>>, vector<1x64x1xf32>,
    return
  }
  func.func @transform_0(%arg0: i32) -> (i32, i32, i32) {
    %c0_i32 = arith.constant 0 : i32
    %c0_i32_0 = arith.constant 0 : i32
    %c0_i32_1 = arith.constant 0 : i32
    return %arg0, %c0_i32, %c0_i32_0 : i32, i32, i32
  }
  func.func @transform_1(%arg0: i32) -> (i32, i32) {
    %c0_i32 = arith.constant 0 : i32
    %c0_i32_0 = arith.constant 0 : i32
    %c0_i32_1 = arith.constant 0 : i32
    return %c0_i32, %c0_i32_0 : i32, i32
  }
  func.func @transform_2(%arg0: i32) -> (i32, i32) {
    %c0_i32 = arith.constant 0 : i32
    %c0_i32_0 = arith.constant 0 : i32
    %c0_i32_1 = arith.constant 0 : i32
    return %c0_i32, %c0_i32_0 : i32, i32
  }
  func.func @transform_3(%arg0: i32) -> (i32, i32) {
    %c0_i32 = arith.constant 0 : i32
    %c0_i32_0 = arith.constant 0 : i32
    %c0_i32_1 = arith.constant 0 : i32
    return %c0_i32, %c0_i32_0 : i32, i32
  }
  func.func @transform_4(%arg0: i32) -> (i32, i32, i32) {
    %c0_i32 = arith.constant 0 : i32
    %c0_i32_0 = arith.constant 0 : i32
    %c0_i32_1 = arith.constant 0 : i32
    return %arg0, %c0_i32, %c0_i32_0 : i32, i32, i32
  }
}

module attributes {stable_mosaic.version = 11 : i64} {
  func.func @_head_kernel(%arg0: i32, %arg1: memref<2x64xf32, #tpu.memory_space<vmem>>, %arg2: memref<64x2048xbf16, #tpu.memory_space<vmem>>, %arg3: memref<1x2048xf32, #tpu.memory_space<vmem>>, %arg4: memref<2048x128xbf16, #tpu.memory_space<vmem>>, %arg5: memref<1x128xf32, #tpu.memory_space<vmem>>, %arg6: memref<128x6xf32, #tpu.memory_space<vmem>>, %arg7: memref<1x6xf32, #tpu.memory_space<vmem>>, %arg8: memref<128x128xf32, #tpu.memory_space<vmem>>, %arg9: memref<128x32xf32, #tpu.memory_space<vmem>>, %arg10: memref<1x32xf32, #tpu.memory_space<vmem>>, %arg11: memref<32x128xf32, #tpu.memory_space<vmem>>, %arg12: memref<1x128xf32, #tpu.memory_space<vmem>>, %arg13: memref<2x128xf32, #tpu.memory_space<vmem>>) attributes {dimension_semantics = [#tpu.dimension_semantics<parallel>], iteration_bounds = array<i64: 1>, scalar_prefetch = 0 : i64, scratch_operands = 0 : i64, tpu.core_type = #tpu.core_type<tc>, window_params = [{transform_indices = @transform_0, window_bounds = array<i64: 2, 64>}, {pipeline_mode = #tpu.pipeline_mode<synchronous>, transform_indices = @transform_1, window_bounds = array<i64: 64, 2048>}, {pipeline_mode = #tpu.pipeline_mode<synchronous>, transform_indices = @transform_2, window_bounds = array<i64: 1, 2048>}, {pipeline_mode = #tpu.pipeline_mode<synchronous>, transform_indices = @transform_3, window_bounds = array<i64: 2048, 128>}, {pipeline_mode = #tpu.pipeline_mode<synchronous>, transform_indices = @transform_4, window_bounds = array<i64: 1, 128>}, {pipeline_mode = #tpu.pipeline_mode<synchronous>, transform_indices = @transform_5, window_bounds = array<i64: 128, 6>}, {pipeline_mode = #tpu.pipeline_mode<synchronous>, transform_indices = @transform_6, window_bounds = array<i64: 1, 6>}, {pipeline_mode = #tpu.pipeline_mode<synchronous>, transform_indices = @transform_7, window_bounds = array<i64: 128, 128>}, {pipeline_mode = #tpu.pipeline_mode<synchronous>, transform_indices = @transform_8, window_bounds = array<i64: 128, 32>}, {pipeline_mode = #tpu.pipeline_mode<synchronous>, transform_indices = @transform_9, window_bounds = array<i64: 1, 32>}, {pipeline_mode = #tpu.pipeline_mode<synchronous>, transform_indices = @transform_10, window_bounds = array<i64: 32, 128>}, {pipeline_mode = #tpu.pipeline_mode<synchronous>, transform_indices = @transform_11, window_bounds = array<i64: 1, 128>}, {transform_indices = @transform_12, window_bounds = array<i64: 2, 128>}]} {
    %c0 = arith.constant 0 : index
    %c0_0 = arith.constant 0 : index
    %0 = vector.load %arg1[%c0, %c0_0] : memref<2x64xf32, #tpu.memory_space<vmem>>, vector<2x64xf32>
    %1 = arith.truncf %0 : vector<2x64xf32> to vector<2x64xbf16>
    %c0_1 = arith.constant 0 : index
    %c0_2 = arith.constant 0 : index
    %2 = vector.load %arg2[%c0_1, %c0_2] : memref<64x2048xbf16, #tpu.memory_space<vmem>>, vector<64x2048xbf16>
    %cst = arith.constant dense<0.000000e+00> : vector<2x2048xf32>
    %3 = tpu.matmul %1, %2, %cst {dimension_numbers = #tpu.dot_dimension_numbers<[1], [0], [0], [1], [0, 0, 1, 1], [], []>} : vector<2x64xbf16>, vector<64x2048xbf16>, vector<2x2048xf32> -> vector<2x2048xf32>
    %c0_3 = arith.constant 0 : index
    %c0_4 = arith.constant 0 : index
    %4 = vector.load %arg3[%c0_3, %c0_4] : memref<1x2048xf32, #tpu.memory_space<vmem>>, vector<1x2048xf32>
    %5 = vector.broadcast %4 : vector<1x2048xf32> to vector<2x2048xf32>
    %6 = arith.addf %3, %5 : vector<2x2048xf32>
    %cst_5 = arith.constant 0.000000e+00 : f32
    %7 = vector.broadcast %cst_5 : f32 to vector<2x2048xf32>
    %8 = arith.maximumf %6, %7 : vector<2x2048xf32>
    %9 = arith.truncf %8 : vector<2x2048xf32> to vector<2x2048xbf16>
    %c0_6 = arith.constant 0 : index
    %c0_7 = arith.constant 0 : index
    %10 = vector.load %arg4[%c0_6, %c0_7] : memref<2048x128xbf16, #tpu.memory_space<vmem>>, vector<2048x128xbf16>
    %cst_8 = arith.constant dense<0.000000e+00> : vector<2x128xf32>
    %11 = tpu.matmul %9, %10, %cst_8 {dimension_numbers = #tpu.dot_dimension_numbers<[1], [0], [0], [1], [0, 0, 1, 1], [], []>} : vector<2x2048xbf16>, vector<2048x128xbf16>, vector<2x128xf32> -> vector<2x128xf32>
    %c0_9 = arith.constant 0 : index
    %c0_10 = arith.constant 0 : index
    %12 = vector.load %arg5[%c0_9, %c0_10] : memref<1x128xf32, #tpu.memory_space<vmem>>, vector<1x128xf32>
    %13 = vector.broadcast %12 : vector<1x128xf32> to vector<2x128xf32>
    %14 = arith.addf %11, %13 : vector<2x128xf32>
    %cst_11 = arith.constant 0.000000e+00 : f32
    %15 = vector.broadcast %cst_11 : f32 to vector<2x128xf32>
    %16 = arith.maximumf %14, %15 : vector<2x128xf32>
    %c0_12 = arith.constant 0 : index
    %c0_13 = arith.constant 0 : index
    %17 = vector.load %arg6[%c0_12, %c0_13] : memref<128x6xf32, #tpu.memory_space<vmem>>, vector<128x6xf32>
    %cst_14 = arith.constant dense<0.000000e+00> : vector<2x6xf32>
    %18 = tpu.matmul %16, %17, %cst_14 {dimension_numbers = #tpu.dot_dimension_numbers<[1], [0], [0], [1], [0, 0, 1, 1], [], []>} : vector<2x128xf32>, vector<128x6xf32>, vector<2x6xf32> -> vector<2x6xf32>
    %c0_15 = arith.constant 0 : index
    %c0_16 = arith.constant 0 : index
    %19 = vector.load %arg7[%c0_15, %c0_16] : memref<1x6xf32, #tpu.memory_space<vmem>>, vector<1x6xf32>
    %20 = vector.broadcast %19 : vector<1x6xf32> to vector<2x6xf32>
    %21 = arith.addf %18, %20 : vector<2x6xf32>
    %cst_17 = arith.constant 5.000000e-01 : f32
    %22 = vector.broadcast %cst_17 : f32 to vector<2x6xf32>
    %23 = arith.mulf %22, %21 : vector<2x6xf32>
    %24 = math.cos %23 : vector<2x6xf32>
    %cst_18 = arith.constant 5.000000e-01 : f32
    %25 = vector.broadcast %cst_18 : f32 to vector<2x6xf32>
    %26 = arith.mulf %25, %21 : vector<2x6xf32>
    %27 = math.sin %26 : vector<2x6xf32>
    %28 = tpu.iota {dimensions = array<i32: 1>} : vector<2x128xi32>
    %c63_i32 = arith.constant 63 : i32
    %29 = vector.broadcast %c63_i32 : i32 to vector<2x128xi32>
    %30 = arith.andi %28, %29 : vector<2x128xi32>
    %c5_i32 = arith.constant 5 : i32
    %31 = vector.broadcast %c5_i32 : i32 to vector<2x128xi32>
    %32 = arith.shrsi %30, %31 : vector<2x128xi32>
    %c1_i32 = arith.constant 1 : i32
    %33 = vector.broadcast %c1_i32 : i32 to vector<2x128xi32>
    %34 = arith.andi %32, %33 : vector<2x128xi32>
    %c1_i32_19 = arith.constant 1 : i32
    %35 = vector.broadcast %c1_i32_19 : i32 to vector<2x128xi32>
    %36 = arith.cmpi eq, %34, %35 : vector<2x128xi32>
    %37 = vector.extract_strided_slice %27 {offsets = [0, 0], sizes = [2, 1], strides = [1, 1]} : vector<2x6xf32> to vector<2x1xf32>
    %38 = vector.extract_strided_slice %24 {offsets = [0, 0], sizes = [2, 1], strides = [1, 1]} : vector<2x6xf32> to vector<2x1xf32>
    %39 = vector.shape_cast %37 : vector<2x1xf32> to vector<2x1xf32>
    %40 = vector.broadcast %39 : vector<2x1xf32> to vector<2x128xf32>
    %41 = vector.shape_cast %38 : vector<2x1xf32> to vector<2x1xf32>
    %42 = vector.broadcast %41 : vector<2x1xf32> to vector<2x128xf32>
    %43 = arith.select %36, %40, %42 : vector<2x128xi1>, vector<2x128xf32>
    %c4_i32 = arith.constant 4 : i32
    %44 = vector.broadcast %c4_i32 : i32 to vector<2x128xi32>
    %45 = arith.shrsi %30, %44 : vector<2x128xi32>
    %c1_i32_20 = arith.constant 1 : i32
    %46 = vector.broadcast %c1_i32_20 : i32 to vector<2x128xi32>
    %47 = arith.andi %45, %46 : vector<2x128xi32>
    %c1_i32_21 = arith.constant 1 : i32
    %48 = vector.broadcast %c1_i32_21 : i32 to vector<2x128xi32>
    %49 = arith.cmpi eq, %47, %48 : vector<2x128xi32>
    %50 = vector.extract_strided_slice %27 {offsets = [0, 1], sizes = [2, 1], strides = [1, 1]} : vector<2x6xf32> to vector<2x1xf32>
    %51 = vector.extract_strided_slice %24 {offsets = [0, 1], sizes = [2, 1], strides = [1, 1]} : vector<2x6xf32> to vector<2x1xf32>
    %52 = vector.shape_cast %50 : vector<2x1xf32> to vector<2x1xf32>
    %53 = vector.broadcast %52 : vector<2x1xf32> to vector<2x128xf32>
    %54 = vector.shape_cast %51 : vector<2x1xf32> to vector<2x1xf32>
    %55 = vector.broadcast %54 : vector<2x1xf32> to vector<2x128xf32>
    %56 = arith.select %49, %53, %55 : vector<2x128xi1>, vector<2x128xf32>
    %57 = arith.mulf %43, %56 : vector<2x128xf32>
    %c3_i32 = arith.constant 3 : i32
    %58 = vector.broadcast %c3_i32 : i32 to vector<2x128xi32>
    %59 = arith.shrsi %30, %58 : vector<2x128xi32>
    %c1_i32_22 = arith.constant 1 : i32
    %60 = vector.broadcast %c1_i32_22 : i32 to vector<2x128xi32>
    %61 = arith.andi %59, %60 : vector<2x128xi32>
    %c1_i32_23 = arith.constant 1 : i32
    %62 = vector.broadcast %c1_i32_23 : i32 to vector<2x128xi32>
    %63 = arith.cmpi eq, %61, %62 : vector<2x128xi32>
    %64 = vector.extract_strided_slice %27 {offsets = [0, 2], sizes = [2, 1], strides = [1, 1]} : vector<2x6xf32> to vector<2x1xf32>
    %65 = vector.extract_strided_slice %24 {offsets = [0, 2], sizes = [2, 1], strides = [1, 1]} : vector<2x6xf32> to vector<2x1xf32>
    %66 = vector.shape_cast %64 : vector<2x1xf32> to vector<2x1xf32>
    %67 = vector.broadcast %66 : vector<2x1xf32> to vector<2x128xf32>
    %68 = vector.shape_cast %65 : vector<2x1xf32> to vector<2x1xf32>
    %69 = vector.broadcast %68 : vector<2x1xf32> to vector<2x128xf32>
    %70 = arith.select %63, %67, %69 : vector<2x128xi1>, vector<2x128xf32>
    %71 = arith.mulf %57, %70 : vector<2x128xf32>
    %c2_i32 = arith.constant 2 : i32
    %72 = vector.broadcast %c2_i32 : i32 to vector<2x128xi32>
    %73 = arith.shrsi %30, %72 : vector<2x128xi32>
    %c1_i32_24 = arith.constant 1 : i32
    %74 = vector.broadcast %c1_i32_24 : i32 to vector<2x128xi32>
    %75 = arith.andi %73, %74 : vector<2x128xi32>
    %c1_i32_25 = arith.constant 1 : i32
    %76 = vector.broadcast %c1_i32_25 : i32 to vector<2x128xi32>
    %77 = arith.cmpi eq, %75, %76 : vector<2x128xi32>
    %78 = vector.extract_strided_slice %27 {offsets = [0, 3], sizes = [2, 1], strides = [1, 1]} : vector<2x6xf32> to vector<2x1xf32>
    %79 = vector.extract_strided_slice %24 {offsets = [0, 3], sizes = [2, 1], strides = [1, 1]} : vector<2x6xf32> to vector<2x1xf32>
    %80 = vector.shape_cast %78 : vector<2x1xf32> to vector<2x1xf32>
    %81 = vector.broadcast %80 : vector<2x1xf32> to vector<2x128xf32>
    %82 = vector.shape_cast %79 : vector<2x1xf32> to vector<2x1xf32>
    %83 = vector.broadcast %82 : vector<2x1xf32> to vector<2x128xf32>
    %84 = arith.select %77, %81, %83 : vector<2x128xi1>, vector<2x128xf32>
    %85 = arith.mulf %71, %84 : vector<2x128xf32>
    %c1_i32_26 = arith.constant 1 : i32
    %86 = vector.broadcast %c1_i32_26 : i32 to vector<2x128xi32>
    %87 = arith.shrsi %30, %86 : vector<2x128xi32>
    %c1_i32_27 = arith.constant 1 : i32
    %88 = vector.broadcast %c1_i32_27 : i32 to vector<2x128xi32>
    %89 = arith.andi %87, %88 : vector<2x128xi32>
    %c1_i32_28 = arith.constant 1 : i32
    %90 = vector.broadcast %c1_i32_28 : i32 to vector<2x128xi32>
    %91 = arith.cmpi eq, %89, %90 : vector<2x128xi32>
    %92 = vector.extract_strided_slice %27 {offsets = [0, 4], sizes = [2, 1], strides = [1, 1]} : vector<2x6xf32> to vector<2x1xf32>
    %93 = vector.extract_strided_slice %24 {offsets = [0, 4], sizes = [2, 1], strides = [1, 1]} : vector<2x6xf32> to vector<2x1xf32>
    %94 = vector.shape_cast %92 : vector<2x1xf32> to vector<2x1xf32>
    %95 = vector.broadcast %94 : vector<2x1xf32> to vector<2x128xf32>
    %96 = vector.shape_cast %93 : vector<2x1xf32> to vector<2x1xf32>
    %97 = vector.broadcast %96 : vector<2x1xf32> to vector<2x128xf32>
    %98 = arith.select %91, %95, %97 : vector<2x128xi1>, vector<2x128xf32>
    %99 = arith.mulf %85, %98 : vector<2x128xf32>
    %c0_i32 = arith.constant 0 : i32
    %100 = vector.broadcast %c0_i32 : i32 to vector<2x128xi32>
    %101 = arith.shrsi %30, %100 : vector<2x128xi32>
    %c1_i32_29 = arith.constant 1 : i32
    %102 = vector.broadcast %c1_i32_29 : i32 to vector<2x128xi32>
    %103 = arith.andi %101, %102 : vector<2x128xi32>
    %c1_i32_30 = arith.constant 1 : i32
    %104 = vector.broadcast %c1_i32_30 : i32 to vector<2x128xi32>
    %105 = arith.cmpi eq, %103, %104 : vector<2x128xi32>
    %106 = vector.extract_strided_slice %27 {offsets = [0, 5], sizes = [2, 1], strides = [1, 1]} : vector<2x6xf32> to vector<2x1xf32>
    %107 = vector.extract_strided_slice %24 {offsets = [0, 5], sizes = [2, 1], strides = [1, 1]} : vector<2x6xf32> to vector<2x1xf32>
    %108 = vector.shape_cast %106 : vector<2x1xf32> to vector<2x1xf32>
    %109 = vector.broadcast %108 : vector<2x1xf32> to vector<2x128xf32>
    %110 = vector.shape_cast %107 : vector<2x1xf32> to vector<2x1xf32>
    %111 = vector.broadcast %110 : vector<2x1xf32> to vector<2x128xf32>
    %112 = arith.select %105, %109, %111 : vector<2x128xi1>, vector<2x128xf32>
    %113 = arith.mulf %99, %112 : vector<2x128xf32>
    %c0_31 = arith.constant 0 : index
    %c0_32 = arith.constant 0 : index
    %114 = vector.load %arg8[%c0_31, %c0_32] : memref<128x128xf32, #tpu.memory_space<vmem>>, vector<128x128xf32>
    %cst_33 = arith.constant dense<0.000000e+00> : vector<2x128xf32>
    %115 = tpu.matmul %113, %114, %cst_33 {dimension_numbers = #tpu.dot_dimension_numbers<[1], [0], [0], [1], [0, 0, 1, 1], [], []>} : vector<2x128xf32>, vector<128x128xf32>, vector<2x128xf32> -> vector<2x128xf32>
    %116 = arith.mulf %115, %115 : vector<2x128xf32>
    %c0_34 = arith.constant 0 : index
    %c0_35 = arith.constant 0 : index
    %117 = vector.load %arg9[%c0_34, %c0_35] : memref<128x32xf32, #tpu.memory_space<vmem>>, vector<128x32xf32>
    %cst_36 = arith.constant dense<0.000000e+00> : vector<2x32xf32>
    %118 = tpu.matmul %116, %117, %cst_36 {dimension_numbers = #tpu.dot_dimension_numbers<[1], [0], [0], [1], [0, 0, 1, 1], [], []>} : vector<2x128xf32>, vector<128x32xf32>, vector<2x32xf32> -> vector<2x32xf32>
    %c0_37 = arith.constant 0 : index
    %c0_38 = arith.constant 0 : index
    %119 = vector.load %arg10[%c0_37, %c0_38] : memref<1x32xf32, #tpu.memory_space<vmem>>, vector<1x32xf32>
    %120 = vector.broadcast %119 : vector<1x32xf32> to vector<2x32xf32>
    %121 = arith.addf %118, %120 : vector<2x32xf32>
    %cst_39 = arith.constant 0.000000e+00 : f32
    %122 = vector.broadcast %cst_39 : f32 to vector<2x32xf32>
    %123 = arith.maximumf %121, %122 : vector<2x32xf32>
    %c0_40 = arith.constant 0 : index
    %c0_41 = arith.constant 0 : index
    %124 = vector.load %arg11[%c0_40, %c0_41] : memref<32x128xf32, #tpu.memory_space<vmem>>, vector<32x128xf32>
    %cst_42 = arith.constant dense<0.000000e+00> : vector<2x128xf32>
    %125 = tpu.matmul %123, %124, %cst_42 {dimension_numbers = #tpu.dot_dimension_numbers<[1], [0], [0], [1], [0, 0, 1, 1], [], []>} : vector<2x32xf32>, vector<32x128xf32>, vector<2x128xf32> -> vector<2x128xf32>
    %c0_43 = arith.constant 0 : index
    %c0_44 = arith.constant 0 : index
    %126 = vector.load %arg12[%c0_43, %c0_44] : memref<1x128xf32, #tpu.memory_space<vmem>>, vector<1x128xf32>
    %127 = vector.broadcast %126 : vector<1x128xf32> to vector<2x128xf32>
    %128 = arith.addf %125, %127 : vector<2x128xf32>
    %c0_45 = arith.constant 0 : index
    %c0_46 = arith.constant 0 : index
    %129 = vector.load %arg13[%c0_45, %c0_46] : memref<2x128xf32, #tpu.memory_space<vmem>>, vector<2x128xf32>
    tpu.vector_store %arg13[%c0_45, %c0_46], %128 {strides = array<i32>} : memref<2x128xf32, #tpu.memory_space<vmem>>, vector<2x128xf32>,
    return
  }
  func.func @transform_0(%arg0: i32) -> (i32, i32) {
    %c0_i32 = arith.constant 0 : i32
    %c0_i32_0 = arith.constant 0 : i32
    return %arg0, %c0_i32 : i32, i32
  }
  func.func @transform_1(%arg0: i32) -> (i32, i32) {
    %c0_i32 = arith.constant 0 : i32
    %c0_i32_0 = arith.constant 0 : i32
    %c0_i32_1 = arith.constant 0 : i32
    return %c0_i32, %c0_i32_0 : i32, i32
  }
  func.func @transform_2(%arg0: i32) -> (i32, i32) {
    %c0_i32 = arith.constant 0 : i32
    %c0_i32_0 = arith.constant 0 : i32
    %c0_i32_1 = arith.constant 0 : i32
    return %c0_i32, %c0_i32_0 : i32, i32
  }
  func.func @transform_3(%arg0: i32) -> (i32, i32) {
    %c0_i32 = arith.constant 0 : i32
    %c0_i32_0 = arith.constant 0 : i32
    %c0_i32_1 = arith.constant 0 : i32
    return %c0_i32, %c0_i32_0 : i32, i32
  }
  func.func @transform_4(%arg0: i32) -> (i32, i32) {
    %c0_i32 = arith.constant 0 : i32
    %c0_i32_0 = arith.constant 0 : i32
    %c0_i32_1 = arith.constant 0 : i32
    return %c0_i32, %c0_i32_0 : i32, i32
  }
  func.func @transform_5(%arg0: i32) -> (i32, i32) {
    %c0_i32 = arith.constant 0 : i32
    %c0_i32_0 = arith.constant 0 : i32
    %c0_i32_1 = arith.constant 0 : i32
    return %c0_i32, %c0_i32_0 : i32, i32
  }
  func.func @transform_6(%arg0: i32) -> (i32, i32) {
    %c0_i32 = arith.constant 0 : i32
    %c0_i32_0 = arith.constant 0 : i32
    %c0_i32_1 = arith.constant 0 : i32
    return %c0_i32, %c0_i32_0 : i32, i32
  }
  func.func @transform_7(%arg0: i32) -> (i32, i32) {
    %c0_i32 = arith.constant 0 : i32
    %c0_i32_0 = arith.constant 0 : i32
    %c0_i32_1 = arith.constant 0 : i32
    return %c0_i32, %c0_i32_0 : i32, i32
  }
  func.func @transform_8(%arg0: i32) -> (i32, i32) {
    %c0_i32 = arith.constant 0 : i32
    %c0_i32_0 = arith.constant 0 : i32
    %c0_i32_1 = arith.constant 0 : i32
    return %c0_i32, %c0_i32_0 : i32, i32
  }
  func.func @transform_9(%arg0: i32) -> (i32, i32) {
    %c0_i32 = arith.constant 0 : i32
    %c0_i32_0 = arith.constant 0 : i32
    %c0_i32_1 = arith.constant 0 : i32
    return %c0_i32, %c0_i32_0 : i32, i32
  }
  func.func @transform_10(%arg0: i32) -> (i32, i32) {
    %c0_i32 = arith.constant 0 : i32
    %c0_i32_0 = arith.constant 0 : i32
    %c0_i32_1 = arith.constant 0 : i32
    return %c0_i32, %c0_i32_0 : i32, i32
  }
  func.func @transform_11(%arg0: i32) -> (i32, i32) {
    %c0_i32 = arith.constant 0 : i32
    %c0_i32_0 = arith.constant 0 : i32
    %c0_i32_1 = arith.constant 0 : i32
    return %c0_i32, %c0_i32_0 : i32, i32
  }
  func.func @transform_12(%arg0: i32) -> (i32, i32) {
    %c0_i32 = arith.constant 0 : i32
    %c0_i32_0 = arith.constant 0 : i32
    return %arg0, %c0_i32 : i32, i32
  }
}

</mosaic_0001>

<llo_original>
// kernel: quantum_hybrid_forward.2
$region0: #{quantum_hybrid_forward.2}
  #allocation0 [shape = 'u32[]', space=smem, size = 0x4, offset = 0x4, fixed_abs, tag = 'smem constant byte address 0x4 - core index']
  #allocation1 [shape = 'u32[144,128]{1,0:T(1,128)}', space=vmem, size = 0x12000, scoped, tag = 'internal scratch']
  %s0 = inlined_call_operand.vmem [shape: bf16[2,3,512], index: 0, kind: input, shape index: {}]
  %s1 = inlined_call_operand.vmem [shape: f32[1,384], index: 1, kind: input, shape index: {}]
  %s2 = inlined_call_operand.vmem [shape: bf16[64,27], index: 2, kind: input, shape index: {}]
  %s3 = inlined_call_operand.vmem [shape: f32[64,1], index: 3, kind: input, shape index: {}]
  %s4 = inlined_call_operand.vmem [shape: f32[2,64,1], index: 4, kind: output, shape index: {}]
  %s5 = sld [smem:[#allocation0]]
  $region49: #{quantum_hybrid_forward.2} parent=0
    _
  %s7 = ssub.s32 1, %s5
  %s8 = scalar_select 0, %s7, %s5
  loop: start=0, step=1, limit=4
  $region2: #{quantum_hybrid_forward.2} parent=0 // loop_pre_header
    _
  $region3: #{quantum_hybrid_forward.2} parent=0 // loop_header
    %s10 = sphi 0, %s14
    %p11 = scmp.ge.s32.totalorder %s10, 4
    %s20 = sphi 0, %s22
    %s23 = sphi 0, %s20
    %s24 = sphi 0, %s23
    %s40 = sphi 0, %s24
    %s44 = sphi 0, %s44
    %s46 = sphi 0, %s44
    %s47 = sphi 0, %s46
    %s61 = sphi 0, %s47
    %s65 = sphi 0, %s65
    %s67 = sphi 0, %s65
    %s68 = sphi 0, %s67
    %s82 = sphi 0, %s68
    %s86 = sphi 0, %s86
    %s88 = sphi 0, %s86
    %s89 = sphi 0, %s88
    %s103 = sphi 0, %s89
    %s109 = sphi 0, %s111
    %s112 = sphi 0, %s109
    %s113 = sphi 0, %s112
    %s129 = sphi 0, %s113
  $region4: #{quantum_hybrid_forward.2} parent=0 // loop_header_branch
    %13 = sbr.rel (%p11) target = $region8
  $region5: #{quantum_hybrid_forward.2} parent=0 // loop_body
    %s15 = ssub.s32 %s10, 1
    %s16 = ssub.s32 %s10, 2
    %s17 = sadd.s32 %s10, 1
    %s18 = ssub.s32 %s10, %s17
    %p19 = scmp.eq.s32.totalorder %s18, 0
    %s21 = sadd.s32 %s20, 1
    %s22 = scalar_select %p19, %s20, %s21
    %p25 = pneg %p19
    %p26 = scmp.eq.s32.totalorder %s10, 1
    %p27 = por %p25, %p26
    %p28 = scmp.ne.s32.totalorder %s20, %s23
    %p29 = scmp.eq.s32.totalorder %s10, 0
    %p30 = por %p28, %p29
    %p31 = scmp.ne.s32.totalorder %s20, %s23
    %p32 = scmp.eq.s32.totalorder %s15, 1
    %p33 = por %p31, %p32
    %p34 = scmp.ne.s32.totalorder %s23, %s24
    %p35 = scmp.eq.s32.totalorder %s15, 0
    %p36 = por %p34, %p35
    %p37 = scmp.ne.s32.totalorder %s23, %s24
    %p38 = scmp.eq.s32.totalorder %s16, 1
    %p39 = por %p37, %p38
    %p41 = scmp.ne.s32.totalorder %s24, %s40
    %p42 = scmp.eq.s32.totalorder %s16, 0
    %p43 = por %p41, %p42
    %s45 = sadd.s32 %s44, 1
    %p48 = scmp.eq.s32.totalorder %s10, 1
    %p49 = scmp.ne.s32.totalorder %s44, %s46
    %p50 = scmp.eq.s32.totalorder %s10, 0
    %p51 = por %p49, %p50
    %p52 = scmp.ne.s32.totalorder %s44, %s46
    %p53 = scmp.eq.s32.totalorder %s15, 1
    %p54 = por %p52, %p53
    %p55 = scmp.ne.s32.totalorder %s46, %s47
    %p56 = scmp.eq.s32.totalorder %s15, 0
    %p57 = por %p55, %p56
    %p58 = scmp.ne.s32.totalorder %s46, %s47
    %p59 = scmp.eq.s32.totalorder %s16, 1
    %p60 = por %p58, %p59
    %p62 = scmp.ne.s32.totalorder %s47, %s61
    %p63 = scmp.eq.s32.totalorder %s16, 0
    %p64 = por %p62, %p63
    %s66 = sadd.s32 %s65, 1
    %p69 = scmp.eq.s32.totalorder %s10, 1
    %p70 = scmp.ne.s32.totalorder %s65, %s67
    %p71 = scmp.eq.s32.totalorder %s10, 0
    %p72 = por %p70, %p71
    %p73 = scmp.ne.s32.totalorder %s65, %s67
    %p74 = scmp.eq.s32.totalorder %s15, 1
    %p75 = por %p73, %p74
    %p76 = scmp.ne.s32.totalorder %s67, %s68
    %p77 = scmp.eq.s32.totalorder %s15, 0
    %p78 = por %p76, %p77
    %p79 = scmp.ne.s32.totalorder %s67, %s68
    %p80 = scmp.eq.s32.totalorder %s16, 1
    %p81 = por %p79, %p80
    %p83 = scmp.ne.s32.totalorder %s68, %s82
    %p84 = scmp.eq.s32.totalorder %s16, 0
    %p85 = por %p83, %p84
    %s87 = sadd.s32 %s86, 1
    %p90 = scmp.eq.s32.totalorder %s10, 1
    %p91 = scmp.ne.s32.totalorder %s86, %s88
    %p92 = scmp.eq.s32.totalorder %s10, 0
    %p93 = por %p91, %p92
    %p94 = scmp.ne.s32.totalorder %s86, %s88
    %p95 = scmp.eq.s32.totalorder %s15, 1
    %p96 = por %p94, %p95
    %p97 = scmp.ne.s32.totalorder %s88, %s89
    %p98 = scmp.eq.s32.totalorder %s15, 0
    %p99 = por %p97, %p98
    %p100 = scmp.ne.s32.totalorder %s88, %s89
    %p101 = scmp.eq.s32.totalorder %s16, 1
    %p102 = por %p100, %p101
    %p104 = scmp.ne.s32.totalorder %s89, %s103
    %p105 = scmp.eq.s32.totalorder %s16, 0
    %p106 = por %p104, %p105
    %s107 = ssub.s32 %s10, %s17
    %p108 = scmp.eq.s32.totalorder %s107, 0
    %s110 = sadd.s32 %s109, 1
    %s111 = scalar_select %p108, %s109, %s110
    %p114 = pneg %p108
    %p115 = scmp.eq.s32.totalorder %s10, 1
    %p116 = por %p114, %p115
    %p117 = scmp.ne.s32.totalorder %s109, %s112
    %p118 = scmp.eq.s32.totalorder %s10, 0
    %p119 = por %p117, %p118
    %p120 = scmp.ne.s32.totalorder %s109, %s112
    %p121 = scmp.eq.s32.totalorder %s15, 1
    %p122 = por %p120, %p121
    %p123 = scmp.ne.s32.totalorder %s112, %s113
    %p124 = scmp.eq.s32.totalorder %s15, 0
    %p125 = por %p123, %p124
    %p126 = scmp.ne.s32.totalorder %s112, %s113
    %p127 = scmp.eq.s32.totalorder %s16, 1
    %p128 = por %p126, %p127
    %p130 = scmp.ne.s32.totalorder %s113, %s129
    %p131 = scmp.eq.s32.totalorder %s16, 0
    %p132 = por %p130, %p131
    %p133 = scmp.le.s32.totalorder 1, %s10
    %p134 = scmp.lt.s32.totalorder %s10, 3
    %p135 = pnand %p133, %p134
    %p136 = pneg %p135
    // Predicated region
    $region9: #{quantum_hybrid_forward.2} parent=5 // pred_check
      _
    $region10: #{quantum_hybrid_forward.2} parent=5 // pred_check_branch
      %138 = sbr.rel (%p135) target = $region12
    $region11: #{quantum_hybrid_forward.2} parent=5 // pred_region
      %s139 = ssub.s32 %s10, 1
      // Predicated region
      $region13: #{quantum_hybrid_forward.2} parent=11 // pred_check
        %p140 = pneg %p57
      $region14: #{quantum_hybrid_forward.2} parent=11 // pred_check_branch
        %142 = sbr.rel (%p140) target = $region16
      $region15: #{quantum_hybrid_forward.2} parent=11 // pred_region
        _
      $region16: #{quantum_hybrid_forward.2} parent=11 // pred_fallthru
        _
      // Predicated region
      $region17: #{quantum_hybrid_forward.2} parent=11 // pred_check
        %p143 = pneg %p78
      $region18: #{quantum_hybrid_forward.2} parent=11 // pred_check_branch
        %145 = sbr.rel (%p143) target = $region20
      $region19: #{quantum_hybrid_forward.2} parent=11 // pred_region
        _
      $region20: #{quantum_hybrid_forward.2} parent=11 // pred_fallthru
        _
      // Predicated region
      $region21: #{quantum_hybrid_forward.2} parent=11 // pred_check
        %p146 = pneg %p99
      $region22: #{quantum_hybrid_forward.2} parent=11 // pred_check_branch
        %148 = sbr.rel (%p146) target = $region24
      $region23: #{quantum_hybrid_forward.2} parent=11 // pred_region
        _
      $region24: #{quantum_hybrid_forward.2} parent=11 // pred_fallthru
        _
    $region12: #{quantum_hybrid_forward.2} parent=5 // pred_fallthru
      _
    %p149 = scmp.lt.s32.totalorder %s10, 2
    // Predicated region
    $region25: #{quantum_hybrid_forward.2} parent=5 // pred_check
      %p150 = pneg %p149
    $region26: #{quantum_hybrid_forward.2} parent=5 // pred_check_branch
      %152 = sbr.rel (%p150) target = $region28
    $region27: #{quantum_hybrid_forward.2} parent=5 // pred_region
      // Predicated region
      $region29: #{quantum_hybrid_forward.2} parent=27 // pred_check
        %p153 = pneg %p30
      $region30: #{quantum_hybrid_forward.2} parent=27 // pred_check_branch
        %155 = sbr.rel (%p153) target = $region32
      $region31: #{quantum_hybrid_forward.2} parent=27 // pred_region
        %p156 = scmp.lt.s32.totalorder %s10, 1
        %s157 = scalar_select %p156, %s10, 1
        %s158 = smul.addr %s157, 4
        %s159 = smul.addr %s158, 2
        %s160 = scalar_lea.vmem %s0, %s159
      $region32: #{quantum_hybrid_forward.2} parent=27 // pred_fallthru
        _
    $region28: #{quantum_hybrid_forward.2} parent=5 // pred_fallthru
      _
    %p161 = scmp.le.s32.totalorder 1, %s10
    %p162 = scmp.lt.s32.totalorder %s10, 3
    %p163 = pnand %p161, %p162
    %p164 = pneg %p163
    // Predicated region
    $region33: #{quantum_hybrid_forward.2} parent=5 // pred_check
      _
    $region34: #{quantum_hybrid_forward.2} parent=5 // pred_check_branch
      %166 = sbr.rel (%p163) target = $region36
    $region35: #{quantum_hybrid_forward.2} parent=5 // pred_region
      %s167 = ssub.s32 %s10, 1
      %p168 = scmp.lt.s32.totalorder %s15, 1
      %s169 = scalar_select %p168, %s15, 1
      %s170 = smul.addr %s169, 4
      %s171 = smul.addr %s170, 2
      %s172 = scalar_lea.vmem %s0, %s171
      %p173 = pneg %p36
      %p174 = pneg %p33
      %p175 = pneg %p57
      %p176 = pneg %p54
      %p177 = pneg %p78
      %p178 = pneg %p75
      %p179 = pneg %p99
      %p180 = pneg %p96
      %p181 = pneg %p125
      %p182 = pneg %p122
      %p183 = scmp.lt.s32.totalorder %s15, 1
      %s184 = scalar_select %p183, %s15, 1
      %s185 = smul.addr %s184, 8
      %s186 = smul.addr %s185, 8
      %s187 = scalar_lea.vmem %s4, %s186
      %p188 = scmp.lt.s32.totalorder %s15, 1
      %s189 = scalar_select %p188, %s15, 1
      %s190 = smul.addr %s189, 4
      %s191 = smul.addr %s190, 2
      %s192 = scalar_lea.vmem %s0, %s191
      %p193 = scmp.lt.s32.totalorder %s15, 1
      %s194 = scalar_select %p193, %s15, 1
      %s195 = smul.addr %s194, 8
      %s196 = smul.addr %s195, 8
      %s197 = scalar_lea.vmem %s4, %s196
      %v199 = vld [vmem:[%s192] sm:$0x3f]
      %v200 = vld [vmem:[%s2] sm:$0xf]
      %v201 = vld [vmem:[%s2 + $0x4] sm:$0xf]
      %v202 = vld [vmem:[%s2 + $0x8] sm:$0xf]
      %v203 = vld [vmem:[%s2 + $0xc] sm:$0xf]
      %v204 = vld [vmem:[%s2 + $0x10] sm:$0xf]
      %v205 = vld [vmem:[%s2 + $0x14] sm:$0xf]
      %v206 = vld [vmem:[%s2 + $0x18] sm:$0xf]
      %v207 = vld [vmem:[%s2 + $0x1c] sm:$0xf]
      %v208 = vld [vmem:[%s192] sm:$0xff]
      %v217 = vunpack.c.l.b16 %v200
      %v218 = vunpack.c.l.b16 %v201
      %v219 = vunpack.c.l.b16 %v202
      %v220 = vunpack.c.l.b16 %v203
      %v221 = vunpack.c.l.b16 %v204
      %v222 = vunpack.c.l.b16 %v205
      %v223 = vunpack.c.l.b16 %v206
      %v224 = vunpack.c.l.b16 %v207
      %v225 = vpack.c.b16 %v218, %v217
      %v226 = vpack.c.b16 %v220, %v219
      %v227 = vpack.c.b16 %v222, %v221
      %v228 = vpack.c.b16 %v224, %v223
      %229 = vrot.lane.b32.xlu0 %v225, 125
      %v230 = vpop.permute.xlu0 %229
      %231 = vrot.lane.b32.xlu0 %v226, 125
      %v232 = vpop.permute.xlu0 %231
      %233 = vrot.lane.b32.xlu0 %v227, 125
      %v234 = vpop.permute.xlu0 %233
      %235 = vrot.lane.b32.xlu0 %v228, 125
      %v236 = vpop.permute.xlu0 %235
      %v238 = vcombine.high %v208, %v208
      %v240 = vunpack.c.l.s4 1983009808
      %v241 = vunpack.c.0.s8 %v240
      %v242 = vlaneseq
      %v243 = vshrl.u32 %v242, 7
      %v244 = vsub.s32 %v241, %v243
      %v245 = vrot.slane %v208, %v244
      %v247 = vunpack.c.l.s4 1983009808
      %v248 = vunpack.c.0.s8 %v247
      %v249 = vlaneseq
      %v250 = vshrl.u32 %v249, 7
      %v251 = vsub.s32 %v248, %v250
      %v252 = vrot.slane %v238, %v251
      %v253 = vcombine.high %v245, %v245
      %v254 = vcombine.high %v252, %v252
      %255 = vrot.lane.b32.xlu0 %v245, 127
      %v256 = vpop.permute.xlu0 %255
      %257 = vrot.lane.b32.xlu0 %v253, 127
      %v258 = vpop.permute.xlu0 %257
      %259 = vrot.lane.b32.xlu0 %v252, 127
      %v260 = vpop.permute.xlu0 %259
      %261 = vrot.lane.b32.xlu0 %v254, 127
      %v262 = vpop.permute.xlu0 %261
      %vm263 = vcmask 1039360
      %v264 = vsel %vm263, %v256, %v258
      %v265 = vsel %vm263, %v258, %v260
      %v266 = vsel %vm263, %v260, %v262
      %vm267 = vcmask 23552
      %v269 = vsel %vm267, %v230, 0
      %v272 = vsel %vm267, %v232, 0
      %v275 = vsel %vm267, %v234, 0
      %v278 = vsel %vm267, %v236, 0
      %vm280 = vcmask 1040384
      %vm281 = vcmask 1041408
      %v282 = vsel %vm280, 4294967295, 65535
      %v283 = vsel %vm281, %v282, 0
      %v285 = vand.u32 %v264, %v283
      %v288 = vand.u32 %v265, %v283
      %v291 = vand.u32 %v266, %v283
      %293 = vmatprep.subr.bf16.mxu0 %v288
      %294 = vmatpush1.bf16.msra.mxu0 %v285
      %295 = vmatprep.subr.bf16.mxu0 0
      %296 = vmatpush1.bf16.msra.mxu0 0
      %297 = vmatprep.subr.bf16.mxu0 0
      %298 = vmatpush1.bf16.msra.mxu0 0
      %299 = vmatprep.subr.bf16.mxu0 0
      %300 = vmatpush1.bf16.msra.mxu0 0
      %301 = vmatprep.subr.bf16.mxu0 0
      %302 = vmatpush1.bf16.msra.mxu0 0
      %303 = vmatprep.subr.bf16.mxu0 0
      %304 = vmatpush1.bf16.msra.mxu0 0
      %305 = vmatprep.subr.bf16.mxu0 0
      %306 = vmatpush1.bf16.msra.mxu0 0
      %307 = vmatprep.subr.bf16.mxu0 0
      %308 = vmatpush1.bf16.msra.mxu0 0
      %309 = vmatprep.subr.bf16.mxu0 0
      %310 = vmatpush1.bf16.msra.mxu0 0
      %311 = vmatprep.subr.bf16.mxu0 0
      %312 = vmatpush1.bf16.msra.mxu0 0
      %313 = vmatprep.subr.bf16.mxu0 0
      %314 = vmatpush1.bf16.msra.mxu0 0
      %315 = vmatprep.subr.bf16.mxu0 0
      %316 = vmatpush1.bf16.msra.mxu0 0
      %317 = vmatprep.subr.bf16.mxu0 0
      %318 = vmatpush1.bf16.msra.mxu0 0
      %319 = vmatprep.subr.bf16.mxu0 0
      %320 = vmatpush1.bf16.msra.mxu0 0
      %321 = vmatprep.subr.bf16.mxu0 0
      %322 = vmatpush1.bf16.msra.mxu0 0
      %323 = vmatprep.subr.bf16.mxu0 0
      %324 = vmatpush1.bf16.msra.mxu0 0
      %325 = vmatprep.mubr.bf16.mxu0 0
      %326 = vmatmul.mubr.bf16.gmra.mrb[0].mxu0 %v269
      %v327 = vpop.f32.mrb[0].mxu0
      %v328 = vadd.f32 0.0, %v327
      %v329 = vpop.f32.mrb[0].mxu0
      %v330 = vadd.f32 0.0, %v329
      %v331 = vpop.f32.mrb[0].mxu0
      %v332 = vadd.f32 0.0, %v331
      %v333 = vpop.f32.mrb[0].mxu0
      %v334 = vadd.f32 0.0, %v333
      %335 = vmatprep.mubr.bf16.mxu0 0
      %336 = vmatmul.mubr.bf16.gmra.mrb[0].mxu0 %v272
      %v337 = vpop.f32.mrb[0].mxu0
      %v338 = vadd.f32 0.0, %v337
      %v339 = vpop.f32.mrb[0].mxu0
      %v340 = vadd.f32 0.0, %v339
      %v341 = vpop.f32.mrb[0].mxu0
      %v342 = vadd.f32 0.0, %v341
      %v343 = vpop.f32.mrb[0].mxu0
      %v344 = vadd.f32 0.0, %v343
      %345 = vmatprep.mubr.bf16.mxu0 0
      %346 = vmatmul.mubr.bf16.gmra.mrb[0].mxu0 %v275
      %v347 = vpop.f32.mrb[0].mxu0
      %v348 = vadd.f32 0.0, %v347
      %v349 = vpop.f32.mrb[0].mxu0
      %v350 = vadd.f32 0.0, %v349
      %v351 = vpop.f32.mrb[0].mxu0
      %v352 = vadd.f32 0.0, %v351
      %v353 = vpop.f32.mrb[0].mxu0
      %v354 = vadd.f32 0.0, %v353
      %355 = vmatprep.mubr.bf16.mxu0 0
      %356 = vmatmul.mubr.bf16.gmra.mrb[0].mxu0 %v278
      %v357 = vpop.f32.mrb[0].mxu0
      %v358 = vadd.f32 0.0, %v357
      %v359 = vpop.f32.mrb[0].mxu0
      %v360 = vadd.f32 0.0, %v359
      %v361 = vpop.f32.mrb[0].mxu0
      %v362 = vadd.f32 0.0, %v361
      %v363 = vpop.f32.mrb[0].mxu0
      %v364 = vadd.f32 0.0, %v363
      %365 = vdwg.mxu0
      %366 = vmatprep.subr.bf16.mxu0 0
      %367 = vmatpush1.bf16.msra.mxu0 %v291
      %368 = vmatprep.subr.bf16.mxu0 0
      %369 = vmatpush1.bf16.msra.mxu0 0
      %370 = vmatprep.subr.bf16.mxu0 0
      %371 = vmatpush1.bf16.msra.mxu0 0
      %372 = vmatprep.subr.bf16.mxu0 0
      %373 = vmatpush1.bf16.msra.mxu0 0
      %374 = vmatprep.subr.bf16.mxu0 0
      %375 = vmatpush1.bf16.msra.mxu0 0
      %376 = vmatprep.subr.bf16.mxu0 0
      %377 = vmatpush1.bf16.msra.mxu0 0
      %378 = vmatprep.subr.bf16.mxu0 0
      %379 = vmatpush1.bf16.msra.mxu0 0
      %380 = vmatprep.subr.bf16.mxu0 0
      %381 = vmatpush1.bf16.msra.mxu0 0
      %382 = vmatprep.subr.bf16.mxu0 0
      %383 = vmatpush1.bf16.msra.mxu0 0
      %384 = vmatprep.subr.bf16.mxu0 0
      %385 = vmatpush1.bf16.msra.mxu0 0
      %386 = vmatprep.subr.bf16.mxu0 0
      %387 = vmatpush1.bf16.msra.mxu0 0
      %388 = vmatprep.subr.bf16.mxu0 0
      %389 = vmatpush1.bf16.msra.mxu0 0
      %390 = vmatprep.subr.bf16.mxu0 0
      %391 = vmatpush1.bf16.msra.mxu0 0
      %392 = vmatprep.subr.bf16.mxu0 0
      %393 = vmatpush1.bf16.msra.mxu0 0
      %394 = vmatprep.subr.bf16.mxu0 0
      %395 = vmatpush1.bf16.msra.mxu0 0
      %396 = vmatprep.subr.bf16.mxu0 0
      %397 = vmatpush1.bf16.msra.mxu0 0
      %398 = vmatprep.mubr.bf16.mxu0 0
      %399 = vmatmul.mubr.bf16.gmra.mrb[0].mxu0 %v269
      %v400 = vpop.f32.mrb[0].mxu0
      %v401 = vadd.f32 0.0, %v400
      %v402 = vpop.f32.mrb[0].mxu0
      %v403 = vpop.f32.mrb[0].mxu0
      %v404 = vadd.f32 0.0, %v403
      %v405 = vpop.f32.mrb[0].mxu0
      %406 = vmatprep.mubr.bf16.mxu0 0
      %407 = vmatmul.mubr.bf16.gmra.mrb[0].mxu0 %v272
      %v408 = vpop.f32.mrb[0].mxu0
      %v409 = vadd.f32 0.0, %v408
      %v410 = vpop.f32.mrb[0].mxu0
      %v411 = vpop.f32.mrb[0].mxu0
      %v412 = vadd.f32 0.0, %v411
      %v413 = vpop.f32.mrb[0].mxu0
      %414 = vmatprep.mubr.bf16.mxu0 0
      %415 = vmatmul.mubr.bf16.gmra.mrb[0].mxu0 %v275
      %v416 = vpop.f32.mrb[0].mxu0
      %v417 = vadd.f32 0.0, %v416
      %v418 = vpop.f32.mrb[0].mxu0
      %v419 = vpop.f32.mrb[0].mxu0
      %v420 = vadd.f32 0.0, %v419
      %v421 = vpop.f32.mrb[0].mxu0
      %422 = vmatprep.mubr.bf16.mxu0 0
      %423 = vmatmul.mubr.bf16.gmra.mrb[0].mxu0 %v278
      %v424 = vpop.f32.mrb[0].mxu0
      %v425 = vadd.f32 0.0, %v424
      %v426 = vpop.f32.mrb[0].mxu0
      %v427 = vpop.f32.mrb[0].mxu0
      %v428 = vadd.f32 0.0, %v427
      %v429 = vpop.f32.mrb[0].mxu0
      %430 = vdwg.mxu0
      %v432 = vcombine.high %v199, %v199
      %v434 = vunpack.c.l.s4 1983009808
      %v435 = vunpack.c.0.s8 %v434
      %v436 = vlaneseq
      %v437 = vshrl.u32 %v436, 7
      %v438 = vsub.s32 %v435, %v437
      %v439 = vrot.slane %v199, %v438
      %v441 = vunpack.c.l.s4 1983009808
      %v442 = vunpack.c.0.s8 %v441
      %v443 = vlaneseq
      %v444 = vshrl.u32 %v443, 7
      %v445 = vsub.s32 %v442, %v444
      %v446 = vrot.slane %v432, %v445
      %v447 = vcombine.high %v439, %v439
      %v449 = vsel %vm267, %v225, 0
      %v452 = vsel %vm267, %v226, 0
      %v455 = vsel %vm267, %v227, 0
      %v458 = vsel %vm267, %v228, 0
      %v461 = vand.u32 %v439, %v283
      %v464 = vand.u32 %v447, %v283
      %v467 = vand.u32 %v446, %v283
      %469 = vmatprep.subr.bf16.mxu0 %v464
      %470 = vmatpush1.bf16.msra.mxu0 %v461
      %471 = vmatprep.subr.bf16.mxu0 0
      %472 = vmatpush1.bf16.msra.mxu0 0
      %473 = vmatprep.subr.bf16.mxu0 0
      %474 = vmatpush1.bf16.msra.mxu0 0
      %475 = vmatprep.subr.bf16.mxu0 0
      %476 = vmatpush1.bf16.msra.mxu0 0
      %477 = vmatprep.subr.bf16.mxu0 0
      %478 = vmatpush1.bf16.msra.mxu0 0
      %479 = vmatprep.subr.bf16.mxu0 0
      %480 = vmatpush1.bf16.msra.mxu0 0
      %481 = vmatprep.subr.bf16.mxu0 0
      %482 = vmatpush1.bf16.msra.mxu0 0
      %483 = vmatprep.subr.bf16.mxu0 0
      %484 = vmatpush1.bf16.msra.mxu0 0
      %485 = vmatprep.subr.bf16.mxu0 0
      %486 = vmatpush1.bf16.msra.mxu0 0
      %487 = vmatprep.subr.bf16.mxu0 0
      %488 = vmatpush1.bf16.msra.mxu0 0
      %489 = vmatprep.subr.bf16.mxu0 0
      %490 = vmatpush1.bf16.msra.mxu0 0
      %491 = vmatprep.subr.bf16.mxu0 0
      %492 = vmatpush1.bf16.msra.mxu0 0
      %493 = vmatprep.subr.bf16.mxu0 0
      %494 = vmatpush1.bf16.msra.mxu0 0
      %495 = vmatprep.subr.bf16.mxu0 0
      %496 = vmatpush1.bf16.msra.mxu0 0
      %497 = vmatprep.subr.bf16.mxu0 0
      %498 = vmatpush1.bf16.msra.mxu0 0
      %499 = vmatprep.subr.bf16.mxu0 0
      %500 = vmatpush1.bf16.msra.mxu0 0
      %501 = vmatprep.mubr.bf16.mxu0 0
      %502 = vmatmul.mubr.bf16.gmra.mrb[0].mxu0 %v449
      %v503 = vpop.f32.mrb[0].mxu0
      %v504 = vadd.f32 %v328, %v503
      %v505 = vpop.f32.mrb[0].mxu0
      %v506 = vadd.f32 %v330, %v505
      %v507 = vpop.f32.mrb[0].mxu0
      %v508 = vadd.f32 %v332, %v507
      %v509 = vpop.f32.mrb[0].mxu0
      %v510 = vadd.f32 %v334, %v509
      %511 = vmatprep.mubr.bf16.mxu0 0
      %512 = vmatmul.mubr.bf16.gmra.mrb[0].mxu0 %v452
      %v513 = vpop.f32.mrb[0].mxu0
      %v514 = vadd.f32 %v338, %v513
      %v515 = vpop.f32.mrb[0].mxu0
      %v516 = vadd.f32 %v340, %v515
      %v517 = vpop.f32.mrb[0].mxu0
      %v518 = vadd.f32 %v342, %v517
      %v519 = vpop.f32.mrb[0].mxu0
      %v520 = vadd.f32 %v344, %v519
      %521 = vmatprep.mubr.bf16.mxu0 0
      %522 = vmatmul.mubr.bf16.gmra.mrb[0].mxu0 %v455
      %v523 = vpop.f32.mrb[0].mxu0
      %v524 = vadd.f32 %v348, %v523
      %v525 = vpop.f32.mrb[0].mxu0
      %v526 = vadd.f32 %v350, %v525
      %v527 = vpop.f32.mrb[0].mxu0
      %v528 = vadd.f32 %v352, %v527
      %v529 = vpop.f32.mrb[0].mxu0
      %v530 = vadd.f32 %v354, %v529
      %531 = vmatprep.mubr.bf16.mxu0 0
      %532 = vmatmul.mubr.bf16.gmra.mrb[0].mxu0 %v458
      %v533 = vpop.f32.mrb[0].mxu0
      %v534 = vadd.f32 %v358, %v533
      %v535 = vpop.f32.mrb[0].mxu0
      %v536 = vadd.f32 %v360, %v535
      %v537 = vpop.f32.mrb[0].mxu0
      %v538 = vadd.f32 %v362, %v537
      %v539 = vpop.f32.mrb[0].mxu0
      %v540 = vadd.f32 %v364, %v539
      %541 = vdwg.mxu0
      %542 = vmatprep.subr.bf16.mxu0 0
      %543 = vmatpush1.bf16.msra.mxu0 %v467
      %544 = vmatprep.subr.bf16.mxu0 0
      %545 = vmatpush1.bf16.msra.mxu0 0
      %546 = vmatprep.subr.bf16.mxu0 0
      %547 = vmatpush1.bf16.msra.mxu0 0
      %548 = vmatprep.subr.bf16.mxu0 0
      %549 = vmatpush1.bf16.msra.mxu0 0
      %550 = vmatprep.subr.bf16.mxu0 0
      %551 = vmatpush1.bf16.msra.mxu0 0
      %552 = vmatprep.subr.bf16.mxu0 0
      %553 = vmatpush1.bf16.msra.mxu0 0
      %554 = vmatprep.subr.bf16.mxu0 0
      %555 = vmatpush1.bf16.msra.mxu0 0
      %556 = vmatprep.subr.bf16.mxu0 0
      %557 = vmatpush1.bf16.msra.mxu0 0
      %558 = vmatprep.subr.bf16.mxu0 0
      %559 = vmatpush1.bf16.msra.mxu0 0
      %560 = vmatprep.subr.bf16.mxu0 0
      %561 = vmatpush1.bf16.msra.mxu0 0
      %562 = vmatprep.subr.bf16.mxu0 0
      %563 = vmatpush1.bf16.msra.mxu0 0
      %564 = vmatprep.subr.bf16.mxu0 0
      %565 = vmatpush1.bf16.msra.mxu0 0
      %566 = vmatprep.subr.bf16.mxu0 0
      %567 = vmatpush1.bf16.msra.mxu0 0
      %568 = vmatprep.subr.bf16.mxu0 0
      %569 = vmatpush1.bf16.msra.mxu0 0
      %570 = vmatprep.subr.bf16.mxu0 0
      %571 = vmatpush1.bf16.msra.mxu0 0
      %572 = vmatprep.subr.bf16.mxu0 0
      %573 = vmatpush1.bf16.msra.mxu0 0
      %574 = vmatprep.mubr.bf16.mxu0 0
      %575 = vmatmul.mubr.bf16.gmra.mrb[0].mxu0 %v449
      %v576 = vpop.f32.mrb[0].mxu0
      %v577 = vadd.f32 %v401, %v576
      %v578 = vpop.f32.mrb[0].mxu0
      %v579 = vpop.f32.mrb[0].mxu0
      %v580 = vadd.f32 %v404, %v579
      %v581 = vpop.f32.mrb[0].mxu0
      %582 = vmatprep.mubr.bf16.mxu0 0
      %583 = vmatmul.mubr.bf16.gmra.mrb[0].mxu0 %v452
      %v584 = vpop.f32.mrb[0].mxu0
      %v585 = vadd.f32 %v409, %v584
      %v586 = vpop.f32.mrb[0].mxu0
      %v587 = vpop.f32.mrb[0].mxu0
      %v588 = vadd.f32 %v412, %v587
      %v589 = vpop.f32.mrb[0].mxu0
      %590 = vmatprep.mubr.bf16.mxu0 0
      %591 = vmatmul.mubr.bf16.gmra.mrb[0].mxu0 %v455
      %v592 = vpop.f32.mrb[0].mxu0
      %v593 = vadd.f32 %v417, %v592
      %v594 = vpop.f32.mrb[0].mxu0
      %v595 = vpop.f32.mrb[0].mxu0
      %v596 = vadd.f32 %v420, %v595
      %v597 = vpop.f32.mrb[0].mxu0
      %598 = vmatprep.mubr.bf16.mxu0 0
      %599 = vmatmul.mubr.bf16.gmra.mrb[0].mxu0 %v458
      %v600 = vpop.f32.mrb[0].mxu0
      %v601 = vadd.f32 %v425, %v600
      %v602 = vpop.f32.mrb[0].mxu0
      %v603 = vpop.f32.mrb[0].mxu0
      %v604 = vadd.f32 %v428, %v603
      %v605 = vpop.f32.mrb[0].mxu0
      %606 = vdwg.mxu0
      %v607 = vld [vmem:[%s192] sm:$0xff]
      %v608 = vld [vmem:[%s2] sm:$0xf]
      %v609 = vld [vmem:[%s2 + $0x4] sm:$0xf]
      %v610 = vld [vmem:[%s2 + $0x8] sm:$0xf]
      %v611 = vld [vmem:[%s2 + $0xc] sm:$0xf]
      %v612 = vld [vmem:[%s2 + $0x10] sm:$0xf]
      %v613 = vld [vmem:[%s2 + $0x14] sm:$0xf]
      %v614 = vld [vmem:[%s2 + $0x18] sm:$0xf]
      %v615 = vld [vmem:[%s2 + $0x1c] sm:$0xf]
      %v624 = vunpack.c.l.b16 %v608
      %v625 = vunpack.c.l.b16 %v609
      %v626 = vunpack.c.l.b16 %v610
      %v627 = vunpack.c.l.b16 %v611
      %v628 = vunpack.c.l.b16 %v612
      %v629 = vunpack.c.l.b16 %v613
      %v630 = vunpack.c.l.b16 %v614
      %v631 = vunpack.c.l.b16 %v615
      %v632 = vpack.c.b16 %v625, %v624
      %v633 = vpack.c.b16 %v627, %v626
      %v634 = vpack.c.b16 %v629, %v628
      %v635 = vpack.c.b16 %v631, %v630
      %636 = vrot.lane.b32.xlu0 %v632, 122
      %v637 = vpop.permute.xlu0 %636
      %638 = vrot.lane.b32.xlu0 %v633, 122
      %v639 = vpop.permute.xlu0 %638
      %640 = vrot.lane.b32.xlu0 %v634, 122
      %v641 = vpop.permute.xlu0 %640
      %642 = vrot.lane.b32.xlu0 %v635, 122
      %v643 = vpop.permute.xlu0 %642
      %v645 = vcombine.high %v607, %v607
      %v647 = vunpack.c.l.s4 1983009808
      %v648 = vunpack.c.0.s8 %v647
      %v649 = vlaneseq
      %v650 = vshrl.u32 %v649, 7
      %v651 = vsub.s32 %v648, %v650
      %v652 = vrot.slane %v607, %v651
      %v654 = vunpack.c.l.s4 1983009808
      %v655 = vunpack.c.0.s8 %v654
      %v656 = vlaneseq
      %v657 = vshrl.u32 %v656, 7
      %v658 = vsub.s32 %v655, %v657
      %v659 = vrot.slane %v645, %v658
      %v660 = vcombine.high %v652, %v652
      %v661 = vcombine.high %v659, %v659
      %662 = vrot.lane.b32.xlu0 %v652, 126
      %v663 = vpop.permute.xlu0 %662
      %664 = vrot.lane.b32.xlu0 %v660, 126
      %v665 = vpop.permute.xlu0 %664
      %666 = vrot.lane.b32.xlu0 %v659, 126
      %v667 = vpop.permute.xlu0 %666
      %668 = vrot.lane.b32.xlu0 %v661, 126
      %v669 = vpop.permute.xlu0 %668
      %vm670 = vcmask 1031168
      %v671 = vsel %vm670, %v663, %v665
      %v672 = vsel %vm670, %v665, %v667
      %v673 = vsel %vm670, %v667, %v669
      %v675 = vsel %vm267, %v637, 0
      %v678 = vsel %vm267, %v639, 0
      %v681 = vsel %vm267, %v641, 0
      %v684 = vsel %vm267, %v643, 0
      %v687 = vand.u32 %v671, %v283
      %v690 = vand.u32 %v672, %v283
      %v693 = vand.u32 %v673, %v283
      %695 = vmatprep.subr.bf16.mxu0 %v690
      %696 = vmatpush1.bf16.msra.mxu0 %v687
      %697 = vmatprep.subr.bf16.mxu0 0
      %698 = vmatpush1.bf16.msra.mxu0 0
      %699 = vmatprep.subr.bf16.mxu0 0
      %700 = vmatpush1.bf16.msra.mxu0 0
      %701 = vmatprep.subr.bf16.mxu0 0
      %702 = vmatpush1.bf16.msra.mxu0 0
      %703 = vmatprep.subr.bf16.mxu0 0
      %704 = vmatpush1.bf16.msra.mxu0 0
      %705 = vmatprep.subr.bf16.mxu0 0
      %706 = vmatpush1.bf16.msra.mxu0 0
      %707 = vmatprep.subr.bf16.mxu0 0
      %708 = vmatpush1.bf16.msra.mxu0 0
      %709 = vmatprep.subr.bf16.mxu0 0
      %710 = vmatpush1.bf16.msra.mxu0 0
      %711 = vmatprep.subr.bf16.mxu0 0
      %712 = vmatpush1.bf16.msra.mxu0 0
      %713 = vmatprep.subr.bf16.mxu0 0
      %714 = vmatpush1.bf16.msra.mxu0 0
      %715 = vmatprep.subr.bf16.mxu0 0
      %716 = vmatpush1.bf16.msra.mxu0 0
      %717 = vmatprep.subr.bf16.mxu0 0
      %718 = vmatpush1.bf16.msra.mxu0 0
      %719 = vmatprep.subr.bf16.mxu0 0
      %720 = vmatpush1.bf16.msra.mxu0 0
      %721 = vmatprep.subr.bf16.mxu0 0
      %722 = vmatpush1.bf16.msra.mxu0 0
      %723 = vmatprep.subr.bf16.mxu0 0
      %724 = vmatpush1.bf16.msra.mxu0 0
      %725 = vmatprep.subr.bf16.mxu0 0
      %726 = vmatpush1.bf16.msra.mxu0 0
      %727 = vmatprep.mubr.bf16.mxu0 0
      %728 = vmatmul.mubr.bf16.gmra.mrb[0].mxu0 %v675
      %v729 = vpop.f32.mrb[0].mxu0
      %v730 = vadd.f32 0.0, %v729
      %v731 = vpop.f32.mrb[0].mxu0
      %v732 = vadd.f32 0.0, %v731
      %v733 = vpop.f32.mrb[0].mxu0
      %v734 = vadd.f32 0.0, %v733
      %v735 = vpop.f32.mrb[0].mxu0
      %v736 = vadd.f32 0.0, %v735
      %737 = vmatprep.mubr.bf16.mxu0 0
      %738 = vmatmul.mubr.bf16.gmra.mrb[0].mxu0 %v678
      %v739 = vpop.f32.mrb[0].mxu0
      %v740 = vadd.f32 0.0, %v739
      %v741 = vpop.f32.mrb[0].mxu0
      %v742 = vadd.f32 0.0, %v741
      %v743 = vpop.f32.mrb[0].mxu0
      %v744 = vadd.f32 0.0, %v743
      %v745 = vpop.f32.mrb[0].mxu0
      %v746 = vadd.f32 0.0, %v745
      %747 = vmatprep.mubr.bf16.mxu0 0
      %748 = vmatmul.mubr.bf16.gmra.mrb[0].mxu0 %v681
      %v749 = vpop.f32.mrb[0].mxu0
      %v750 = vadd.f32 0.0, %v749
      %v751 = vpop.f32.mrb[0].mxu0
      %v752 = vadd.f32 0.0, %v751
      %v753 = vpop.f32.mrb[0].mxu0
      %v754 = vadd.f32 0.0, %v753
      %v755 = vpop.f32.mrb[0].mxu0
      %v756 = vadd.f32 0.0, %v755
      %757 = vmatprep.mubr.bf16.mxu0 0
      %758 = vmatmul.mubr.bf16.gmra.mrb[0].mxu0 %v684
      %v759 = vpop.f32.mrb[0].mxu0
      %v760 = vadd.f32 0.0, %v759
      %v761 = vpop.f32.mrb[0].mxu0
      %v762 = vadd.f32 0.0, %v761
      %v763 = vpop.f32.mrb[0].mxu0
      %v764 = vadd.f32 0.0, %v763
      %v765 = vpop.f32.mrb[0].mxu0
      %v766 = vadd.f32 0.0, %v765
      %767 = vdwg.mxu0
      %768 = vmatprep.subr.bf16.mxu0 0
      %769 = vmatpush1.bf16.msra.mxu0 %v693
      %770 = vmatprep.subr.bf16.mxu0 0
      %771 = vmatpush1.bf16.msra.mxu0 0
      %772 = vmatprep.subr.bf16.mxu0 0
      %773 = vmatpush1.bf16.msra.mxu0 0
      %774 = vmatprep.subr.bf16.mxu0 0
      %775 = vmatpush1.bf16.msra.mxu0 0
      %776 = vmatprep.subr.bf16.mxu0 0
      %777 = vmatpush1.bf16.msra.mxu0 0
      %778 = vmatprep.subr.bf16.mxu0 0
      %779 = vmatpush1.bf16.msra.mxu0 0
      %780 = vmatprep.subr.bf16.mxu0 0
      %781 = vmatpush1.bf16.msra.mxu0 0
      %782 = vmatprep.subr.bf16.mxu0 0
      %783 = vmatpush1.bf16.msra.mxu0 0
      %784 = vmatprep.subr.bf16.mxu0 0
      %785 = vmatpush1.bf16.msra.mxu0 0
      %786 = vmatprep.subr.bf16.mxu0 0
      %787 = vmatpush1.bf16.msra.mxu0 0
      %788 = vmatprep.subr.bf16.mxu0 0
      %789 = vmatpush1.bf16.msra.mxu0 0
      %790 = vmatprep.subr.bf16.mxu0 0
      %791 = vmatpush1.bf16.msra.mxu0 0
      %792 = vmatprep.subr.bf16.mxu0 0
      %793 = vmatpush1.bf16.msra.mxu0 0
      %794 = vmatprep.subr.bf16.mxu0 0
      %795 = vmatpush1.bf16.msra.mxu0 0
      %796 = vmatprep.subr.bf16.mxu0 0
      %797 = vmatpush1.bf16.msra.mxu0 0
      %798 = vmatprep.subr.bf16.mxu0 0
      %799 = vmatpush1.bf16.msra.mxu0 0
      %800 = vmatprep.mubr.bf16.mxu0 0
      %801 = vmatmul.mubr.bf16.gmra.mrb[0].mxu0 %v675
      %v802 = vpop.f32.mrb[0].mxu0
      %v803 = vadd.f32 0.0, %v802
      %v804 = vpop.f32.mrb[0].mxu0
      %v805 = vpop.f32.mrb[0].mxu0
      %v806 = vadd.f32 0.0, %v805
      %v807 = vpop.f32.mrb[0].mxu0
      %808 = vmatprep.mubr.bf16.mxu0 0
      %809 = vmatmul.mubr.bf16.gmra.mrb[0].mxu0 %v678
      %v810 = vpop.f32.mrb[0].mxu0
      %v811 = vadd.f32 0.0, %v810
      %v812 = vpop.f32.mrb[0].mxu0
      %v813 = vpop.f32.mrb[0].mxu0
      %v814 = vadd.f32 0.0, %v813
      %v815 = vpop.f32.mrb[0].mxu0
      %816 = vmatprep.mubr.bf16.mxu0 0
      %817 = vmatmul.mubr.bf16.gmra.mrb[0].mxu0 %v681
      %v818 = vpop.f32.mrb[0].mxu0
      %v819 = vadd.f32 0.0, %v818
      %v820 = vpop.f32.mrb[0].mxu0
      %v821 = vpop.f32.mrb[0].mxu0
      %v822 = vadd.f32 0.0, %v821
      %v823 = vpop.f32.mrb[0].mxu0
      %824 = vmatprep.mubr.bf16.mxu0 0
      %825 = vmatmul.mubr.bf16.gmra.mrb[0].mxu0 %v684
      %v826 = vpop.f32.mrb[0].mxu0
      %v827 = vadd.f32 0.0, %v826
      %v828 = vpop.f32.mrb[0].mxu0
      %v829 = vpop.f32.mrb[0].mxu0
      %v830 = vadd.f32 0.0, %v829
      %v831 = vpop.f32.mrb[0].mxu0
      %832 = vdwg.mxu0
      %v833 = vadd.f32 %v504, %v730
      %v834 = vadd.f32 %v506, %v732
      %v835 = vadd.f32 %v577, %v803
      %v836 = vadd.f32 %v508, %v734
      %v837 = vadd.f32 %v510, %v736
      %v838 = vadd.f32 %v580, %v806
      %v839 = vadd.f32 %v514, %v740
      %v840 = vadd.f32 %v516, %v742
      %v841 = vadd.f32 %v585, %v811
      %v842 = vadd.f32 %v518, %v744
      %v843 = vadd.f32 %v520, %v746
      %v844 = vadd.f32 %v588, %v814
      %v845 = vadd.f32 %v524, %v750
      %v846 = vadd.f32 %v526, %v752
      %v847 = vadd.f32 %v593, %v819
      %v848 = vadd.f32 %v528, %v754
      %v849 = vadd.f32 %v530, %v756
      %v850 = vadd.f32 %v596, %v822
      %v851 = vadd.f32 %v534, %v760
      %v852 = vadd.f32 %v536, %v762
      %v853 = vadd.f32 %v601, %v827
      %v854 = vadd.f32 %v538, %v764
      %v855 = vadd.f32 %v540, %v766
      %v856 = vadd.f32 %v604, %v830
      %v857 = vld [vmem:[%s192] sm:$0xff]
      %v858 = vld [vmem:[%s2] sm:$0xf]
      %v859 = vld [vmem:[%s2 + $0x4] sm:$0xf]
      %v860 = vld [vmem:[%s2 + $0x8] sm:$0xf]
      %v861 = vld [vmem:[%s2 + $0xc] sm:$0xf]
      %v862 = vld [vmem:[%s2 + $0x10] sm:$0xf]
      %v863 = vld [vmem:[%s2 + $0x14] sm:$0xf]
      %v864 = vld [vmem:[%s2 + $0x18] sm:$0xf]
      %v865 = vld [vmem:[%s2 + $0x1c] sm:$0xf]
      %v874 = vunpack.c.l.b16 %v858
      %v875 = vunpack.c.l.b16 %v859
      %v876 = vunpack.c.l.b16 %v860
      %v877 = vunpack.c.l.b16 %v861
      %v878 = vunpack.c.l.b16 %v862
      %v879 = vunpack.c.l.b16 %v863
      %v880 = vunpack.c.l.b16 %v864
      %v881 = vunpack.c.l.b16 %v865
      %v882 = vpack.c.b16 %v875, %v874
      %v883 = vpack.c.b16 %v877, %v876
      %v884 = vpack.c.b16 %v879, %v878
      %v885 = vpack.c.b16 %v881, %v880
      %886 = vrot.lane.b32.xlu0 %v882, 119
      %v887 = vpop.permute.xlu0 %886
      %888 = vrot.lane.b32.xlu0 %v883, 119
      %v889 = vpop.permute.xlu0 %888
      %890 = vrot.lane.b32.xlu0 %v884, 119
      %v891 = vpop.permute.xlu0 %890
      %892 = vrot.lane.b32.xlu0 %v885, 119
      %v893 = vpop.permute.xlu0 %892
      %v895 = vcombine.high %v857, %v857
      %v897 = vunpack.c.l.s4 1983009808
      %v898 = vunpack.c.0.s8 %v897
      %v899 = vlaneseq
      %v900 = vshrl.u32 %v899, 7
      %v901 = vsub.s32 %v898, %v900
      %v902 = vrot.slane %v857, %v901
      %v904 = vunpack.c.l.s4 1983009808
      %v905 = vunpack.c.0.s8 %v904
      %v906 = vlaneseq
      %v907 = vshrl.u32 %v906, 7
      %v908 = vsub.s32 %v905, %v907
      %v909 = vrot.slane %v895, %v908
      %v910 = vcombine.high %v902, %v902
      %v911 = vcombine.high %v909, %v909
      %912 = vrot.lane.b32.xlu0 %v902, 110
      %v913 = vpop.permute.xlu0 %912
      %914 = vrot.lane.b32.xlu0 %v910, 110
      %v915 = vpop.permute.xlu0 %914
      %916 = vrot.lane.b32.xlu0 %v909, 110
      %v917 = vpop.permute.xlu0 %916
      %918 = vrot.lane.b32.xlu0 %v911, 110
      %v919 = vpop.permute.xlu0 %918
      %vm920 = vcmask 900096
      %v921 = vsel %vm920, %v913, %v915
      %v922 = vsel %vm920, %v915, %v917
      %v923 = vsel %vm920, %v917, %v919
      %v925 = vsel %vm267, %v887, 0
      %v928 = vsel %vm267, %v889, 0
      %v931 = vsel %vm267, %v891, 0
      %v934 = vsel %vm267, %v893, 0
      %v937 = vand.u32 %v921, %v283
      %v940 = vand.u32 %v922, %v283
      %v943 = vand.u32 %v923, %v283
      %945 = vmatprep.subr.bf16.mxu0 %v940
      %946 = vmatpush1.bf16.msra.mxu0 %v937
      %947 = vmatprep.subr.bf16.mxu0 0
      %948 = vmatpush1.bf16.msra.mxu0 0
      %949 = vmatprep.subr.bf16.mxu0 0
      %950 = vmatpush1.bf16.msra.mxu0 0
      %951 = vmatprep.subr.bf16.mxu0 0
      %952 = vmatpush1.bf16.msra.mxu0 0
      %953 = vmatprep.subr.bf16.mxu0 0
      %954 = vmatpush1.bf16.msra.mxu0 0
      %955 = vmatprep.subr.bf16.mxu0 0
      %956 = vmatpush1.bf16.msra.mxu0 0
      %957 = vmatprep.subr.bf16.mxu0 0
      %958 = vmatpush1.bf16.msra.mxu0 0
      %959 = vmatprep.subr.bf16.mxu0 0
      %960 = vmatpush1.bf16.msra.mxu0 0
      %961 = vmatprep.subr.bf16.mxu0 0
      %962 = vmatpush1.bf16.msra.mxu0 0
      %963 = vmatprep.subr.bf16.mxu0 0
      %964 = vmatpush1.bf16.msra.mxu0 0
      %965 = vmatprep.subr.bf16.mxu0 0
      %966 = vmatpush1.bf16.msra.mxu0 0
      %967 = vmatprep.subr.bf16.mxu0 0
      %968 = vmatpush1.bf16.msra.mxu0 0
      %969 = vmatprep.subr.bf16.mxu0 0
      %970 = vmatpush1.bf16.msra.mxu0 0
      %971 = vmatprep.subr.bf16.mxu0 0
      %972 = vmatpush1.bf16.msra.mxu0 0
      %973 = vmatprep.subr.bf16.mxu0 0
      %974 = vmatpush1.bf16.msra.mxu0 0
      %975 = vmatprep.subr.bf16.mxu0 0
      %976 = vmatpush1.bf16.msra.mxu0 0
      %977 = vmatprep.mubr.bf16.mxu0 0
      %978 = vmatmul.mubr.bf16.gmra.mrb[0].mxu0 %v925
      %v979 = vpop.f32.mrb[0].mxu0
      %v980 = vadd.f32 0.0, %v979
      %v981 = vpop.f32.mrb[0].mxu0
      %v982 = vadd.f32 0.0, %v981
      %v983 = vpop.f32.mrb[0].mxu0
      %v984 = vadd.f32 0.0, %v983
      %v985 = vpop.f32.mrb[0].mxu0
      %v986 = vadd.f32 0.0, %v985
      %987 = vmatprep.mubr.bf16.mxu0 0
      %988 = vmatmul.mubr.bf16.gmra.mrb[0].mxu0 %v928
      %v989 = vpop.f32.mrb[0].mxu0
      %v990 = vadd.f32 0.0, %v989
      %v991 = vpop.f32.mrb[0].mxu0
      %v992 = vadd.f32 0.0, %v991
      %v993 = vpop.f32.mrb[0].mxu0
      %v994 = vadd.f32 0.0, %v993
      %v995 = vpop.f32.mrb[0].mxu0
      %v996 = vadd.f32 0.0, %v995
      %997 = vmatprep.mubr.bf16.mxu0 0
      %998 = vmatmul.mubr.bf16.gmra.mrb[0].mxu0 %v931
      %v999 = vpop.f32.mrb[0].mxu0
      %v1000 = vadd.f32 0.0, %v999
      %v1001 = vpop.f32.mrb[0].mxu0
      %v1002 = vadd.f32 0.0, %v1001
      %v1003 = vpop.f32.mrb[0].mxu0
      %v1004 = vadd.f32 0.0, %v1003
      %v1005 = vpop.f32.mrb[0].mxu0
      %v1006 = vadd.f32 0.0, %v1005
      %1007 = vmatprep.mubr.bf16.mxu0 0
      %1008 = vmatmul.mubr.bf16.gmra.mrb[0].mxu0 %v934
      %v1009 = vpop.f32.mrb[0].mxu0
      %v1010 = vadd.f32 0.0, %v1009
      %v1011 = vpop.f32.mrb[0].mxu0
      %v1012 = vadd.f32 0.0, %v1011
      %v1013 = vpop.f32.mrb[0].mxu0
      %v1014 = vadd.f32 0.0, %v1013
      %v1015 = vpop.f32.mrb[0].mxu0
      %v1016 = vadd.f32 0.0, %v1015
      %1017 = vdwg.mxu0
      %1018 = vmatprep.subr.bf16.mxu0 0
      %1019 = vmatpush1.bf16.msra.mxu0 %v943
      %1020 = vmatprep.subr.bf16.mxu0 0
      %1021 = vmatpush1.bf16.msra.mxu0 0
      %1022 = vmatprep.subr.bf16.mxu0 0
      %1023 = vmatpush1.bf16.msra.mxu0 0
      %1024 = vmatprep.subr.bf16.mxu0 0
      %1025 = vmatpush1.bf16.msra.mxu0 0
      %1026 = vmatprep.subr.bf16.mxu0 0
      %1027 = vmatpush1.bf16.msra.mxu0 0
      %1028 = vmatprep.subr.bf16.mxu0 0
      %1029 = vmatpush1.bf16.msra.mxu0 0
      %1030 = vmatprep.subr.bf16.mxu0 0
      %1031 = vmatpush1.bf16.msra.mxu0 0
      %1032 = vmatprep.subr.bf16.mxu0 0
      %1033 = vmatpush1.bf16.msra.mxu0 0
      %1034 = vmatprep.subr.bf16.mxu0 0
      %1035 = vmatpush1.bf16.msra.mxu0 0
      %1036 = vmatprep.subr.bf16.mxu0 0
      %1037 = vmatpush1.bf16.msra.mxu0 0
      %1038 = vmatprep.subr.bf16.mxu0 0
      %1039 = vmatpush1.bf16.msra.mxu0 0
      %1040 = vmatprep.subr.bf16.mxu0 0
      %1041 = vmatpush1.bf16.msra.mxu0 0
      %1042 = vmatprep.subr.bf16.mxu0 0
      %1043 = vmatpush1.bf16.msra.mxu0 0
      %1044 = vmatprep.subr.bf16.mxu0 0
      %1045 = vmatpush1.bf16.msra.mxu0 0
      %1046 = vmatprep.subr.bf16.mxu0 0
      %1047 = vmatpush1.bf16.msra.mxu0 0
      %1048 = vmatprep.subr.bf16.mxu0 0
      %1049 = vmatpush1.bf16.msra.mxu0 0
      %1050 = vmatprep.mubr.bf16.mxu0 0
      %1051 = vmatmul.mubr.bf16.gmra.mrb[0].mxu0 %v925
      %v1052 = vpop.f32.mrb[0].mxu0
      %v1053 = vadd.f32 0.0, %v1052
      %v1054 = vpop.f32.mrb[0].mxu0
      %v1055 = vpop.f32.mrb[0].mxu0
      %v1056 = vadd.f32 0.0, %v1055
      %v1057 = vpop.f32.mrb[0].mxu0
      %1058 = vmatprep.mubr.bf16.mxu0 0
      %1059 = vmatmul.mubr.bf16.gmra.mrb[0].mxu0 %v928
      %v1060 = vpop.f32.mrb[0].mxu0
      %v1061 = vadd.f32 0.0, %v1060
      %v1062 = vpop.f32.mrb[0].mxu0
      %v1063 = vpop.f32.mrb[0].mxu0
      %v1064 = vadd.f32 0.0, %v1063
      %v1065 = vpop.f32.mrb[0].mxu0
      %1066 = vmatprep.mubr.bf16.mxu0 0
      %1067 = vmatmul.mubr.bf16.gmra.mrb[0].mxu0 %v931
      %v1068 = vpop.f32.mrb[0].mxu0
      %v1069 = vadd.f32 0.0, %v1068
      %v1070 = vpop.f32.mrb[0].mxu0
      %v1071 = vpop.f32.mrb[0].mxu0
      %v1072 = vadd.f32 0.0, %v1071
      %v1073 = vpop.f32.mrb[0].mxu0
      %1074 = vmatprep.mubr.bf16.mxu0 0
      %1075 = vmatmul.mubr.bf16.gmra.mrb[0].mxu0 %v934
      %v1076 = vpop.f32.mrb[0].mxu0
      %v1077 = vadd.f32 0.0, %v1076
      %v1078 = vpop.f32.mrb[0].mxu0
      %v1079 = vpop.f32.mrb[0].mxu0
      %v1080 = vadd.f32 0.0, %v1079
      %v1081 = vpop.f32.mrb[0].mxu0
      %1082 = vdwg.mxu0
      %v1083 = vadd.f32 %v833, %v980
      %v1084 = vadd.f32 %v834, %v982
      %v1085 = vadd.f32 %v835, %v1053
      %v1086 = vadd.f32 %v836, %v984
      %v1087 = vadd.f32 %v837, %v986
      %v1088 = vadd.f32 %v838, %v1056
      %v1089 = vadd.f32 %v839, %v990
      %v1090 = vadd.f32 %v840, %v992
      %v1091 = vadd.f32 %v841, %v1061
      %v1092 = vadd.f32 %v842, %v994
      %v1093 = vadd.f32 %v843, %v996
      %v1094 = vadd.f32 %v844, %v1064
      %v1095 = vadd.f32 %v845, %v1000
      %v1096 = vadd.f32 %v846, %v1002
      %v1097 = vadd.f32 %v847, %v1069
      %v1098 = vadd.f32 %v848, %v1004
      %v1099 = vadd.f32 %v849, %v1006
      %v1100 = vadd.f32 %v850, %v1072
      %v1101 = vadd.f32 %v851, %v1010
      %v1102 = vadd.f32 %v852, %v1012
      %v1103 = vadd.f32 %v853, %v1077
      %v1104 = vadd.f32 %v854, %v1014
      %v1105 = vadd.f32 %v855, %v1016
      %v1106 = vadd.f32 %v856, %v1080
      %v1107 = vld [vmem:[%s192] sm:$0xff]
      %v1108 = vld [vmem:[%s2] sm:$0xf]
      %v1109 = vld [vmem:[%s2 + $0x4] sm:$0xf]
      %v1110 = vld [vmem:[%s2 + $0x8] sm:$0xf]
      %v1111 = vld [vmem:[%s2 + $0xc] sm:$0xf]
      %v1112 = vld [vmem:[%s2 + $0x10] sm:$0xf]
      %v1113 = vld [vmem:[%s2 + $0x14] sm:$0xf]
      %v1114 = vld [vmem:[%s2 + $0x18] sm:$0xf]
      %v1115 = vld [vmem:[%s2 + $0x1c] sm:$0xf]
      %v1124 = vunpack.c.l.b16 %v1108
      %v1125 = vunpack.c.l.b16 %v1109
      %v1126 = vunpack.c.l.b16 %v1110
      %v1127 = vunpack.c.l.b16 %v1111
      %v1128 = vunpack.c.l.b16 %v1112
      %v1129 = vunpack.c.l.b16 %v1113
      %v1130 = vunpack.c.l.b16 %v1114
      %v1131 = vunpack.c.l.b16 %v1115
      %v1132 = vpack.c.b16 %v1125, %v1124
      %v1133 = vpack.c.b16 %v1127, %v1126
      %v1134 = vpack.c.b16 %v1129, %v1128
      %v1135 = vpack.c.b16 %v1131, %v1130
      %1136 = vrot.lane.b32.xlu0 %v1132, 116
      %v1137 = vpop.permute.xlu0 %1136
      %1138 = vrot.lane.b32.xlu0 %v1133, 116
      %v1139 = vpop.permute.xlu0 %1138
      %1140 = vrot.lane.b32.xlu0 %v1134, 116
      %v1141 = vpop.permute.xlu0 %1140
      %1142 = vrot.lane.b32.xlu0 %v1135, 116
      %v1143 = vpop.permute.xlu0 %1142
      %v1145 = vcombine.high %v1107, %v1107
      %v1147 = vunpack.c.l.s4 1983009808
      %v1148 = vunpack.c.0.s8 %v1147
      %v1149 = vlaneseq
      %v1150 = vshrl.u32 %v1149, 7
      %v1151 = vsub.s32 %v1148, %v1150
      %v1152 = vrot.slane %v1107, %v1151
      %v1154 = vunpack.c.l.s4 1983009808
      %v1155 = vunpack.c.0.s8 %v1154
      %v1156 = vlaneseq
      %v1157 = vshrl.u32 %v1156, 7
      %v1158 = vsub.s32 %v1155, %v1157
      %v1159 = vrot.slane %v1145, %v1158
      %v1160 = vcombine.high %v1152, %v1152
      %v1161 = vcombine.high %v1159, %v1159
      %1162 = vrot.lane.b32.xlu0 %v1152, 109
      %v1163 = vpop.permute.xlu0 %1162
      %1164 = vrot.lane.b32.xlu0 %v1160, 109
      %v1165 = vpop.permute.xlu0 %1164
      %1166 = vrot.lane.b32.xlu0 %v1159, 109
      %v1167 = vpop.permute.xlu0 %1166
      %1168 = vrot.lane.b32.xlu0 %v1161, 109
      %v1169 = vpop.permute.xlu0 %1168
      %vm1170 = vcmask 891904
      %v1171 = vsel %vm1170, %v1163, %v1165
      %v1172 = vsel %vm1170, %v1165, %v1167
      %v1173 = vsel %vm1170, %v1167, %v1169
      %v1175 = vsel %vm267, %v1137, 0
      %v1178 = vsel %vm267, %v1139, 0
      %v1181 = vsel %vm267, %v1141, 0
      %v1184 = vsel %vm267, %v1143, 0
      %v1187 = vand.u32 %v1171, %v283
      %v1190 = vand.u32 %v1172, %v283
      %v1193 = vand.u32 %v1173, %v283
      %1195 = vmatprep.subr.bf16.mxu0 %v1190
      %1196 = vmatpush1.bf16.msra.mxu0 %v1187
      %1197 = vmatprep.subr.bf16.mxu0 0
      %1198 = vmatpush1.bf16.msra.mxu0 0
      %1199 = vmatprep.subr.bf16.mxu0 0
      %1200 = vmatpush1.bf16.msra.mxu0 0
      %1201 = vmatprep.subr.bf16.mxu0 0
      %1202 = vmatpush1.bf16.msra.mxu0 0
      %1203 = vmatprep.subr.bf16.mxu0 0
      %1204 = vmatpush1.bf16.msra.mxu0 0
      %1205 = vmatprep.subr.bf16.mxu0 0
      %1206 = vmatpush1.bf16.msra.mxu0 0
      %1207 = vmatprep.subr.bf16.mxu0 0
      %1208 = vmatpush1.bf16.msra.mxu0 0
      %1209 = vmatprep.subr.bf16.mxu0 0
      %1210 = vmatpush1.bf16.msra.mxu0 0
      %1211 = vmatprep.subr.bf16.mxu0 0
      %1212 = vmatpush1.bf16.msra.mxu0 0
      %1213 = vmatprep.subr.bf16.mxu0 0
      %1214 = vmatpush1.bf16.msra.mxu0 0
      %1215 = vmatprep.subr.bf16.mxu0 0
      %1216 = vmatpush1.bf16.msra.mxu0 0
      %1217 = vmatprep.subr.bf16.mxu0 0
      %1218 = vmatpush1.bf16.msra.mxu0 0
      %1219 = vmatprep.subr.bf16.mxu0 0
      %1220 = vmatpush1.bf16.msra.mxu0 0
      %1221 = vmatprep.subr.bf16.mxu0 0
      %1222 = vmatpush1.bf16.msra.mxu0 0
      %1223 = vmatprep.subr.bf16.mxu0 0
      %1224 = vmatpush1.bf16.msra.mxu0 0
      %1225 = vmatprep.subr.bf16.mxu0 0
      %1226 = vmatpush1.bf16.msra.mxu0 0
      %1227 = vmatprep.mubr.bf16.mxu0 0
      %1228 = vmatmul.mubr.bf16.gmra.mrb[0].mxu0 %v1175
      %v1229 = vpop.f32.mrb[0].mxu0
      %v1230 = vadd.f32 0.0, %v1229
      %v1231 = vpop.f32.mrb[0].mxu0
      %v1232 = vadd.f32 0.0, %v1231
      %v1233 = vpop.f32.mrb[0].mxu0
      %v1234 = vadd.f32 0.0, %v1233
      %v1235 = vpop.f32.mrb[0].mxu0
      %v1236 = vadd.f32 0.0, %v1235
      %1237 = vmatprep.mubr.bf16.mxu0 0
      %1238 = vmatmul.mubr.bf16.gmra.mrb[0].mxu0 %v1178
      %v1239 = vpop.f32.mrb[0].mxu0
      %v1240 = vadd.f32 0.0, %v1239
      %v1241 = vpop.f32.mrb[0].mxu0
      %v1242 = vadd.f32 0.0, %v1241
      %v1243 = vpop.f32.mrb[0].mxu0
      %v1244 = vadd.f32 0.0, %v1243
      %v1245 = vpop.f32.mrb[0].mxu0
      %v1246 = vadd.f32 0.0, %v1245
      %1247 = vmatprep.mubr.bf16.mxu0 0
      %1248 = vmatmul.mubr.bf16.gmra.mrb[0].mxu0 %v1181
      %v1249 = vpop.f32.mrb[0].mxu0
      %v1250 = vadd.f32 0.0, %v1249
      %v1251 = vpop.f32.mrb[0].mxu0
      %v1252 = vadd.f32 0.0, %v1251
      %v1253 = vpop.f32.mrb[0].mxu0
      %v1254 = vadd.f32 0.0, %v1253
      %v1255 = vpop.f32.mrb[0].mxu0
      %v1256 = vadd.f32 0.0, %v1255
      %1257 = vmatprep.mubr.bf16.mxu0 0
      %1258 = vmatmul.mubr.bf16.gmra.mrb[0].mxu0 %v1184
      %v1259 = vpop.f32.mrb[0].mxu0
      %v1260 = vadd.f32 0.0, %v1259
      %v1261 = vpop.f32.mrb[0].mxu0
      %v1262 = vadd.f32 0.0, %v1261
      %v1263 = vpop.f32.mrb[0].mxu0
      %v1264 = vadd.f32 0.0, %v1263
      %v1265 = vpop.f32.mrb[0].mxu0
      %v1266 = vadd.f32 0.0, %v1265
      %1267 = vdwg.mxu0
      %1268 = vmatprep.subr.bf16.mxu0 0
      %1269 = vmatpush1.bf16.msra.mxu0 %v1193
      %1270 = vmatprep.subr.bf16.mxu0 0
      %1271 = vmatpush1.bf16.msra.mxu0 0
      %1272 = vmatprep.subr.bf16.mxu0 0
      %1273 = vmatpush1.bf16.msra.mxu0 0
      %1274 = vmatprep.subr.bf16.mxu0 0
      %1275 = vmatpush1.bf16.msra.mxu0 0
      %1276 = vmatprep.subr.bf16.mxu0 0
      %1277 = vmatpush1.bf16.msra.mxu0 0
      %1278 = vmatprep.subr.bf16.mxu0 0
      %1279 = vmatpush1.bf16.msra.mxu0 0
      %1280 = vmatprep.subr.bf16.mxu0 0
      %1281 = vmatpush1.bf16.msra.mxu0 0
      %1282 = vmatprep.subr.bf16.mxu0 0
      %1283 = vmatpush1.bf16.msra.mxu0 0
      %1284 = vmatprep.subr.bf16.mxu0 0
      %1285 = vmatpush1.bf16.msra.mxu0 0
      %1286 = vmatprep.subr.bf16.mxu0 0
      %1287 = vmatpush1.bf16.msra.mxu0 0
      %1288 = vmatprep.subr.bf16.mxu0 0
      %1289 = vmatpush1.bf16.msra.mxu0 0
      %1290 = vmatprep.subr.bf16.mxu0 0
      %1291 = vmatpush1.bf16.msra.mxu0 0
      %1292 = vmatprep.subr.bf16.mxu0 0
      %1293 = vmatpush1.bf16.msra.mxu0 0
      %1294 = vmatprep.subr.bf16.mxu0 0
      %1295 = vmatpush1.bf16.msra.mxu0 0
      %1296 = vmatprep.subr.bf16.mxu0 0
      %1297 = vmatpush1.bf16.msra.mxu0 0
      %1298 = vmatprep.subr.bf16.mxu0 0
      %1299 = vmatpush1.bf16.msra.mxu0 0
      %1300 = vmatprep.mubr.bf16.mxu0 0
      %1301 = vmatmul.mubr.bf16.gmra.mrb[0].mxu0 %v1175
      %v1302 = vpop.f32.mrb[0].mxu0
      %v1303 = vadd.f32 0.0, %v1302
      %v1304 = vpop.f32.mrb[0].mxu0
      %v1305 = vpop.f32.mrb[0].mxu0
      %v1306 = vadd.f32 0.0, %v1305
      %v1307 = vpop.f32.mrb[0].mxu0
      %1308 = vmatprep.mubr.bf16.mxu0 0
      %1309 = vmatmul.mubr.bf16.gmra.mrb[0].mxu0 %v1178
      %v1310 = vpop.f32.mrb[0].mxu0
      %v1311 = vadd.f32 0.0, %v1310
      %v1312 = vpop.f32.mrb[0].mxu0
      %v1313 = vpop.f32.mrb[0].mxu0
      %v1314 = vadd.f32 0.0, %v1313
      %v1315 = vpop.f32.mrb[0].mxu0
      %1316 = vmatprep.mubr.bf16.mxu0 0
      %1317 = vmatmul.mubr.bf16.gmra.mrb[0].mxu0 %v1181
      %v1318 = vpop.f32.mrb[0].mxu0
      %v1319 = vadd.f32 0.0, %v1318
      %v1320 = vpop.f32.mrb[0].mxu0
      %v1321 = vpop.f32.mrb[0].mxu0
      %v1322 = vadd.f32 0.0, %v1321
      %v1323 = vpop.f32.mrb[0].mxu0
      %1324 = vmatprep.mubr.bf16.mxu0 0
      %1325 = vmatmul.mubr.bf16.gmra.mrb[0].mxu0 %v1184
      %v1326 = vpop.f32.mrb[0].mxu0
      %v1327 = vadd.f32 0.0, %v1326
      %v1328 = vpop.f32.mrb[0].mxu0
      %v1329 = vpop.f32.mrb[0].mxu0
      %v1330 = vadd.f32 0.0, %v1329
      %v1331 = vpop.f32.mrb[0].mxu0
      %1332 = vdwg.mxu0
      %v1333 = vadd.f32 %v1083, %v1230
      %v1334 = vadd.f32 %v1084, %v1232
      %v1335 = vadd.f32 %v1085, %v1303
      %v1336 = vadd.f32 %v1086, %v1234
      %v1337 = vadd.f32 %v1087, %v1236
      %v1338 = vadd.f32 %v1088, %v1306
      %v1339 = vadd.f32 %v1089, %v1240
      %v1340 = vadd.f32 %v1090, %v1242
      %v1341 = vadd.f32 %v1091, %v1311
      %v1342 = vadd.f32 %v1092, %v1244
      %v1343 = vadd.f32 %v1093, %v1246
      %v1344 = vadd.f32 %v1094, %v1314
      %v1345 = vadd.f32 %v1095, %v1250
      %v1346 = vadd.f32 %v1096, %v1252
      %v1347 = vadd.f32 %v1097, %v1319
      %v1348 = vadd.f32 %v1098, %v1254
      %v1349 = vadd.f32 %v1099, %v1256
      %v1350 = vadd.f32 %v1100, %v1322
      %v1351 = vadd.f32 %v1101, %v1260
      %v1352 = vadd.f32 %v1102, %v1262
      %v1353 = vadd.f32 %v1103, %v1327
      %v1354 = vadd.f32 %v1104, %v1264
      %v1355 = vadd.f32 %v1105, %v1266
      %v1356 = vadd.f32 %v1106, %v1330
      %v1357 = vld [vmem:[%s192] sm:$0xff]
      %v1358 = vld [vmem:[%s2] sm:$0xf]
      %v1359 = vld [vmem:[%s2 + $0x4] sm:$0xf]
      %v1360 = vld [vmem:[%s2 + $0x8] sm:$0xf]
      %v1361 = vld [vmem:[%s2 + $0xc] sm:$0xf]
      %v1362 = vld [vmem:[%s2 + $0x10] sm:$0xf]
      %v1363 = vld [vmem:[%s2 + $0x14] sm:$0xf]
      %v1364 = vld [vmem:[%s2 + $0x18] sm:$0xf]
      %v1365 = vld [vmem:[%s2 + $0x1c] sm:$0xf]
      %v1374 = vunpack.c.l.b16 %v1358
      %v1375 = vunpack.c.l.b16 %v1359
      %v1376 = vunpack.c.l.b16 %v1360
      %v1377 = vunpack.c.l.b16 %v1361
      %v1378 = vunpack.c.l.b16 %v1362
      %v1379 = vunpack.c.l.b16 %v1363
      %v1380 = vunpack.c.l.b16 %v1364
      %v1381 = vunpack.c.l.b16 %v1365
      %v1382 = vpack.c.b16 %v1375, %v1374
      %v1383 = vpack.c.b16 %v1377, %v1376
      %v1384 = vpack.c.b16 %v1379, %v1378
      %v1385 = vpack.c.b16 %v1381, %v1380
      %1386 = vrot.lane.b32.xlu0 %v1382, 113
      %v1387 = vpop.permute.xlu0 %1386
      %1388 = vrot.lane.b32.xlu0 %v1383, 113
      %v1389 = vpop.permute.xlu0 %1388
      %1390 = vrot.lane.b32.xlu0 %v1384, 113
      %v1391 = vpop.permute.xlu0 %1390
      %1392 = vrot.lane.b32.xlu0 %v1385, 113
      %v1393 = vpop.permute.xlu0 %1392
      %v1395 = vcombine.high %v1357, %v1357
      %v1397 = vunpack.c.l.s4 1983009808
      %v1398 = vunpack.c.0.s8 %v1397
      %v1399 = vlaneseq
      %v1400 = vshrl.u32 %v1399, 7
      %v1401 = vsub.s32 %v1398, %v1400
      %v1402 = vrot.slane %v1357, %v1401
      %v1404 = vunpack.c.l.s4 1983009808
      %v1405 = vunpack.c.0.s8 %v1404
      %v1406 = vlaneseq
      %v1407 = vshrl.u32 %v1406, 7
      %v1408 = vsub.s32 %v1405, %v1407
      %v1409 = vrot.slane %v1395, %v1408
      %v1410 = vcombine.high %v1402, %v1402
      %v1411 = vcombine.high %v1409, %v1409
      %1412 = vrot.lane.b32.xlu0 %v1402, 108
      %v1413 = vpop.permute.xlu0 %1412
      %1414 = vrot.lane.b32.xlu0 %v1410, 108
      %v1415 = vpop.permute.xlu0 %1414
      %1416 = vrot.lane.b32.xlu0 %v1409, 108
      %v1417 = vpop.permute.xlu0 %1416
      %1418 = vrot.lane.b32.xlu0 %v1411, 108
      %v1419 = vpop.permute.xlu0 %1418
      %vm1420 = vcmask 883712
      %v1421 = vsel %vm1420, %v1413, %v1415
      %v1422 = vsel %vm1420, %v1415, %v1417
      %v1423 = vsel %vm1420, %v1417, %v1419
      %v1425 = vsel %vm267, %v1387, 0
      %v1428 = vsel %vm267, %v1389, 0
      %v1431 = vsel %vm267, %v1391, 0
      %v1434 = vsel %vm267, %v1393, 0
      %v1437 = vand.u32 %v1421, %v283
      %v1440 = vand.u32 %v1422, %v283
      %v1443 = vand.u32 %v1423, %v283
      %1445 = vmatprep.subr.bf16.mxu0 %v1440
      %1446 = vmatpush1.bf16.msra.mxu0 %v1437
      %1447 = vmatprep.subr.bf16.mxu0 0
      %1448 = vmatpush1.bf16.msra.mxu0 0
      %1449 = vmatprep.subr.bf16.mxu0 0
      %1450 = vmatpush1.bf16.msra.mxu0 0
      %1451 = vmatprep.subr.bf16.mxu0 0
      %1452 = vmatpush1.bf16.msra.mxu0 0
      %1453 = vmatprep.subr.bf16.mxu0 0
      %1454 = vmatpush1.bf16.msra.mxu0 0
      %1455 = vmatprep.subr.bf16.mxu0 0
      %1456 = vmatpush1.bf16.msra.mxu0 0
      %1457 = vmatprep.subr.bf16.mxu0 0
      %1458 = vmatpush1.bf16.msra.mxu0 0
      %1459 = vmatprep.subr.bf16.mxu0 0
      %1460 = vmatpush1.bf16.msra.mxu0 0
      %1461 = vmatprep.subr.bf16.mxu0 0
      %1462 = vmatpush1.bf16.msra.mxu0 0
      %1463 = vmatprep.subr.bf16.mxu0 0
      %1464 = vmatpush1.bf16.msra.mxu0 0
      %1465 = vmatprep.subr.bf16.mxu0 0
      %1466 = vmatpush1.bf16.msra.mxu0 0
      %1467 = vmatprep.subr.bf16.mxu0 0
      %1468 = vmatpush1.bf16.msra.mxu0 0
      %1469 = vmatprep.subr.bf16.mxu0 0
      %1470 = vmatpush1.bf16.msra.mxu0 0
      %1471 = vmatprep.subr.bf16.mxu0 0
      %1472 = vmatpush1.bf16.msra.mxu0 0
      %1473 = vmatprep.subr.bf16.mxu0 0
      %1474 = vmatpush1.bf16.msra.mxu0 0
      %1475 = vmatprep.subr.bf16.mxu0 0
      %1476 = vmatpush1.bf16.msra.mxu0 0
      %1477 = vmatprep.mubr.bf16.mxu0 0
      %1478 = vmatmul.mubr.bf16.gmra.mrb[0].mxu0 %v1425
      %v1479 = vpop.f32.mrb[0].mxu0
      %v1480 = vadd.f32 0.0, %v1479
      %v1481 = vpop.f32.mrb[0].mxu0
      %v1482 = vadd.f32 0.0, %v1481
      %v1483 = vpop.f32.mrb[0].mxu0
      %v1484 = vadd.f32 0.0, %v1483
      %v1485 = vpop.f32.mrb[0].mxu0
      %v1486 = vadd.f32 0.0, %v1485
      %1487 = vmatprep.mubr.bf16.mxu0 0
      %1488 = vmatmul.mubr.bf16.gmra.mrb[0].mxu0 %v1428
      %v1489 = vpop.f32.mrb[0].mxu0
      %v1490 = vadd.f32 0.0, %v1489
      %v1491 = vpop.f32.mrb[0].mxu0
      %v1492 = vadd.f32 0.0, %v1491
      %v1493 = vpop.f32.mrb[0].mxu0
      %v1494 = vadd.f32 0.0, %v1493
      %v1495 = vpop.f32.mrb[0].mxu0
      %v1496 = vadd.f32 0.0, %v1495
      %1497 = vmatprep.mubr.bf16.mxu0 0
      %1498 = vmatmul.mubr.bf16.gmra.mrb[0].mxu0 %v1431
      %v1499 = vpop.f32.mrb[0].mxu0
      %v1500 = vadd.f32 0.0, %v1499
      %v1501 = vpop.f32.mrb[0].mxu0
      %v1502 = vadd.f32 0.0, %v1501
      %v1503 = vpop.f32.mrb[0].mxu0
      %v1504 = vadd.f32 0.0, %v1503
      %v1505 = vpop.f32.mrb[0].mxu0
      %v1506 = vadd.f32 0.0, %v1505
      %1507 = vmatprep.mubr.bf16.mxu0 0
      %1508 = vmatmul.mubr.bf16.gmra.mrb[0].mxu0 %v1434
      %v1509 = vpop.f32.mrb[0].mxu0
      %v1510 = vadd.f32 0.0, %v1509
      %v1511 = vpop.f32.mrb[0].mxu0
      %v1512 = vadd.f32 0.0, %v1511
      %v1513 = vpop.f32.mrb[0].mxu0
      %v1514 = vadd.f32 0.0, %v1513
      %v1515 = vpop.f32.mrb[0].mxu0
      %v1516 = vadd.f32 0.0, %v1515
      %1517 = vdwg.mxu0
      %1518 = vmatprep.subr.bf16.mxu0 0
      %1519 = vmatpush1.bf16.msra.mxu0 %v1443
      %1520 = vmatprep.subr.bf16.mxu0 0
      %1521 = vmatpush1.bf16.msra.mxu0 0
      %1522 = vmatprep.subr.bf16.mxu0 0
      %1523 = vmatpush1.bf16.msra.mxu0 0
      %1524 = vmatprep.subr.bf16.mxu0 0
      %1525 = vmatpush1.bf16.msra.mxu0 0
      %1526 = vmatprep.subr.bf16.mxu0 0
      %1527 = vmatpush1.bf16.msra.mxu0 0
      %1528 = vmatprep.subr.bf16.mxu0 0
      %1529 = vmatpush1.bf16.msra.mxu0 0
      %1530 = vmatprep.subr.bf16.mxu0 0
      %1531 = vmatpush1.bf16.msra.mxu0 0
      %1532 = vmatprep.subr.bf16.mxu0 0
      %1533 = vmatpush1.bf16.msra.mxu0 0
      %1534 = vmatprep.subr.bf16.mxu0 0
      %1535 = vmatpush1.bf16.msra.mxu0 0
      %1536 = vmatprep.subr.bf16.mxu0 0
      %1537 = vmatpush1.bf16.msra.mxu0 0
      %1538 = vmatprep.subr.bf16.mxu0 0
      %1539 = vmatpush1.bf16.msra.mxu0 0
      %1540 = vmatprep.subr.bf16.mxu0 0
      %1541 = vmatpush1.bf16.msra.mxu0 0
      %1542 = vmatprep.subr.bf16.mxu0 0
      %1543 = vmatpush1.bf16.msra.mxu0 0
      %1544 = vmatprep.subr.bf16.mxu0 0
      %1545 = vmatpush1.bf16.msra.mxu0 0
      %1546 = vmatprep.subr.bf16.mxu0 0
      %1547 = vmatpush1.bf16.msra.mxu0 0
      %1548 = vmatprep.subr.bf16.mxu0 0
      %1549 = vmatpush1.bf16.msra.mxu0 0
      %1550 = vmatprep.mubr.bf16.mxu0 0
      %1551 = vmatmul.mubr.bf16.gmra.mrb[0].mxu0 %v1425
      %v1552 = vpop.f32.mrb[0].mxu0
      %v1553 = vadd.f32 0.0, %v1552
      %v1554 = vpop.f32.mrb[0].mxu0
      %v1555 = vpop.f32.mrb[0].mxu0
      %v1556 = vadd.f32 0.0, %v1555
      %v1557 = vpop.f32.mrb[0].mxu0
      %1558 = vmatprep.mubr.bf16.mxu0 0
      %1559 = vmatmul.mubr.bf16.gmra.mrb[0].mxu0 %v1428
      %v1560 = vpop.f32.mrb[0].mxu0
      %v1561 = vadd.f32 0.0, %v1560
      %v1562 = vpop.f32.mrb[0].mxu0
      %v1563 = vpop.f32.mrb[0].mxu0
      %v1564 = vadd.f32 0.0, %v1563
      %v1565 = vpop.f32.mrb[0].mxu0
      %1566 = vmatprep.mubr.bf16.mxu0 0
      %1567 = vmatmul.mubr.bf16.gmra.mrb[0].mxu0 %v1431
      %v1568 = vpop.f32.mrb[0].mxu0
      %v1569 = vadd.f32 0.0, %v1568
      %v1570 = vpop.f32.mrb[0].mxu0
      %v1571 = vpop.f32.mrb[0].mxu0
      %v1572 = vadd.f32 0.0, %v1571
      %v1573 = vpop.f32.mrb[0].mxu0
      %1574 = vmatprep.mubr.bf16.mxu0 0
      %1575 = vmatmul.mubr.bf16.gmra.mrb[0].mxu0 %v1434
      %v1576 = vpop.f32.mrb[0].mxu0
      %v1577 = vadd.f32 0.0, %v1576
      %v1578 = vpop.f32.mrb[0].mxu0
      %v1579 = vpop.f32.mrb[0].mxu0
      %v1580 = vadd.f32 0.0, %v1579
      %v1581 = vpop.f32.mrb[0].mxu0
      %1582 = vdwg.mxu0
      %v1583 = vadd.f32 %v1333, %v1480
      %v1584 = vadd.f32 %v1334, %v1482
      %v1585 = vadd.f32 %v1335, %v1553
      %v1586 = vadd.f32 %v1336, %v1484
      %v1587 = vadd.f32 %v1337, %v1486
      %v1588 = vadd.f32 %v1338, %v1556
      %v1589 = vadd.f32 %v1339, %v1490
      %v1590 = vadd.f32 %v1340, %v1492
      %v1591 = vadd.f32 %v1341, %v1561
      %v1592 = vadd.f32 %v1342, %v1494
      %v1593 = vadd.f32 %v1343, %v1496
      %v1594 = vadd.f32 %v1344, %v1564
      %v1595 = vadd.f32 %v1345, %v1500
      %v1596 = vadd.f32 %v1346, %v1502
      %v1597 = vadd.f32 %v1347, %v1569
      %v1598 = vadd.f32 %v1348, %v1504
      %v1599 = vadd.f32 %v1349, %v1506
      %v1600 = vadd.f32 %v1350, %v1572
      %v1601 = vadd.f32 %v1351, %v1510
      %v1602 = vadd.f32 %v1352, %v1512
      %v1603 = vadd.f32 %v1353, %v1577
      %v1604 = vadd.f32 %v1354, %v1514
      %v1605 = vadd.f32 %v1355, %v1516
      %v1606 = vadd.f32 %v1356, %v1580
      %v1607 = vld [vmem:[%s192] sm:$0xff]
      %v1608 = vld [vmem:[%s2] sm:$0xf]
      %v1609 = vld [vmem:[%s2 + $0x4] sm:$0xf]
      %v1610 = vld [vmem:[%s2 + $0x8] sm:$0xf]
      %v1611 = vld [vmem:[%s2 + $0xc] sm:$0xf]
      %v1612 = vld [vmem:[%s2 + $0x10] sm:$0xf]
      %v1613 = vld [vmem:[%s2 + $0x14] sm:$0xf]
      %v1614 = vld [vmem:[%s2 + $0x18] sm:$0xf]
      %v1615 = vld [vmem:[%s2 + $0x1c] sm:$0xf]
      %v1624 = vunpack.c.l.b16 %v1608
      %v1625 = vunpack.c.l.b16 %v1609
      %v1626 = vunpack.c.l.b16 %v1610
      %v1627 = vunpack.c.l.b16 %v1611
      %v1628 = vunpack.c.l.b16 %v1612
      %v1629 = vunpack.c.l.b16 %v1613
      %v1630 = vunpack.c.l.b16 %v1614
      %v1631 = vunpack.c.l.b16 %v1615
      %v1632 = vpack.c.b16 %v1625, %v1624
      %v1633 = vpack.c.b16 %v1627, %v1626
      %v1634 = vpack.c.b16 %v1629, %v1628
      %v1635 = vpack.c.b16 %v1631, %v1630
      %1636 = vrot.lane.b32.xlu0 %v1632, 110
      %v1637 = vpop.permute.xlu0 %1636
      %1638 = vrot.lane.b32.xlu0 %v1633, 110
      %v1639 = vpop.permute.xlu0 %1638
      %1640 = vrot.lane.b32.xlu0 %v1634, 110
      %v1641 = vpop.permute.xlu0 %1640
      %1642 = vrot.lane.b32.xlu0 %v1635, 110
      %v1643 = vpop.permute.xlu0 %1642
      %v1645 = vcombine.high %v1607, %v1607
      %v1647 = vunpack.c.l.s4 1983009808
      %v1648 = vunpack.c.0.s8 %v1647
      %v1649 = vlaneseq
      %v1650 = vshrl.u32 %v1649, 7
      %v1651 = vsub.s32 %v1648, %v1650
      %v1652 = vrot.slane %v1607, %v1651
      %v1654 = vunpack.c.l.s4 1983009808
      %v1655 = vunpack.c.0.s8 %v1654
      %v1656 = vlaneseq
      %v1657 = vshrl.u32 %v1656, 7
      %v1658 = vsub.s32 %v1655, %v1657
      %v1659 = vrot.slane %v1645, %v1658
      %v1660 = vcombine.high %v1652, %v1652
      %v1661 = vcombine.high %v1659, %v1659
      %1662 = vrot.lane.b32.xlu0 %v1652, 92
      %v1663 = vpop.permute.xlu0 %1662
      %1664 = vrot.lane.b32.xlu0 %v1660, 92
      %v1665 = vpop.permute.xlu0 %1664
      %1666 = vrot.lane.b32.xlu0 %v1659, 92
      %v1667 = vpop.permute.xlu0 %1666
      %1668 = vrot.lane.b32.xlu0 %v1661, 92
      %v1669 = vpop.permute.xlu0 %1668
      %vm1670 = vcmask 752640
      %v1671 = vsel %vm1670, %v1663, %v1665
      %v1672 = vsel %vm1670, %v1665, %v1667
      %v1673 = vsel %vm1670, %v1667, %v1669
      %v1675 = vsel %vm267, %v1637, 0
      %v1678 = vsel %vm267, %v1639, 0
      %v1681 = vsel %vm267, %v1641, 0
      %v1684 = vsel %vm267, %v1643, 0
      %v1687 = vand.u32 %v1671, %v283
      %v1690 = vand.u32 %v1672, %v283
      %v1693 = vand.u32 %v1673, %v283
      %1695 = vmatprep.subr.bf16.mxu0 %v1690
      %1696 = vmatpush1.bf16.msra.mxu0 %v1687
      %1697 = vmatprep.subr.bf16.mxu0 0
      %1698 = vmatpush1.bf16.msra.mxu0 0
      %1699 = vmatprep.subr.bf16.mxu0 0
      %1700 = vmatpush1.bf16.msra.mxu0 0
      %1701 = vmatprep.subr.bf16.mxu0 0
      %1702 = vmatpush1.bf16.msra.mxu0 0
      %1703 = vmatprep.subr.bf16.mxu0 0
      %1704 = vmatpush1.bf16.msra.mxu0 0
      %1705 = vmatprep.subr.bf16.mxu0 0
      %1706 = vmatpush1.bf16.msra.mxu0 0
      %1707 = vmatprep.subr.bf16.mxu0 0
      %1708 = vmatpush1.bf16.msra.mxu0 0
      %1709 = vmatprep.subr.bf16.mxu0 0
      %1710 = vmatpush1.bf16.msra.mxu0 0
      %1711 = vmatprep.subr.bf16.mxu0 0
      %1712 = vmatpush1.bf16.msra.mxu0 0
      %1713 = vmatprep.subr.bf16.mxu0 0
      %1714 = vmatpush1.bf16.msra.mxu0 0
      %1715 = vmatprep.subr.bf16.mxu0 0
      %1716 = vmatpush1.bf16.msra.mxu0 0
      %1717 = vmatprep.subr.bf16.mxu0 0
      %1718 = vmatpush1.bf16.msra.mxu0 0
      %1719 = vmatprep.subr.bf16.mxu0 0
      %1720 = vmatpush1.bf16.msra.mxu0 0
      %1721 = vmatprep.subr.bf16.mxu0 0
      %1722 = vmatpush1.bf16.msra.mxu0 0
      %1723 = vmatprep.subr.bf16.mxu0 0
      %1724 = vmatpush1.bf16.msra.mxu0 0
      %1725 = vmatprep.subr.bf16.mxu0 0
      %1726 = vmatpush1.bf16.msra.mxu0 0
      %1727 = vmatprep.mubr.bf16.mxu0 0
      %1728 = vmatmul.mubr.bf16.gmra.mrb[0].mxu0 %v1675
      %v1729 = vpop.f32.mrb[0].mxu0
      %v1730 = vadd.f32 0.0, %v1729
      %v1731 = vpop.f32.mrb[0].mxu0
      %v1732 = vadd.f32 0.0, %v1731
      %v1733 = vpop.f32.mrb[0].mxu0
      %v1734 = vadd.f32 0.0, %v1733
      %v1735 = vpop.f32.mrb[0].mxu0
      %v1736 = vadd.f32 0.0, %v1735
      %1737 = vmatprep.mubr.bf16.mxu0 0
      %1738 = vmatmul.mubr.bf16.gmra.mrb[0].mxu0 %v1678
      %v1739 = vpop.f32.mrb[0].mxu0
      %v1740 = vadd.f32 0.0, %v1739
      %v1741 = vpop.f32.mrb[0].mxu0
      %v1742 = vadd.f32 0.0, %v1741
      %v1743 = vpop.f32.mrb[0].mxu0
      %v1744 = vadd.f32 0.0, %v1743
      %v1745 = vpop.f32.mrb[0].mxu0
      %v1746 = vadd.f32 0.0, %v1745
      %1747 = vmatprep.mubr.bf16.mxu0 0
      %1748 = vmatmul.mubr.bf16.gmra.mrb[0].mxu0 %v1681
      %v1749 = vpop.f32.mrb[0].mxu0
      %v1750 = vadd.f32 0.0, %v1749
      %v1751 = vpop.f32.mrb[0].mxu0
      %v1752 = vadd.f32 0.0, %v1751
      %v1753 = vpop.f32.mrb[0].mxu0
      %v1754 = vadd.f32 0.0, %v1753
      %v1755 = vpop.f32.mrb[0].mxu0
      %v1756 = vadd.f32 0.0, %v1755
      %1757 = vmatprep.mubr.bf16.mxu0 0
      %1758 = vmatmul.mubr.bf16.gmra.mrb[0].mxu0 %v1684
      %v1759 = vpop.f32.mrb[0].mxu0
      %v1760 = vadd.f32 0.0, %v1759
      %v1761 = vpop.f32.mrb[0].mxu0
      %v1762 = vadd.f32 0.0, %v1761
      %v1763 = vpop.f32.mrb[0].mxu0
      %v1764 = vadd.f32 0.0, %v1763
      %v1765 = vpop.f32.mrb[0].mxu0
      %v1766 = vadd.f32 0.0, %v1765
      %1767 = vdwg.mxu0
      %1768 = vmatprep.subr.bf16.mxu0 0
      %1769 = vmatpush1.bf16.msra.mxu0 %v1693
      %1770 = vmatprep.subr.bf16.mxu0 0
      %1771 = vmatpush1.bf16.msra.mxu0 0
      %1772 = vmatprep.subr.bf16.mxu0 0
      %1773 = vmatpush1.bf16.msra.mxu0 0
      %1774 = vmatprep.subr.bf16.mxu0 0
      %1775 = vmatpush1.bf16.msra.mxu0 0
      %1776 = vmatprep.subr.bf16.mxu0 0
      %1777 = vmatpush1.bf16.msra.mxu0 0
      %1778 = vmatprep.subr.bf16.mxu0 0
      %1779 = vmatpush1.bf16.msra.mxu0 0
      %1780 = vmatprep.subr.bf16.mxu0 0
      %1781 = vmatpush1.bf16.msra.mxu0 0
      %1782 = vmatprep.subr.bf16.mxu0 0
      %1783 = vmatpush1.bf16.msra.mxu0 0
      %1784 = vmatprep.subr.bf16.mxu0 0
      %1785 = vmatpush1.bf16.msra.mxu0 0
      %1786 = vmatprep.subr.bf16.mxu0 0
      %1787 = vmatpush1.bf16.msra.mxu0 0
      %1788 = vmatprep.subr.bf16.mxu0 0
      %1789 = vmatpush1.bf16.msra.mxu0 0
      %1790 = vmatprep.subr.bf16.mxu0 0
      %1791 = vmatpush1.bf16.msra.mxu0 0
      %1792 = vmatprep.subr.bf16.mxu0 0
      %1793 = vmatpush1.bf16.msra.mxu0 0
      %1794 = vmatprep.subr.bf16.mxu0 0
      %1795 = vmatpush1.bf16.msra.mxu0 0
      %1796 = vmatprep.subr.bf16.mxu0 0
      %1797 = vmatpush1.bf16.msra.mxu0 0
      %1798 = vmatprep.subr.bf16.mxu0 0
      %1799 = vmatpush1.bf16.msra.mxu0 0
      %1800 = vmatprep.mubr.bf16.mxu0 0
      %1801 = vmatmul.mubr.bf16.gmra.mrb[0].mxu0 %v1675
      %v1802 = vpop.f32.mrb[0].mxu0
      %v1803 = vadd.f32 0.0, %v1802
      %v1804 = vpop.f32.mrb[0].mxu0
      %v1805 = vpop.f32.mrb[0].mxu0
      %v1806 = vadd.f32 0.0, %v1805
      %v1807 = vpop.f32.mrb[0].mxu0
      %1808 = vmatprep.mubr.bf16.mxu0 0
      %1809 = vmatmul.mubr.bf16.gmra.mrb[0].mxu0 %v1678
      %v1810 = vpop.f32.mrb[0].mxu0
      %v1811 = vadd.f32 0.0, %v1810
      %v1812 = vpop.f32.mrb[0].mxu0
      %v1813 = vpop.f32.mrb[0].mxu0
      %v1814 = vadd.f32 0.0, %v1813
      %v1815 = vpop.f32.mrb[0].mxu0
      %1816 = vmatprep.mubr.bf16.mxu0 0
      %1817 = vmatmul.mubr.bf16.gmra.mrb[0].mxu0 %v1681
      %v1818 = vpop.f32.mrb[0].mxu0
      %v1819 = vadd.f32 0.0, %v1818
      %v1820 = vpop.f32.mrb[0].mxu0
      %v1821 = vpop.f32.mrb[0].mxu0
      %v1822 = vadd.f32 0.0, %v1821
      %v1823 = vpop.f32.mrb[0].mxu0
      %1824 = vmatprep.mubr.bf16.mxu0 0
      %1825 = vmatmul.mubr.bf16.gmra.mrb[0].mxu0 %v1684
      %v1826 = vpop.f32.mrb[0].mxu0
      %v1827 = vadd.f32 0.0, %v1826
      %v1828 = vpop.f32.mrb[0].mxu0
      %v1829 = vpop.f32.mrb[0].mxu0
      %v1830 = vadd.f32 0.0, %v1829
      %v1831 = vpop.f32.mrb[0].mxu0
      %1832 = vdwg.mxu0
      %v1833 = vadd.f32 %v1583, %v1730
      %v1834 = vadd.f32 %v1584, %v1732
      %v1835 = vadd.f32 %v1585, %v1803
      %v1836 = vadd.f32 %v1586, %v1734
      %v1837 = vadd.f32 %v1587, %v1736
      %v1838 = vadd.f32 %v1588, %v1806
      %v1839 = vadd.f32 %v1589, %v1740
      %v1840 = vadd.f32 %v1590, %v1742
      %v1841 = vadd.f32 %v1591, %v1811
      %v1842 = vadd.f32 %v1592, %v1744
      %v1843 = vadd.f32 %v1593, %v1746
      %v1844 = vadd.f32 %v1594, %v1814
      %v1845 = vadd.f32 %v1595, %v1750
      %v1846 = vadd.f32 %v1596, %v1752
      %v1847 = vadd.f32 %v1597, %v1819
      %v1848 = vadd.f32 %v1598, %v1754
      %v1849 = vadd.f32 %v1599, %v1756
      %v1850 = vadd.f32 %v1600, %v1822
      %v1851 = vadd.f32 %v1601, %v1760
      %v1852 = vadd.f32 %v1602, %v1762
      %v1853 = vadd.f32 %v1603, %v1827
      %v1854 = vadd.f32 %v1604, %v1764
      %v1855 = vadd.f32 %v1605, %v1766
      %v1856 = vadd.f32 %v1606, %v1830
      %v1857 = vld [vmem:[%s192] sm:$0xff]
      %v1858 = vld [vmem:[%s2] sm:$0xf]
      %v1859 = vld [vmem:[%s2 + $0x4] sm:$0xf]
      %v1860 = vld [vmem:[%s2 + $0x8] sm:$0xf]
      %v1861 = vld [vmem:[%s2 + $0xc] sm:$0xf]
      %v1862 = vld [vmem:[%s2 + $0x10] sm:$0xf]
      %v1863 = vld [vmem:[%s2 + $0x14] sm:$0xf]
      %v1864 = vld [vmem:[%s2 + $0x18] sm:$0xf]
      %v1865 = vld [vmem:[%s2 + $0x1c] sm:$0xf]
      %v1874 = vunpack.c.l.b16 %v1858
      %v1875 = vunpack.c.l.b16 %v1859
      %v1876 = vunpack.c.l.b16 %v1860
      %v1877 = vunpack.c.l.b16 %v1861
      %v1878 = vunpack.c.l.b16 %v1862
      %v1879 = vunpack.c.l.b16 %v1863
      %v1880 = vunpack.c.l.b16 %v1864
      %v1881 = vunpack.c.l.b16 %v1865
      %v1882 = vpack.c.b16 %v1875, %v1874
      %v1883 = vpack.c.b16 %v1877, %v1876
      %v1884 = vpack.c.b16 %v1879, %v1878
      %v1885 = vpack.c.b16 %v1881, %v1880
      %1886 = vrot.lane.b32.xlu0 %v1882, 107
      %v1887 = vpop.permute.xlu0 %1886
      %1888 = vrot.lane.b32.xlu0 %v1883, 107
      %v1889 = vpop.permute.xlu0 %1888
      %1890 = vrot.lane.b32.xlu0 %v1884, 107
      %v1891 = vpop.permute.xlu0 %1890
      %1892 = vrot.lane.b32.xlu0 %v1885, 107
      %v1893 = vpop.permute.xlu0 %1892
      %v1895 = vcombine.high %v1857, %v1857
      %v1897 = vunpack.c.l.s4 1983009808
      %v1898 = vunpack.c.0.s8 %v1897
      %v1899 = vlaneseq
      %v1900 = vshrl.u32 %v1899, 7
      %v1901 = vsub.s32 %v1898, %v1900
      %v1902 = vrot.slane %v1857, %v1901
      %v1904 = vunpack.c.l.s4 1983009808
      %v1905 = vunpack.c.0.s8 %v1904
      %v1906 = vlaneseq
      %v1907 = vshrl.u32 %v1906, 7
      %v1908 = vsub.s32 %v1905, %v1907
      %v1909 = vrot.slane %v1895, %v1908
      %v1910 = vcombine.high %v1902, %v1902
      %v1911 = vcombine.high %v1909, %v1909
      %1912 = vrot.lane.b32.xlu0 %v1902, 91
      %v1913 = vpop.permute.xlu0 %1912
      %1914 = vrot.lane.b32.xlu0 %v1910, 91
      %v1915 = vpop.permute.xlu0 %1914
      %1916 = vrot.lane.b32.xlu0 %v1909, 91
      %v1917 = vpop.permute.xlu0 %1916
      %1918 = vrot.lane.b32.xlu0 %v1911, 91
      %v1919 = vpop.permute.xlu0 %1918
      %vm1920 = vcmask 744448
      %v1921 = vsel %vm1920, %v1913, %v1915
      %v1922 = vsel %vm1920, %v1915, %v1917
      %v1923 = vsel %vm1920, %v1917, %v1919
      %v1925 = vsel %vm267, %v1887, 0
      %v1928 = vsel %vm267, %v1889, 0
      %v1931 = vsel %vm267, %v1891, 0
      %v1934 = vsel %vm267, %v1893, 0
      %v1937 = vand.u32 %v1921, %v283
      %v1940 = vand.u32 %v1922, %v283
      %v1943 = vand.u32 %v1923, %v283
      %1945 = vmatprep.subr.bf16.mxu0 %v1940
      %1946 = vmatpush1.bf16.msra.mxu0 %v1937
      %1947 = vmatprep.subr.bf16.mxu0 0
      %1948 = vmatpush1.bf16.msra.mxu0 0
      %1949 = vmatprep.subr.bf16.mxu0 0
      %1950 = vmatpush1.bf16.msra.mxu0 0
      %1951 = vmatprep.subr.bf16.mxu0 0
      %1952 = vmatpush1.bf16.msra.mxu0 0
      %1953 = vmatprep.subr.bf16.mxu0 0
      %1954 = vmatpush1.bf16.msra.mxu0 0
      %1955 = vmatprep.subr.bf16.mxu0 0
      %1956 = vmatpush1.bf16.msra.mxu0 0
      %1957 = vmatprep.subr.bf16.mxu0 0
      %1958 = vmatpush1.bf16.msra.mxu0 0
      %1959 = vmatprep.subr.bf16.mxu0 0
      %1960 = vmatpush1.bf16.msra.mxu0 0
      %1961 = vmatprep.subr.bf16.mxu0 0
      %1962 = vmatpush1.bf16.msra.mxu0 0
      %1963 = vmatprep.subr.bf16.mxu0 0
      %1964 = vmatpush1.bf16.msra.mxu0 0
      %1965 = vmatprep.subr.bf16.mxu0 0
      %1966 = vmatpush1.bf16.msra.mxu0 0
      %1967 = vmatprep.subr.bf16.mxu0 0
      %1968 = vmatpush1.bf16.msra.mxu0 0
      %1969 = vmatprep.subr.bf16.mxu0 0
      %1970 = vmatpush1.bf16.msra.mxu0 0
      %1971 = vmatprep.subr.bf16.mxu0 0
      %1972 = vmatpush1.bf16.msra.mxu0 0
      %1973 = vmatprep.subr.bf16.mxu0 0
      %1974 = vmatpush1.bf16.msra.mxu0 0
      %1975 = vmatprep.subr.bf16.mxu0 0
      %1976 = vmatpush1.bf16.msra.mxu0 0
      %1977 = vmatprep.mubr.bf16.mxu0 0
      %1978 = vmatmul.mubr.bf16.gmra.mrb[0].mxu0 %v1925
      %v1979 = vpop.f32.mrb[0].mxu0
      %v1980 = vadd.f32 0.0, %v1979
      %v1981 = vpop.f32.mrb[0].mxu0
      %v1982 = vadd.f32 0.0, %v1981
      %v1983 = vpop.f32.mrb[0].mxu0
      %v1984 = vadd.f32 0.0, %v1983
      %v1985 = vpop.f32.mrb[0].mxu0
      %v1986 = vadd.f32 0.0, %v1985
      %1987 = vmatprep.mubr.bf16.mxu0 0
      %1988 = vmatmul.mubr.bf16.gmra.mrb[0].mxu0 %v1928
      %v1989 = vpop.f32.mrb[0].mxu0
      %v1990 = vadd.f32 0.0, %v1989
      %v1991 = vpop.f32.mrb[0].mxu0
      %v1992 = vadd.f32 0.0, %v1991
      %v1993 = vpop.f32.mrb[0].mxu0
      %v1994 = vadd.f32 0.0, %v1993
      %v1995 = vpop.f32.mrb[0].mxu0
      %v1996 = vadd.f32 0.0, %v1995
      %1997 = vmatprep.mubr.bf16.mxu0 0
      %1998 = vmatmul.mubr.bf16.gmra.mrb[0].mxu0 %v1931
      %v1999 = vpop.f32.mrb[0].mxu0
      %v2000 = vadd.f32 0.0, %v1999
      %v2001 = vpop.f32.mrb[0].mxu0
      %v2002 = vadd.f32 0.0, %v2001
      %v2003 = vpop.f32.mrb[0].mxu0
      %v2004 = vadd.f32 0.0, %v2003
      %v2005 = vpop.f32.mrb[0].mxu0
      %v2006 = vadd.f32 0.0, %v2005
      %2007 = vmatprep.mubr.bf16.mxu0 0
      %2008 = vmatmul.mubr.bf16.gmra.mrb[0].mxu0 %v1934
      %v2009 = vpop.f32.mrb[0].mxu0
      %v2010 = vadd.f32 0.0, %v2009
      %v2011 = vpop.f32.mrb[0].mxu0
      %v2012 = vadd.f32 0.0, %v2011
      %v2013 = vpop.f32.mrb[0].mxu0
      %v2014 = vadd.f32 0.0, %v2013
      %v2015 = vpop.f32.mrb[0].mxu0
      %v2016 = vadd.f32 0.0, %v2015
      %2017 = vdwg.mxu0
      %2018 = vmatprep.subr.bf16.mxu0 0
      %2019 = vmatpush1.bf16.msra.mxu0 %v1943
      %2020 = vmatprep.subr.bf16.mxu0 0
      %2021 = vmatpush1.bf16.msra.mxu0 0
      %2022 = vmatprep.subr.bf16.mxu0 0
      %2023 = vmatpush1.bf16.msra.mxu0 0
      %2024 = vmatprep.subr.bf16.mxu0 0
      %2025 = vmatpush1.bf16.msra.mxu0 0
      %2026 = vmatprep.subr.bf16.mxu0 0
      %2027 = vmatpush1.bf16.msra.mxu0 0
      %2028 = vmatprep.subr.bf16.mxu0 0
      %2029 = vmatpush1.bf16.msra.mxu0 0
      %2030 = vmatprep.subr.bf16.mxu0 0
      %2031 = vmatpush1.bf16.msra.mxu0 0
      %2032 = vmatprep.subr.bf16.mxu0 0
      %2033 = vmatpush1.bf16.msra.mxu0 0
      %2034 = vmatprep.subr.bf16.mxu0 0
      %2035 = vmatpush1.bf16.msra.mxu0 0
      %2036 = vmatprep.subr.bf16.mxu0 0
      %2037 = vmatpush1.bf16.msra.mxu0 0
      %2038 = vmatprep.subr.bf16.mxu0 0
      %2039 = vmatpush1.bf16.msra.mxu0 0
      %2040 = vmatprep.subr.bf16.mxu0 0
      %2041 = vmatpush1.bf16.msra.mxu0 0
      %2042 = vmatprep.subr.bf16.mxu0 0
      %2043 = vmatpush1.bf16.msra.mxu0 0
      %2044 = vmatprep.subr.bf16.mxu0 0
      %2045 = vmatpush1.bf16.msra.mxu0 0
      %2046 = vmatprep.subr.bf16.mxu0 0
      %2047 = vmatpush1.bf16.msra.mxu0 0
      %2048 = vmatprep.subr.bf16.mxu0 0
      %2049 = vmatpush1.bf16.msra.mxu0 0
      %2050 = vmatprep.mubr.bf16.mxu0 0
      %2051 = vmatmul.mubr.bf16.gmra.mrb[0].mxu0 %v1925
      %v2052 = vpop.f32.mrb[0].mxu0
      %v2053 = vadd.f32 0.0, %v2052
      %v2054 = vpop.f32.mrb[0].mxu0
      %v2055 = vpop.f32.mrb[0].mxu0
      %v2056 = vadd.f32 0.0, %v2055
      %v2057 = vpop.f32.mrb[0].mxu0
      %2058 = vmatprep.mubr.bf16.mxu0 0
      %2059 = vmatmul.mubr.bf16.gmra.mrb[0].mxu0 %v1928
      %v2060 = vpop.f32.mrb[0].mxu0
      %v2061 = vadd.f32 0.0, %v2060
      %v2062 = vpop.f32.mrb[0].mxu0
      %v2063 = vpop.f32.mrb[0].mxu0
      %v2064 = vadd.f32 0.0, %v2063
      %v2065 = vpop.f32.mrb[0].mxu0
      %2066 = vmatprep.mubr.bf16.mxu0 0
      %2067 = vmatmul.mubr.bf16.gmra.mrb[0].mxu0 %v1931
      %v2068 = vpop.f32.mrb[0].mxu0
      %v2069 = vadd.f32 0.0, %v2068
      %v2070 = vpop.f32.mrb[0].mxu0
      %v2071 = vpop.f32.mrb[0].mxu0
      %v2072 = vadd.f32 0.0, %v2071
      %v2073 = vpop.f32.mrb[0].mxu0
      %2074 = vmatprep.mubr.bf16.mxu0 0
      %2075 = vmatmul.mubr.bf16.gmra.mrb[0].mxu0 %v1934
      %v2076 = vpop.f32.mrb[0].mxu0
      %v2077 = vadd.f32 0.0, %v2076
      %v2078 = vpop.f32.mrb[0].mxu0
      %v2079 = vpop.f32.mrb[0].mxu0
      %v2080 = vadd.f32 0.0, %v2079
      %v2081 = vpop.f32.mrb[0].mxu0
      %2082 = vdwg.mxu0
      %v2083 = vadd.f32 %v1833, %v1980
      %v2084 = vadd.f32 %v1834, %v1982
      %v2085 = vadd.f32 %v1835, %v2053
      %v2086 = vadd.f32 %v1836, %v1984
      %v2087 = vadd.f32 %v1837, %v1986
      %v2088 = vadd.f32 %v1838, %v2056
      %v2089 = vadd.f32 %v1839, %v1990
      %v2090 = vadd.f32 %v1840, %v1992
      %v2091 = vadd.f32 %v1841, %v2061
      %v2092 = vadd.f32 %v1842, %v1994
      %v2093 = vadd.f32 %v1843, %v1996
      %v2094 = vadd.f32 %v1844, %v2064
      %v2095 = vadd.f32 %v1845, %v2000
      %v2096 = vadd.f32 %v1846, %v2002
      %v2097 = vadd.f32 %v1847, %v2069
      %v2098 = vadd.f32 %v1848, %v2004
      %v2099 = vadd.f32 %v1849, %v2006
      %v2100 = vadd.f32 %v1850, %v2072
      %v2101 = vadd.f32 %v1851, %v2010
      %v2102 = vadd.f32 %v1852, %v2012
      %v2103 = vadd.f32 %v1853, %v2077
      %v2104 = vadd.f32 %v1854, %v2014
      %v2105 = vadd.f32 %v1855, %v2016
      %v2106 = vadd.f32 %v1856, %v2080
      %v2107 = vld [vmem:[%s192] sm:$0xff]
      %v2108 = vld [vmem:[%s2] sm:$0xf]
      %v2109 = vld [vmem:[%s2 + $0x4] sm:$0xf]
      %v2110 = vld [vmem:[%s2 + $0x8] sm:$0xf]
      %v2111 = vld [vmem:[%s2 + $0xc] sm:$0xf]
      %v2112 = vld [vmem:[%s2 + $0x10] sm:$0xf]
      %v2113 = vld [vmem:[%s2 + $0x14] sm:$0xf]
      %v2114 = vld [vmem:[%s2 + $0x18] sm:$0xf]
      %v2115 = vld [vmem:[%s2 + $0x1c] sm:$0xf]
      %v2124 = vunpack.c.l.b16 %v2108
      %v2125 = vunpack.c.l.b16 %v2109
      %v2126 = vunpack.c.l.b16 %v2110
      %v2127 = vunpack.c.l.b16 %v2111
      %v2128 = vunpack.c.l.b16 %v2112
      %v2129 = vunpack.c.l.b16 %v2113
      %v2130 = vunpack.c.l.b16 %v2114
      %v2131 = vunpack.c.l.b16 %v2115
      %v2132 = vpack.c.b16 %v2125, %v2124
      %v2133 = vpack.c.b16 %v2127, %v2126
      %v2134 = vpack.c.b16 %v2129, %v2128
      %v2135 = vpack.c.b16 %v2131, %v2130
      %2136 = vrot.lane.b32.xlu0 %v2132, 104
      %v2137 = vpop.permute.xlu0 %2136
      %2138 = vrot.lane.b32.xlu0 %v2133, 104
      %v2139 = vpop.permute.xlu0 %2138
      %2140 = vrot.lane.b32.xlu0 %v2134, 104
      %v2141 = vpop.permute.xlu0 %2140
      %2142 = vrot.lane.b32.xlu0 %v2135, 104
      %v2143 = vpop.permute.xlu0 %2142
      %v2145 = vcombine.high %v2107, %v2107
      %v2147 = vunpack.c.l.s4 1983009808
      %v2148 = vunpack.c.0.s8 %v2147
      %v2149 = vlaneseq
      %v2150 = vshrl.u32 %v2149, 7
      %v2151 = vsub.s32 %v2148, %v2150
      %v2152 = vrot.slane %v2107, %v2151
      %v2154 = vunpack.c.l.s4 1983009808
      %v2155 = vunpack.c.0.s8 %v2154
      %v2156 = vlaneseq
      %v2157 = vshrl.u32 %v2156, 7
      %v2158 = vsub.s32 %v2155, %v2157
      %v2159 = vrot.slane %v2145, %v2158
      %v2160 = vcombine.high %v2152, %v2152
      %v2161 = vcombine.high %v2159, %v2159
      %2162 = vrot.lane.b32.xlu0 %v2152, 90
      %v2163 = vpop.permute.xlu0 %2162
      %2164 = vrot.lane.b32.xlu0 %v2160, 90
      %v2165 = vpop.permute.xlu0 %2164
      %2166 = vrot.lane.b32.xlu0 %v2159, 90
      %v2167 = vpop.permute.xlu0 %2166
      %2168 = vrot.lane.b32.xlu0 %v2161, 90
      %v2169 = vpop.permute.xlu0 %2168
      %vm2170 = vcmask 736256
      %v2171 = vsel %vm2170, %v2163, %v2165
      %v2172 = vsel %vm2170, %v2165, %v2167
      %v2173 = vsel %vm2170, %v2167, %v2169
      %v2175 = vsel %vm267, %v2137, 0
      %v2178 = vsel %vm267, %v2139, 0
      %v2181 = vsel %vm267, %v2141, 0
      %v2184 = vsel %vm267, %v2143, 0
      %v2187 = vand.u32 %v2171, %v283
      %v2190 = vand.u32 %v2172, %v283
      %v2193 = vand.u32 %v2173, %v283
      %2195 = vmatprep.subr.bf16.mxu0 %v2190
      %2196 = vmatpush1.bf16.msra.mxu0 %v2187
      %2197 = vmatprep.subr.bf16.mxu0 0
      %2198 = vmatpush1.bf16.msra.mxu0 0
      %2199 = vmatprep.subr.bf16.mxu0 0
      %2200 = vmatpush1.bf16.msra.mxu0 0
      %2201 = vmatprep.subr.bf16.mxu0 0
      %2202 = vmatpush1.bf16.msra.mxu0 0
      %2203 = vmatprep.subr.bf16.mxu0 0
      %2204 = vmatpush1.bf16.msra.mxu0 0
      %2205 = vmatprep.subr.bf16.mxu0 0
      %2206 = vmatpush1.bf16.msra.mxu0 0
      %2207 = vmatprep.subr.bf16.mxu0 0
      %2208 = vmatpush1.bf16.msra.mxu0 0
      %2209 = vmatprep.subr.bf16.mxu0 0
      %2210 = vmatpush1.bf16.msra.mxu0 0
      %2211 = vmatprep.subr.bf16.mxu0 0
      %2212 = vmatpush1.bf16.msra.mxu0 0
      %2213 = vmatprep.subr.bf16.mxu0 0
      %2214 = vmatpush1.bf16.msra.mxu0 0
      %2215 = vmatprep.subr.bf16.mxu0 0
      %2216 = vmatpush1.bf16.msra.mxu0 0
      %2217 = vmatprep.subr.bf16.mxu0 0
      %2218 = vmatpush1.bf16.msra.mxu0 0
      %2219 = vmatprep.subr.bf16.mxu0 0
      %2220 = vmatpush1.bf16.msra.mxu0 0
      %2221 = vmatprep.subr.bf16.mxu0 0
      %2222 = vmatpush1.bf16.msra.mxu0 0
      %2223 = vmatprep.subr.bf16.mxu0 0
      %2224 = vmatpush1.bf16.msra.mxu0 0
      %2225 = vmatprep.subr.bf16.mxu0 0
      %2226 = vmatpush1.bf16.msra.mxu0 0
      %2227 = vmatprep.mubr.bf16.mxu0 0
      %2228 = vmatmul.mubr.bf16.gmra.mrb[0].mxu0 %v2175
      %v2229 = vpop.f32.mrb[0].mxu0
      %v2230 = vadd.f32 0.0, %v2229
      %v2231 = vpop.f32.mrb[0].mxu0
      %v2232 = vadd.f32 0.0, %v2231
      %v2233 = vpop.f32.mrb[0].mxu0
      %v2234 = vadd.f32 0.0, %v2233
      %v2235 = vpop.f32.mrb[0].mxu0
      %v2236 = vadd.f32 0.0, %v2235
      %2237 = vmatprep.mubr.bf16.mxu0 0
      %2238 = vmatmul.mubr.bf16.gmra.mrb[0].mxu0 %v2178
      %v2239 = vpop.f32.mrb[0].mxu0
      %v2240 = vadd.f32 0.0, %v2239
      %v2241 = vpop.f32.mrb[0].mxu0
      %v2242 = vadd.f32 0.0, %v2241
      %v2243 = vpop.f32.mrb[0].mxu0
      %v2244 = vadd.f32 0.0, %v2243
      %v2245 = vpop.f32.mrb[0].mxu0
      %v2246 = vadd.f32 0.0, %v2245
      %2247 = vmatprep.mubr.bf16.mxu0 0
      %2248 = vmatmul.mubr.bf16.gmra.mrb[0].mxu0 %v2181
      %v2249 = vpop.f32.mrb[0].mxu0
      %v2250 = vadd.f32 0.0, %v2249
      %v2251 = vpop.f32.mrb[0].mxu0
      %v2252 = vadd.f32 0.0, %v2251
      %v2253 = vpop.f32.mrb[0].mxu0
      %v2254 = vadd.f32 0.0, %v2253
      %v2255 = vpop.f32.mrb[0].mxu0
      %v2256 = vadd.f32 0.0, %v2255
      %2257 = vmatprep.mubr.bf16.mxu0 0
      %2258 = vmatmul.mubr.bf16.gmra.mrb[0].mxu0 %v2184
      %v2259 = vpop.f32.mrb[0].mxu0
      %v2260 = vadd.f32 0.0, %v2259
      %v2261 = vpop.f32.mrb[0].mxu0
      %v2262 = vadd.f32 0.0, %v2261
      %v2263 = vpop.f32.mrb[0].mxu0
      %v2264 = vadd.f32 0.0, %v2263
      %v2265 = vpop.f32.mrb[0].mxu0
      %v2266 = vadd.f32 0.0, %v2265
      %2267 = vdwg.mxu0
      %2268 = vmatprep.subr.bf16.mxu0 0
      %2269 = vmatpush1.bf16.msra.mxu0 %v2193
      %2270 = vmatprep.subr.bf16.mxu0 0
      %2271 = vmatpush1.bf16.msra.mxu0 0
      %2272 = vmatprep.subr.bf16.mxu0 0
      %2273 = vmatpush1.bf16.msra.mxu0 0
      %2274 = vmatprep.subr.bf16.mxu0 0
      %2275 = vmatpush1.bf16.msra.mxu0 0
      %2276 = vmatprep.subr.bf16.mxu0 0
      %2277 = vmatpush1.bf16.msra.mxu0 0
      %2278 = vmatprep.subr.bf16.mxu0 0
      %2279 = vmatpush1.bf16.msra.mxu0 0
      %2280 = vmatprep.subr.bf16.mxu0 0
      %2281 = vmatpush1.bf16.msra.mxu0 0
      %2282 = vmatprep.subr.bf16.mxu0 0
      %2283 = vmatpush1.bf16.msra.mxu0 0
      %2284 = vmatprep.subr.bf16.mxu0 0
      %2285 = vmatpush1.bf16.msra.mxu0 0
      %2286 = vmatprep.subr.bf16.mxu0 0
      %2287 = vmatpush1.bf16.msra.mxu0 0
      %2288 = vmatprep.subr.bf16.mxu0 0
      %2289 = vmatpush1.bf16.msra.mxu0 0
      %2290 = vmatprep.subr.bf16.mxu0 0
      %2291 = vmatpush1.bf16.msra.mxu0 0
      %2292 = vmatprep.subr.bf16.mxu0 0
      %2293 = vmatpush1.bf16.msra.mxu0 0
      %2294 = vmatprep.subr.bf16.mxu0 0
      %2295 = vmatpush1.bf16.msra.mxu0 0
      %2296 = vmatprep.subr.bf16.mxu0 0
      %2297 = vmatpush1.bf16.msra.mxu0 0
      %2298 = vmatprep.subr.bf16.mxu0 0
      %2299 = vmatpush1.bf16.msra.mxu0 0
      %2300 = vmatprep.mubr.bf16.mxu0 0
      %2301 = vmatmul.mubr.bf16.gmra.mrb[0].mxu0 %v2175
      %v2302 = vpop.f32.mrb[0].mxu0
      %v2303 = vadd.f32 0.0, %v2302
      %v2304 = vpop.f32.mrb[0].mxu0
      %v2305 = vpop.f32.mrb[0].mxu0
      %v2306 = vadd.f32 0.0, %v2305
      %v2307 = vpop.f32.mrb[0].mxu0
      %2308 = vmatprep.mubr.bf16.mxu0 0
      %2309 = vmatmul.mubr.bf16.gmra.mrb[0].mxu0 %v2178
      %v2310 = vpop.f32.mrb[0].mxu0
      %v2311 = vadd.f32 0.0, %v2310
      %v2312 = vpop.f32.mrb[0].mxu0
      %v2313 = vpop.f32.mrb[0].mxu0
      %v2314 = vadd.f32 0.0, %v2313
      %v2315 = vpop.f32.mrb[0].mxu0
      %2316 = vmatprep.mubr.bf16.mxu0 0
      %2317 = vmatmul.mubr.bf16.gmra.mrb[0].mxu0 %v2181
      %v2318 = vpop.f32.mrb[0].mxu0
      %v2319 = vadd.f32 0.0, %v2318
      %v2320 = vpop.f32.mrb[0].mxu0
      %v2321 = vpop.f32.mrb[0].mxu0
      %v2322 = vadd.f32 0.0, %v2321
      %v2323 = vpop.f32.mrb[0].mxu0
      %2324 = vmatprep.mubr.bf16.mxu0 0
      %2325 = vmatmul.mubr.bf16.gmra.mrb[0].mxu0 %v2184
      %v2326 = vpop.f32.mrb[0].mxu0
      %v2327 = vadd.f32 0.0, %v2326
      %v2328 = vpop.f32.mrb[0].mxu0
      %v2329 = vpop.f32.mrb[0].mxu0
      %v2330 = vadd.f32 0.0, %v2329
      %v2331 = vpop.f32.mrb[0].mxu0
      %2332 = vdwg.mxu0
      %v2333 = vadd.f32 %v2083, %v2230
      %v2334 = vadd.f32 %v2084, %v2232
      %v2335 = vadd.f32 %v2085, %v2303
      %v2336 = vadd.f32 %v2086, %v2234
      %v2337 = vadd.f32 %v2087, %v2236
      %v2338 = vadd.f32 %v2088, %v2306
      %v2339 = vadd.f32 %v2089, %v2240
      %v2340 = vadd.f32 %v2090, %v2242
      %v2341 = vadd.f32 %v2091, %v2311
      %v2342 = vadd.f32 %v2092, %v2244
      %v2343 = vadd.f32 %v2093, %v2246
      %v2344 = vadd.f32 %v2094, %v2314
      %v2345 = vadd.f32 %v2095, %v2250
      %v2346 = vadd.f32 %v2096, %v2252
      %v2347 = vadd.f32 %v2097, %v2319
      %v2348 = vadd.f32 %v2098, %v2254
      %v2349 = vadd.f32 %v2099, %v2256
      %v2350 = vadd.f32 %v2100, %v2322
      %v2351 = vadd.f32 %v2101, %v2260
      %v2352 = vadd.f32 %v2102, %v2262
      %v2353 = vadd.f32 %v2103, %v2327
      %v2354 = vadd.f32 %v2104, %v2264
      %v2355 = vadd.f32 %v2105, %v2266
      %v2356 = vadd.f32 %v2106, %v2330
      %v2357 = vld [vmem:[%s3] sm:$0xff]
      %v2358 = vld [vmem:[%s3 + $0x8] sm:$0xff]
      %v2359 = vld [vmem:[%s3 + $0x10] sm:$0xff]
      %v2360 = vld [vmem:[%s3 + $0x18] sm:$0xff]
      %v2361 = vld [vmem:[%s3 + $0x20] sm:$0xff]
      %v2362 = vld [vmem:[%s3 + $0x28] sm:$0xff]
      %v2363 = vld [vmem:[%s3 + $0x30] sm:$0xff]
      %v2364 = vld [vmem:[%s3 + $0x38] sm:$0xff]
      %2366 = vset.pattern.permute.xlu0 0
      %2367 = vperm.xlu0 %2366, %v2357
      %v2368 = vpop.permute.xlu0 %2367
      %2371 = vset.pattern.permute.xlu0 0
      %2372 = vperm.xlu0 %2371, %v2358
      %v2373 = vpop.permute.xlu0 %2372
      %2376 = vset.pattern.permute.xlu0 0
      %2377 = vperm.xlu0 %2376, %v2359
      %v2378 = vpop.permute.xlu0 %2377
      %2381 = vset.pattern.permute.xlu0 0
      %2382 = vperm.xlu0 %2381, %v2360
      %v2383 = vpop.permute.xlu0 %2382
      %2386 = vset.pattern.permute.xlu0 0
      %2387 = vperm.xlu0 %2386, %v2361
      %v2388 = vpop.permute.xlu0 %2387
      %2391 = vset.pattern.permute.xlu0 0
      %2392 = vperm.xlu0 %2391, %v2362
      %v2393 = vpop.permute.xlu0 %2392
      %2396 = vset.pattern.permute.xlu0 0
      %2397 = vperm.xlu0 %2396, %v2363
      %v2398 = vpop.permute.xlu0 %2397
      %2401 = vset.pattern.permute.xlu0 0
      %2402 = vperm.xlu0 %2401, %v2364
      %v2403 = vpop.permute.xlu0 %2402
      %v2405 = vadd.f32 %v2333, %v2368
      %v2406 = vadd.f32 %v2334, %v2368
      %v2407 = vadd.f32 %v2335, %v2368
      %v2408 = vadd.f32 %v2336, %v2373
      %v2409 = vadd.f32 %v2337, %v2373
      %v2410 = vadd.f32 %v2338, %v2373
      %v2411 = vadd.f32 %v2339, %v2378
      %v2412 = vadd.f32 %v2340, %v2378
      %v2413 = vadd.f32 %v2341, %v2378
      %v2414 = vadd.f32 %v2342, %v2383
      %v2415 = vadd.f32 %v2343, %v2383
      %v2416 = vadd.f32 %v2344, %v2383
      %v2417 = vadd.f32 %v2345, %v2388
      %v2418 = vadd.f32 %v2346, %v2388
      %v2419 = vadd.f32 %v2347, %v2388
      %v2420 = vadd.f32 %v2348, %v2393
      %v2421 = vadd.f32 %v2349, %v2393
      %v2422 = vadd.f32 %v2350, %v2393
      %v2423 = vadd.f32 %v2351, %v2398
      %v2424 = vadd.f32 %v2352, %v2398
      %v2425 = vadd.f32 %v2353, %v2398
      %v2426 = vadd.f32 %v2354, %v2403
      %v2427 = vadd.f32 %v2355, %v2403
      %v2428 = vadd.f32 %v2356, %v2403
      %v2429 = vmax.f32 %v2405, 0.0
      %v2430 = vmax.f32 %v2406, 0.0
      %v2431 = vmax.f32 %v2407, 0.0
      %v2432 = vmax.f32 %v2408, 0.0
      %v2433 = vmax.f32 %v2409, 0.0
      %v2434 = vmax.f32 %v2410, 0.0
      %v2435 = vmax.f32 %v2411, 0.0
      %v2436 = vmax.f32 %v2412, 0.0
      %v2437 = vmax.f32 %v2413, 0.0
      %v2438 = vmax.f32 %v2414, 0.0
      %v2439 = vmax.f32 %v2415, 0.0
      %v2440 = vmax.f32 %v2416, 0.0
      %v2441 = vmax.f32 %v2417, 0.0
      %v2442 = vmax.f32 %v2418, 0.0
      %v2443 = vmax.f32 %v2419, 0.0
      %v2444 = vmax.f32 %v2420, 0.0
      %v2445 = vmax.f32 %v2421, 0.0
      %v2446 = vmax.f32 %v2422, 0.0
      %v2447 = vmax.f32 %v2423, 0.0
      %v2448 = vmax.f32 %v2424, 0.0
      %v2449 = vmax.f32 %v2425, 0.0
      %v2450 = vmax.f32 %v2426, 0.0
      %v2451 = vmax.f32 %v2427, 0.0
      %v2452 = vmax.f32 %v2428, 0.0
      %v2453 = vld [vmem:[%s1] sm:$0x7]
      %v2455 = vlaneseq
      %v2456 = vshrl.u32 %v2455, 7
      %v2457 = vsub.s32 0, %v2456
      %v2458 = vrot.slane %v2453, %v2457
      %v2459 = vlaneseq
      %v2460 = vshrl.u32 %v2459, 7
      %v2461 = vsub.s32 1, %v2460
      %v2462 = vrot.slane %v2453, %v2461
      %v2463 = vlaneseq
      %v2464 = vshrl.u32 %v2463, 7
      %v2465 = vsub.s32 2, %v2464
      %v2466 = vrot.slane %v2453, %v2465
      %v2470 = vmul.f32 %v2429, %v2458
      %v2471 = vmul.f32 %v2430, %v2462
      %v2472 = vmul.f32 %v2431, %v2466
      %v2473 = vmul.f32 %v2432, %v2458
      %v2474 = vmul.f32 %v2433, %v2462
      %v2475 = vmul.f32 %v2434, %v2466
      %v2476 = vmul.f32 %v2435, %v2458
      %v2477 = vmul.f32 %v2436, %v2462
      %v2478 = vmul.f32 %v2437, %v2466
      %v2479 = vmul.f32 %v2438, %v2458
      %v2480 = vmul.f32 %v2439, %v2462
      %v2481 = vmul.f32 %v2440, %v2466
      %v2482 = vmul.f32 %v2441, %v2458
      %v2483 = vmul.f32 %v2442, %v2462
      %v2484 = vmul.f32 %v2443, %v2466
      %v2485 = vmul.f32 %v2444, %v2458
      %v2486 = vmul.f32 %v2445, %v2462
      %v2487 = vmul.f32 %v2446, %v2466
      %v2488 = vmul.f32 %v2447, %v2458
      %v2489 = vmul.f32 %v2448, %v2462
      %v2490 = vmul.f32 %v2449, %v2466
      %v2491 = vmul.f32 %v2450, %v2458
      %v2492 = vmul.f32 %v2451, %v2462
      %v2493 = vmul.f32 %v2452, %v2466
      %v2494 = vadd.f32 %v2470, %v2471
      %v2495 = vadd.f32 %v2494, %v2472
      %2496 = vadd.xlane.f32.xlu0 %v2495
      %v2497 = vpop.xlane.xlu0 %2496
      %v2498 = vadd.f32 %v2473, %v2474
      %v2499 = vadd.f32 %v2498, %v2475
      %2500 = vadd.xlane.f32.xlu0 %v2499
      %v2501 = vpop.xlane.xlu0 %2500
      %v2502 = vadd.f32 %v2476, %v2477
      %v2503 = vadd.f32 %v2502, %v2478
      %2504 = vadd.xlane.f32.xlu0 %v2503
      %v2505 = vpop.xlane.xlu0 %2504
      %v2506 = vadd.f32 %v2479, %v2480
      %v2507 = vadd.f32 %v2506, %v2481
      %2508 = vadd.xlane.f32.xlu0 %v2507
      %v2509 = vpop.xlane.xlu0 %2508
      %v2510 = vadd.f32 %v2482, %v2483
      %v2511 = vadd.f32 %v2510, %v2484
      %2512 = vadd.xlane.f32.xlu0 %v2511
      %v2513 = vpop.xlane.xlu0 %2512
      %v2514 = vadd.f32 %v2485, %v2486
      %v2515 = vadd.f32 %v2514, %v2487
      %2516 = vadd.xlane.f32.xlu0 %v2515
      %v2517 = vpop.xlane.xlu0 %2516
      %v2518 = vadd.f32 %v2488, %v2489
      %v2519 = vadd.f32 %v2518, %v2490
      %2520 = vadd.xlane.f32.xlu0 %v2519
      %v2521 = vpop.xlane.xlu0 %2520
      %v2522 = vadd.f32 %v2491, %v2492
      %v2523 = vadd.f32 %v2522, %v2493
      %2524 = vadd.xlane.f32.xlu0 %v2523
      %v2525 = vpop.xlane.xlu0 %2524
      %v2526 = vadd.f32 %v2497, 0.0
      %v2527 = vadd.f32 %v2501, 0.0
      %v2528 = vadd.f32 %v2505, 0.0
      %v2529 = vadd.f32 %v2509, 0.0
      %v2530 = vadd.f32 %v2513, 0.0
      %v2531 = vadd.f32 %v2517, 0.0
      %v2532 = vadd.f32 %v2521, 0.0
      %v2533 = vadd.f32 %v2525, 0.0
      %vm2534 = vcmask 7168
      %2535 = vst.msk [vmem:[%s197] sm:$0xff] %vm2534, %v2526
      %2536 = vst.msk [vmem:[%s197 + $0x8] sm:$0xff] %vm2534, %v2527
      %2537 = vst.msk [vmem:[%s197 + $0x10] sm:$0xff] %vm2534, %v2528
      %2538 = vst.msk [vmem:[%s197 + $0x18] sm:$0xff] %vm2534, %v2529
      %2539 = vst.msk [vmem:[%s197 + $0x20] sm:$0xff] %vm2534, %v2530
      %2540 = vst.msk [vmem:[%s197 + $0x28] sm:$0xff] %vm2534, %v2531
      %2541 = vst.msk [vmem:[%s197 + $0x30] sm:$0xff] %vm2534, %v2532
      %2542 = vst.msk [vmem:[%s197 + $0x38] sm:$0xff] %vm2534, %v2533
      %p2543 = scmp.lt.s32.totalorder %s15, 1
      %s2544 = scalar_select %p2543, %s15, 1
      %s2545 = smul.addr %s2544, 8
      %s2546 = smul.addr %s2545, 8
      %s2547 = scalar_lea.vmem %s4, %s2546
      // Predicated region
      $region37: #{quantum_hybrid_forward.2} parent=35 // pred_check
        %p2548 = pneg %p122
      $region38: #{quantum_hybrid_forward.2} parent=35 // pred_check_branch
        %2550 = sbr.rel (%p2548) target = $region40
      $region39: #{quantum_hybrid_forward.2} parent=35 // pred_region
        _
      $region40: #{quantum_hybrid_forward.2} parent=35 // pred_fallthru
        _
    $region36: #{quantum_hybrid_forward.2} parent=5 // pred_fallthru
      _
    %p2551 = scmp.le.s32.totalorder 2, %s10
    // Predicated region
    $region41: #{quantum_hybrid_forward.2} parent=5 // pred_check
      %p2552 = pneg %p2551
    $region42: #{quantum_hybrid_forward.2} parent=5 // pred_check_branch
      %2554 = sbr.rel (%p2552) target = $region44
    $region43: #{quantum_hybrid_forward.2} parent=5 // pred_region
      %s2555 = ssub.s32 %s10, 2
      // Predicated region
      $region45: #{quantum_hybrid_forward.2} parent=43 // pred_check
        %p2556 = pneg %p128
      $region46: #{quantum_hybrid_forward.2} parent=43 // pred_check_branch
        %2558 = sbr.rel (%p2556) target = $region48
      $region47: #{quantum_hybrid_forward.2} parent=43 // pred_region
        %p2559 = scmp.lt.s32.totalorder %s16, 1
        %s2560 = scalar_select %p2559, %s16, 1
        %s2561 = smul.addr %s2560, 8
        %s2562 = smul.addr %s2561, 8
        %s2563 = scalar_lea.vmem %s4, %s2562
      $region48: #{quantum_hybrid_forward.2} parent=43 // pred_fallthru
        _
    $region44: #{quantum_hybrid_forward.2} parent=5 // pred_fallthru
      _
  $region6: #{quantum_hybrid_forward.2} parent=0 // loop_footer
    %s14 = sadd.s32 1, %s10
  $region7: #{quantum_hybrid_forward.2} parent=0 // loop_footer_branch
    %9 = sbr.rel target = $region3
  $region8: #{quantum_hybrid_forward.2} parent=0 // loop_exit
    _

// kernel: quantum_hybrid_forward.3
$region0: #{quantum_hybrid_forward.3}
  #allocation0 [shape = 'u32[]', space=smem, size = 0x4, offset = 0x4, fixed_abs, tag = 'smem constant byte address 0x4 - core index']
  #allocation1 [shape = 'u32[144,128]{1,0:T(1,128)}', space=vmem, size = 0x12000, scoped, tag = 'internal scratch']
  %s0 = inlined_call_operand.vmem [shape: f32[2,64], index: 0, kind: input, shape index: {}]
  %s1 = inlined_call_operand.hbm [shape: bf16[64,2048], index: 1, kind: input, shape index: {}]
  %s2 = inlined_call_operand.hbm [shape: f32[1,2048], index: 2, kind: input, shape index: {}]
  %s3 = inlined_call_operand.vmem [shape: bf16[2048,128], index: 3, kind: input, shape index: {}]
  %s4 = inlined_call_operand.vmem [shape: f32[1,128], index: 4, kind: input, shape index: {}]
  %s5 = inlined_call_operand.vmem [shape: f32[128,6], index: 5, kind: input, shape index: {}]
  %s6 = inlined_call_operand.vmem [shape: f32[1,6], index: 6, kind: input, shape index: {}]
  %s7 = inlined_call_operand.vmem [shape: f32[128,128], index: 7, kind: input, shape index: {}]
  %s8 = inlined_call_operand.vmem [shape: f32[128,32], index: 8, kind: input, shape index: {}]
  %s9 = inlined_call_operand.hbm [shape: f32[1,32], index: 9, kind: input, shape index: {}]
  %s10 = inlined_call_operand.vmem [shape: f32[32,128], index: 10, kind: input, shape index: {}]
  %s11 = inlined_call_operand.hbm [shape: f32[1,128], index: 11, kind: input, shape index: {}]
  %s12 = inlined_call_operand.hbm [shape: f32[2,128], index: 12, kind: output, shape index: {}]
  %s13 = sld [smem:[#allocation0]]
  $region74: #{quantum_hybrid_forward.3} parent=0
    _
  %s15 = ssub.s32 1, %s13
  %s16 = scalar_select 0, %s15, %s13
  $region1: #{quantum_hybrid_forward.3} parent=0
    #allocation2 [shape = 'u8[262144]{0}', space=vmem, size = 0x40000, scoped, tag = 'input window, operand 1, single buffered']
    #allocation3 [shape = 's32[1]{0}', space=sflag, size = 0x4, scoped, tag = 'scoped memory for quantum_hybrid_forward.3']
    #allocation4 [shape = 's32[1]{0}', space=sflag, size = 0x4, scoped, tag = 'scoped memory for quantum_hybrid_forward.3']
    #allocation5 [shape = 'u8[8192]{0}', space=vmem, size = 0x2000, scoped, tag = 'input window, operand 2, single buffered']
    #allocation6 [shape = 's32[1]{0}', space=sflag, size = 0x4, scoped, tag = 'scoped memory for quantum_hybrid_forward.3']
    #allocation7 [shape = 'u8[512]{0}', space=vmem, size = 0x400, scoped, tag = 'input window, operand 9, single buffered']
    #allocation8 [shape = 'u8[512]{0}', space=vmem, size = 0x400, scoped, tag = 'input window, operand 11, single buffered']
    #allocation9 [shape = 's32[1]{0}', space=sflag, size = 0x4, scoped, tag = 'scoped memory for quantum_hybrid_forward.3']
    #allocation10 [shape = 'u8[1024]{0}', space=vmem, size = 0x400, scoped, tag = 'output window, operand 0, single buffered']
    %17 = vsyncpa [#allocation3], 0
    %18 = vsyncpa [#allocation6], 0
    %19 = vsyncpa [#allocation9], 0
    %20 = vsyncpa [#allocation4], 0
    // Predicated region
    $region2: #{quantum_hybrid_forward.3} parent=1 // pred_check
      _
    $region3: #{quantum_hybrid_forward.3} parent=1 // pred_check_branch
      %22 = sbr.rel (0) target = $region5
    $region4: #{quantum_hybrid_forward.3} parent=1 // pred_region
      _
    $region5: #{quantum_hybrid_forward.3} parent=1 // pred_fallthru
      _
    // Predicated region
    $region6: #{quantum_hybrid_forward.3} parent=1 // pred_check
      _
    $region7: #{quantum_hybrid_forward.3} parent=1 // pred_check_branch
      %24 = sbr.rel (0) target = $region9
    $region8: #{quantum_hybrid_forward.3} parent=1 // pred_region
      %s26 = ssub.s32 8192, 8192
      %27 = vsyncadd [#allocation3], %s26
      %s28 = sshll.u32 [#allocation2], 4
      %s29 = int_to_ptr.vmem [resolvable:$true] %s28
      %34 = dma.hbm_to_vmem [thread:$0]  %s1, 8192, %s29, [#allocation3], 1024, 1024, 64
    $region9: #{quantum_hybrid_forward.3} parent=1 // pred_fallthru
      _
    // Predicated region
    $region10: #{quantum_hybrid_forward.3} parent=1 // pred_check
      _
    $region11: #{quantum_hybrid_forward.3} parent=1 // pred_check_branch
      %36 = sbr.rel (0) target = $region13
    $region12: #{quantum_hybrid_forward.3} parent=1 // pred_region
      %s38 = ssub.s32 256, 256
      %39 = vsyncadd [#allocation6], %s38
      %s41 = sshll.u32 [#allocation5], 4
      %s42 = int_to_ptr.vmem [resolvable:$true] %s41
      %44 = dma.hbm_to_vmem [thread:$0]  %s2, 256, %s42, [#allocation6]
    $region13: #{quantum_hybrid_forward.3} parent=1 // pred_fallthru
      _
    // Predicated region
    $region14: #{quantum_hybrid_forward.3} parent=1 // pred_check
      _
    $region15: #{quantum_hybrid_forward.3} parent=1 // pred_check_branch
      %46 = sbr.rel (0) target = $region17
    $region16: #{quantum_hybrid_forward.3} parent=1 // pred_region
      _
    $region17: #{quantum_hybrid_forward.3} parent=1 // pred_fallthru
      _
    // Predicated region
    $region18: #{quantum_hybrid_forward.3} parent=1 // pred_check
      _
    $region19: #{quantum_hybrid_forward.3} parent=1 // pred_check_branch
      %48 = sbr.rel (0) target = $region21
    $region20: #{quantum_hybrid_forward.3} parent=1 // pred_region
      _
    $region21: #{quantum_hybrid_forward.3} parent=1 // pred_fallthru
      _
    // Predicated region
    $region22: #{quantum_hybrid_forward.3} parent=1 // pred_check
      _
    $region23: #{quantum_hybrid_forward.3} parent=1 // pred_check_branch
      %50 = sbr.rel (0) target = $region25
    $region24: #{quantum_hybrid_forward.3} parent=1 // pred_region
      _
    $region25: #{quantum_hybrid_forward.3} parent=1 // pred_fallthru
      _
    // Predicated region
    $region26: #{quantum_hybrid_forward.3} parent=1 // pred_check
      _
    $region27: #{quantum_hybrid_forward.3} parent=1 // pred_check_branch
      %52 = sbr.rel (0) target = $region29
    $region28: #{quantum_hybrid_forward.3} parent=1 // pred_region
      _
    $region29: #{quantum_hybrid_forward.3} parent=1 // pred_fallthru
      _
    // Predicated region
    $region30: #{quantum_hybrid_forward.3} parent=1 // pred_check
      _
    $region31: #{quantum_hybrid_forward.3} parent=1 // pred_check_branch
      %54 = sbr.rel (0) target = $region33
    $region32: #{quantum_hybrid_forward.3} parent=1 // pred_region
      _
    $region33: #{quantum_hybrid_forward.3} parent=1 // pred_fallthru
      _
    // Predicated region
    $region34: #{quantum_hybrid_forward.3} parent=1 // pred_check
      _
    $region35: #{quantum_hybrid_forward.3} parent=1 // pred_check_branch
      %56 = sbr.rel (0) target = $region37
    $region36: #{quantum_hybrid_forward.3} parent=1 // pred_region
      _
    $region37: #{quantum_hybrid_forward.3} parent=1 // pred_fallthru
      _
    // Predicated region
    $region38: #{quantum_hybrid_forward.3} parent=1 // pred_check
      _
    $region39: #{quantum_hybrid_forward.3} parent=1 // pred_check_branch
      %58 = sbr.rel (0) target = $region41
    $region40: #{quantum_hybrid_forward.3} parent=1 // pred_region
      %s60 = ssub.s32 16, 16
      %61 = vsyncadd [#allocation6], %s60
      %s63 = sshll.u32 [#allocation7], 4
      %s64 = int_to_ptr.vmem [resolvable:$true] %s63
      %66 = dma.hbm_to_vmem [thread:$0]  %s9, 16, %s64, [#allocation6]
    $region41: #{quantum_hybrid_forward.3} parent=1 // pred_fallthru
      _
    // Predicated region
    $region42: #{quantum_hybrid_forward.3} parent=1 // pred_check
      _
    $region43: #{quantum_hybrid_forward.3} parent=1 // pred_check_branch
      %68 = sbr.rel (0) target = $region45
    $region44: #{quantum_hybrid_forward.3} parent=1 // pred_region
      _
    $region45: #{quantum_hybrid_forward.3} parent=1 // pred_fallthru
      _
    // Predicated region
    $region46: #{quantum_hybrid_forward.3} parent=1 // pred_check
      _
    $region47: #{quantum_hybrid_forward.3} parent=1 // pred_check_branch
      %70 = sbr.rel (0) target = $region49
    $region48: #{quantum_hybrid_forward.3} parent=1 // pred_region
      %s72 = ssub.s32 16, 16
      %73 = vsyncadd [#allocation9], %s72
      %s75 = sshll.u32 [#allocation8], 4
      %s76 = int_to_ptr.vmem [resolvable:$true] %s75
      %78 = dma.hbm_to_vmem [thread:$0]  %s11, 16, %s76, [#allocation9]
    $region49: #{quantum_hybrid_forward.3} parent=1 // pred_fallthru
      _
    // Predicated region
    $region50: #{quantum_hybrid_forward.3} parent=1 // pred_check
      _
    $region51: #{quantum_hybrid_forward.3} parent=1 // pred_check_branch
      %80 = sbr.rel (0) target = $region53
    $region52: #{quantum_hybrid_forward.3} parent=1 // pred_region
      %81 = dma.done [#allocation3], 8192
    $region53: #{quantum_hybrid_forward.3} parent=1 // pred_fallthru
      _
    // Predicated region
    $region54: #{quantum_hybrid_forward.3} parent=1 // pred_check
      _
    $region55: #{quantum_hybrid_forward.3} parent=1 // pred_check_branch
      %83 = sbr.rel (0) target = $region57
    $region56: #{quantum_hybrid_forward.3} parent=1 // pred_region
      %84 = dma.done [#allocation6], 256
    $region57: #{quantum_hybrid_forward.3} parent=1 // pred_fallthru
      _
    // Predicated region
    $region58: #{quantum_hybrid_forward.3} parent=1 // pred_check
      _
    $region59: #{quantum_hybrid_forward.3} parent=1 // pred_check_branch
      %86 = sbr.rel (0) target = $region61
    $region60: #{quantum_hybrid_forward.3} parent=1 // pred_region
      %87 = dma.done [#allocation6], 16
    $region61: #{quantum_hybrid_forward.3} parent=1 // pred_fallthru
      _
    // Predicated region
    $region62: #{quantum_hybrid_forward.3} parent=1 // pred_check
      _
    $region63: #{quantum_hybrid_forward.3} parent=1 // pred_check_branch
      %89 = sbr.rel (0) target = $region65
    $region64: #{quantum_hybrid_forward.3} parent=1 // pred_region
      %90 = dma.done [#allocation9], 16
    $region65: #{quantum_hybrid_forward.3} parent=1 // pred_fallthru
      _
    %v92 = vld [vmem:[%s0] sm:$0x3]
    %v93 = vpack.c.bf16 %v92, %v92
    %v94 = vld [vmem:[#allocation2] sm:$0xff]
    %v95 = vld [vmem:[#allocation2 + $0x8] sm:$0xff]
    %v96 = vld [vmem:[#allocation2 + $0x10] sm:$0xff]
    %v97 = vld [vmem:[#allocation2 + $0x18] sm:$0xff]
    %v98 = vld [vmem:[#allocation2 + $0x20] sm:$0xff]
    %v99 = vld [vmem:[#allocation2 + $0x28] sm:$0xff]
    %v100 = vld [vmem:[#allocation2 + $0x30] sm:$0xff]
    %v101 = vld [vmem:[#allocation2 + $0x38] sm:$0xff]
    %v102 = vld [vmem:[#allocation2 + $0x40] sm:$0xff]
    %v103 = vld [vmem:[#allocation2 + $0x48] sm:$0xff]
    %v104 = vld [vmem:[#allocation2 + $0x50] sm:$0xff]
    %v105 = vld [vmem:[#allocation2 + $0x58] sm:$0xff]
    %v106 = vld [vmem:[#allocation2 + $0x60] sm:$0xff]
    %v107 = vld [vmem:[#allocation2 + $0x68] sm:$0xff]
    %v108 = vld [vmem:[#allocation2 + $0x70] sm:$0xff]
    %v109 = vld [vmem:[#allocation2 + $0x78] sm:$0xff]
    %v110 = vld [vmem:[#allocation2 + $0x80] sm:$0xff]
    %v111 = vld [vmem:[#allocation2 + $0x88] sm:$0xff]
    %v112 = vld [vmem:[#allocation2 + $0x90] sm:$0xff]
    %v113 = vld [vmem:[#allocation2 + $0x98] sm:$0xff]
    %v114 = vld [vmem:[#allocation2 + $0xa0] sm:$0xff]
    %v115 = vld [vmem:[#allocation2 + $0xa8] sm:$0xff]
    %v116 = vld [vmem:[#allocation2 + $0xb0] sm:$0xff]
    %v117 = vld [vmem:[#allocation2 + $0xb8] sm:$0xff]
    %v118 = vld [vmem:[#allocation2 + $0xc0] sm:$0xff]
    %v119 = vld [vmem:[#allocation2 + $0xc8] sm:$0xff]
    %v120 = vld [vmem:[#allocation2 + $0xd0] sm:$0xff]
    %v121 = vld [vmem:[#allocation2 + $0xd8] sm:$0xff]
    %v122 = vld [vmem:[#allocation2 + $0xe0] sm:$0xff]
    %v123 = vld [vmem:[#allocation2 + $0xe8] sm:$0xff]
    %v124 = vld [vmem:[#allocation2 + $0xf0] sm:$0xff]
    %v125 = vld [vmem:[#allocation2 + $0xf8] sm:$0xff]
    %v126 = vld [vmem:[#allocation2 + $0x100] sm:$0xff]
    %v127 = vld [vmem:[#allocation2 + $0x108] sm:$0xff]
    %v128 = vld [vmem:[#allocation2 + $0x110] sm:$0xff]
    %v129 = vld [vmem:[#allocation2 + $0x118] sm:$0xff]
    %v130 = vld [vmem:[#allocation2 + $0x120] sm:$0xff]
    %v131 = vld [vmem:[#allocation2 + $0x128] sm:$0xff]
    %v132 = vld [vmem:[#allocation2 + $0x130] sm:$0xff]
    %v133 = vld [vmem:[#allocation2 + $0x138] sm:$0xff]
    %v134 = vld [vmem:[#allocation2 + $0x140] sm:$0xff]
    %v135 = vld [vmem:[#allocation2 + $0x148] sm:$0xff]
    %v136 = vld [vmem:[#allocation2 + $0x150] sm:$0xff]
    %v137 = vld [vmem:[#allocation2 + $0x158] sm:$0xff]
    %v138 = vld [vmem:[#allocation2 + $0x160] sm:$0xff]
    %v139 = vld [vmem:[#allocation2 + $0x168] sm:$0xff]
    %v140 = vld [vmem:[#allocation2 + $0x170] sm:$0xff]
    %v141 = vld [vmem:[#allocation2 + $0x178] sm:$0xff]
    %v142 = vld [vmem:[#allocation2 + $0x180] sm:$0xff]
    %v143 = vld [vmem:[#allocation2 + $0x188] sm:$0xff]
    %v144 = vld [vmem:[#allocation2 + $0x190] sm:$0xff]
    %v145 = vld [vmem:[#allocation2 + $0x198] sm:$0xff]
    %v146 = vld [vmem:[#allocation2 + $0x1a0] sm:$0xff]
    %v147 = vld [vmem:[#allocation2 + $0x1a8] sm:$0xff]
    %v148 = vld [vmem:[#allocation2 + $0x1b0] sm:$0xff]
    %v149 = vld [vmem:[#allocation2 + $0x1b8] sm:$0xff]
    %v150 = vld [vmem:[#allocation2 + $0x1c0] sm:$0xff]
    %v151 = vld [vmem:[#allocation2 + $0x1c8] sm:$0xff]
    %v152 = vld [vmem:[#allocation2 + $0x1d0] sm:$0xff]
    %v153 = vld [vmem:[#allocation2 + $0x1d8] sm:$0xff]
    %v154 = vld [vmem:[#allocation2 + $0x1e0] sm:$0xff]
    %v155 = vld [vmem:[#allocation2 + $0x1e8] sm:$0xff]
    %v156 = vld [vmem:[#allocation2 + $0x1f0] sm:$0xff]
    %v157 = vld [vmem:[#allocation2 + $0x1f8] sm:$0xff]
    %v158 = vld [vmem:[#allocation5] sm:$0xff]
    %v159 = vld [vmem:[#allocation5 + $0x8] sm:$0xff]
    %v162 = vlaneseq
    %v163 = vshrl.u32 %v162, 7
    %v164 = vsub.s32 0, %v163
    %v165 = vrot.slane %v158, %v164
    %v166 = vlaneseq
    %v167 = vshrl.u32 %v166, 7
    %v168 = vsub.s32 1, %v167
    %v169 = vrot.slane %v158, %v168
    %v170 = vlaneseq
    %v171 = vshrl.u32 %v170, 7
    %v172 = vsub.s32 2, %v171
    %v173 = vrot.slane %v158, %v172
    %v174 = vlaneseq
    %v175 = vshrl.u32 %v174, 7
    %v176 = vsub.s32 3, %v175
    %v177 = vrot.slane %v158, %v176
    %v178 = vlaneseq
    %v179 = vshrl.u32 %v178, 7
    %v180 = vsub.s32 4, %v179
    %v181 = vrot.slane %v158, %v180
    %v182 = vlaneseq
    %v183 = vshrl.u32 %v182, 7
    %v184 = vsub.s32 5, %v183
    %v185 = vrot.slane %v158, %v184
    %v186 = vlaneseq
    %v187 = vshrl.u32 %v186, 7
    %v188 = vsub.s32 6, %v187
    %v189 = vrot.slane %v158, %v188
    %v190 = vlaneseq
    %v191 = vshrl.u32 %v190, 7
    %v192 = vsub.s32 7, %v191
    %v193 = vrot.slane %v158, %v192
    %v194 = vlaneseq
    %v195 = vshrl.u32 %v194, 7
    %v196 = vsub.s32 0, %v195
    %v197 = vrot.slane %v159, %v196
    %v198 = vlaneseq
    %v199 = vshrl.u32 %v198, 7
    %v200 = vsub.s32 1, %v199
    %v201 = vrot.slane %v159, %v200
    %v202 = vlaneseq
    %v203 = vshrl.u32 %v202, 7
    %v204 = vsub.s32 2, %v203
    %v205 = vrot.slane %v159, %v204
    %v206 = vlaneseq
    %v207 = vshrl.u32 %v206, 7
    %v208 = vsub.s32 3, %v207
    %v209 = vrot.slane %v159, %v208
    %v210 = vlaneseq
    %v211 = vshrl.u32 %v210, 7
    %v212 = vsub.s32 4, %v211
    %v213 = vrot.slane %v159, %v212
    %v214 = vlaneseq
    %v215 = vshrl.u32 %v214, 7
    %v216 = vsub.s32 5, %v215
    %v217 = vrot.slane %v159, %v216
    %v218 = vlaneseq
    %v219 = vshrl.u32 %v218, 7
    %v220 = vsub.s32 6, %v219
    %v221 = vrot.slane %v159, %v220
    %v222 = vlaneseq
    %v223 = vshrl.u32 %v222, 7
    %v224 = vsub.s32 7, %v223
    %v225 = vrot.slane %v159, %v224
    %v306 = vunpack.c.l.b16 %v94
    %v307 = vunpack.c.h.b16 %v94
    %v308 = vunpack.c.l.b16 %v95
    %v309 = vunpack.c.h.b16 %v95
    %v310 = vunpack.c.l.b16 %v96
    %v311 = vunpack.c.h.b16 %v96
    %v312 = vunpack.c.l.b16 %v97
    %v313 = vunpack.c.h.b16 %v97
    %v314 = vunpack.c.l.b16 %v98
    %v315 = vunpack.c.h.b16 %v98
    %v316 = vunpack.c.l.b16 %v99
    %v317 = vunpack.c.h.b16 %v99
    %v318 = vunpack.c.l.b16 %v100
    %v319 = vunpack.c.h.b16 %v100
    %v320 = vunpack.c.l.b16 %v101
    %v321 = vunpack.c.h.b16 %v101
    %v322 = vunpack.c.l.b16 %v102
    %v323 = vunpack.c.h.b16 %v102
    %v324 = vunpack.c.l.b16 %v103
    %v325 = vunpack.c.h.b16 %v103
    %v326 = vunpack.c.l.b16 %v104
    %v327 = vunpack.c.h.b16 %v104
    %v328 = vunpack.c.l.b16 %v105
    %v329 = vunpack.c.h.b16 %v105
    %v330 = vunpack.c.l.b16 %v106
    %v331 = vunpack.c.h.b16 %v106
    %v332 = vunpack.c.l.b16 %v107
    %v333 = vunpack.c.h.b16 %v107
    %v334 = vunpack.c.l.b16 %v108
    %v335 = vunpack.c.h.b16 %v108
    %v336 = vunpack.c.l.b16 %v109
    %v337 = vunpack.c.h.b16 %v109
    %v338 = vunpack.c.l.b16 %v110
    %v339 = vunpack.c.h.b16 %v110
    %v340 = vunpack.c.l.b16 %v111
    %v341 = vunpack.c.h.b16 %v111
    %v342 = vunpack.c.l.b16 %v112
    %v343 = vunpack.c.h.b16 %v112
    %v344 = vunpack.c.l.b16 %v113
    %v345 = vunpack.c.h.b16 %v113
    %v346 = vunpack.c.l.b16 %v114
    %v347 = vunpack.c.h.b16 %v114
    %v348 = vunpack.c.l.b16 %v115
    %v349 = vunpack.c.h.b16 %v115
    %v350 = vunpack.c.l.b16 %v116
    %v351 = vunpack.c.h.b16 %v116
    %v352 = vunpack.c.l.b16 %v117
    %v353 = vunpack.c.h.b16 %v117
    %v354 = vunpack.c.l.b16 %v118
    %v355 = vunpack.c.h.b16 %v118
    %v356 = vunpack.c.l.b16 %v119
    %v357 = vunpack.c.h.b16 %v119
    %v358 = vunpack.c.l.b16 %v120
    %v359 = vunpack.c.h.b16 %v120
    %v360 = vunpack.c.l.b16 %v121
    %v361 = vunpack.c.h.b16 %v121
    %v362 = vunpack.c.l.b16 %v122
    %v363 = vunpack.c.h.b16 %v122
    %v364 = vunpack.c.l.b16 %v123
    %v365 = vunpack.c.h.b16 %v123
    %v366 = vunpack.c.l.b16 %v124
    %v367 = vunpack.c.h.b16 %v124
    %v368 = vunpack.c.l.b16 %v125
    %v369 = vunpack.c.h.b16 %v125
    %v370 = vunpack.c.l.b16 %v126
    %v371 = vunpack.c.h.b16 %v126
    %v372 = vunpack.c.l.b16 %v127
    %v373 = vunpack.c.h.b16 %v127
    %v374 = vunpack.c.l.b16 %v128
    %v375 = vunpack.c.h.b16 %v128
    %v376 = vunpack.c.l.b16 %v129
    %v377 = vunpack.c.h.b16 %v129
    %v378 = vunpack.c.l.b16 %v130
    %v379 = vunpack.c.h.b16 %v130
    %v380 = vunpack.c.l.b16 %v131
    %v381 = vunpack.c.h.b16 %v131
    %v382 = vunpack.c.l.b16 %v132
    %v383 = vunpack.c.h.b16 %v132
    %v384 = vunpack.c.l.b16 %v133
    %v385 = vunpack.c.h.b16 %v133
    %v386 = vunpack.c.l.b16 %v134
    %v387 = vunpack.c.h.b16 %v134
    %v388 = vunpack.c.l.b16 %v135
    %v389 = vunpack.c.h.b16 %v135
    %v390 = vunpack.c.l.b16 %v136
    %v391 = vunpack.c.h.b16 %v136
    %v392 = vunpack.c.l.b16 %v137
    %v393 = vunpack.c.h.b16 %v137
    %v394 = vunpack.c.l.b16 %v138
    %v395 = vunpack.c.h.b16 %v138
    %v396 = vunpack.c.l.b16 %v139
    %v397 = vunpack.c.h.b16 %v139
    %v398 = vunpack.c.l.b16 %v140
    %v399 = vunpack.c.h.b16 %v140
    %v400 = vunpack.c.l.b16 %v141
    %v401 = vunpack.c.h.b16 %v141
    %v402 = vunpack.c.l.b16 %v142
    %v403 = vunpack.c.h.b16 %v142
    %v404 = vunpack.c.l.b16 %v143
    %v405 = vunpack.c.h.b16 %v143
    %v406 = vunpack.c.l.b16 %v144
    %v407 = vunpack.c.h.b16 %v144
    %v408 = vunpack.c.l.b16 %v145
    %v409 = vunpack.c.h.b16 %v145
    %v410 = vunpack.c.l.b16 %v146
    %v411 = vunpack.c.h.b16 %v146
    %v412 = vunpack.c.l.b16 %v147
    %v413 = vunpack.c.h.b16 %v147
    %v414 = vunpack.c.l.b16 %v148
    %v415 = vunpack.c.h.b16 %v148
    %v416 = vunpack.c.l.b16 %v149
    %v417 = vunpack.c.h.b16 %v149
    %v418 = vunpack.c.l.b16 %v150
    %v419 = vunpack.c.h.b16 %v150
    %v420 = vunpack.c.l.b16 %v151
    %v421 = vunpack.c.h.b16 %v151
    %v422 = vunpack.c.l.b16 %v152
    %v423 = vunpack.c.h.b16 %v152
    %v424 = vunpack.c.l.b16 %v153
    %v425 = vunpack.c.h.b16 %v153
    %v426 = vunpack.c.l.b16 %v154
    %v427 = vunpack.c.h.b16 %v154
    %v428 = vunpack.c.l.b16 %v155
    %v429 = vunpack.c.h.b16 %v155
    %v430 = vunpack.c.l.b16 %v156
    %v431 = vunpack.c.h.b16 %v156
    %v432 = vunpack.c.l.b16 %v157
    %v433 = vunpack.c.h.b16 %v157
    %v434 = vpack.c.b16 %v322, %v306
    %v435 = vpack.c.b16 %v323, %v307
    %v436 = vpack.c.b16 %v324, %v308
    %v437 = vpack.c.b16 %v325, %v309
    %v438 = vpack.c.b16 %v326, %v310
    %v439 = vpack.c.b16 %v327, %v311
    %v440 = vpack.c.b16 %v328, %v312
    %v441 = vpack.c.b16 %v329, %v313
    %v442 = vpack.c.b16 %v330, %v314
    %v443 = vpack.c.b16 %v331, %v315
    %v444 = vpack.c.b16 %v332, %v316
    %v445 = vpack.c.b16 %v333, %v317
    %v446 = vpack.c.b16 %v334, %v318
    %v447 = vpack.c.b16 %v335, %v319
    %v448 = vpack.c.b16 %v336, %v320
    %v449 = vpack.c.b16 %v337, %v321
    %v450 = vpack.c.b16 %v354, %v338
    %v451 = vpack.c.b16 %v355, %v339
    %v452 = vpack.c.b16 %v356, %v340
    %v453 = vpack.c.b16 %v357, %v341
    %v454 = vpack.c.b16 %v358, %v342
    %v455 = vpack.c.b16 %v359, %v343
    %v456 = vpack.c.b16 %v360, %v344
    %v457 = vpack.c.b16 %v361, %v345
    %v458 = vpack.c.b16 %v362, %v346
    %v459 = vpack.c.b16 %v363, %v347
    %v460 = vpack.c.b16 %v364, %v348
    %v461 = vpack.c.b16 %v365, %v349
    %v462 = vpack.c.b16 %v366, %v350
    %v463 = vpack.c.b16 %v367, %v351
    %v464 = vpack.c.b16 %v368, %v352
    %v465 = vpack.c.b16 %v369, %v353
    %v466 = vpack.c.b16 %v386, %v370
    %v467 = vpack.c.b16 %v387, %v371
    %v468 = vpack.c.b16 %v388, %v372
    %v469 = vpack.c.b16 %v389, %v373
    %v470 = vpack.c.b16 %v390, %v374
    %v471 = vpack.c.b16 %v391, %v375
    %v472 = vpack.c.b16 %v392, %v376
    %v473 = vpack.c.b16 %v393, %v377
    %v474 = vpack.c.b16 %v394, %v378
    %v475 = vpack.c.b16 %v395, %v379
    %v476 = vpack.c.b16 %v396, %v380
    %v477 = vpack.c.b16 %v397, %v381
    %v478 = vpack.c.b16 %v398, %v382
    %v479 = vpack.c.b16 %v399, %v383
    %v480 = vpack.c.b16 %v400, %v384
    %v481 = vpack.c.b16 %v401, %v385
    %v482 = vpack.c.b16 %v418, %v402
    %v483 = vpack.c.b16 %v419, %v403
    %v484 = vpack.c.b16 %v420, %v404
    %v485 = vpack.c.b16 %v421, %v405
    %v486 = vpack.c.b16 %v422, %v406
    %v487 = vpack.c.b16 %v423, %v407
    %v488 = vpack.c.b16 %v424, %v408
    %v489 = vpack.c.b16 %v425, %v409
    %v490 = vpack.c.b16 %v426, %v410
    %v491 = vpack.c.b16 %v427, %v411
    %v492 = vpack.c.b16 %v428, %v412
    %v493 = vpack.c.b16 %v429, %v413
    %v494 = vpack.c.b16 %v430, %v414
    %v495 = vpack.c.b16 %v431, %v415
    %v496 = vpack.c.b16 %v432, %v416
    %v497 = vpack.c.b16 %v433, %v417
    %vm562 = vcmask 523264
    %v564 = vsel %vm562, %v93, 0
    %566 = vmatprep.subr.bf16.mxu0 %v435
    %567 = vmatpush1.bf16.msra.mxu0 %v434
    %568 = vmatprep.subr.bf16.mxu0 %v451
    %569 = vmatpush1.bf16.msra.mxu0 %v450
    %570 = vmatprep.subr.bf16.mxu0 %v467
    %571 = vmatpush1.bf16.msra.mxu0 %v466
    %572 = vmatprep.subr.bf16.mxu0 %v483
    %573 = vmatpush1.bf16.msra.mxu0 %v482
    %574 = vmatprep.subr.bf16.mxu0 0
    %575 = vmatpush1.bf16.msra.mxu0 0
    %576 = vmatprep.subr.bf16.mxu0 0
    %577 = vmatpush1.bf16.msra.mxu0 0
    %578 = vmatprep.subr.bf16.mxu0 0
    %579 = vmatpush1.bf16.msra.mxu0 0
    %580 = vmatprep.subr.bf16.mxu0 0
    %581 = vmatpush1.bf16.msra.mxu0 0
    %582 = vmatprep.subr.bf16.mxu0 0
    %583 = vmatpush1.bf16.msra.mxu0 0
    %584 = vmatprep.subr.bf16.mxu0 0
    %585 = vmatpush1.bf16.msra.mxu0 0
    %586 = vmatprep.subr.bf16.mxu0 0
    %587 = vmatpush1.bf16.msra.mxu0 0
    %588 = vmatprep.subr.bf16.mxu0 0
    %589 = vmatpush1.bf16.msra.mxu0 0
    %590 = vmatprep.subr.bf16.mxu0 0
    %591 = vmatpush1.bf16.msra.mxu0 0
    %592 = vmatprep.subr.bf16.mxu0 0
    %593 = vmatpush1.bf16.msra.mxu0 0
    %594 = vmatprep.subr.bf16.mxu0 0
    %595 = vmatpush1.bf16.msra.mxu0 0
    %596 = vmatprep.subr.bf16.mxu0 0
    %597 = vmatpush1.bf16.msra.mxu0 0
    %598 = vmatprep.mubr.bf16.mxu0 0
    %599 = vmatmul.mubr.bf16.gmra.mrb[0].mxu0 %v564
    %v600 = vpop.f32.mrb[0].mxu0
    %v601 = vadd.f32 %v165, %v600
    %v602 = vpop.f32.mrb[0].mxu0
    %v603 = vadd.f32 %v169, %v602
    %v604 = vpop.f32.mrb[0].mxu0
    %v605 = vpop.f32.mrb[0].mxu0
    %606 = vdwg.mxu0
    %607 = vmatprep.subr.bf16.mxu0 %v437
    %608 = vmatpush1.bf16.msra.mxu0 %v436
    %609 = vmatprep.subr.bf16.mxu0 %v453
    %610 = vmatpush1.bf16.msra.mxu0 %v452
    %611 = vmatprep.subr.bf16.mxu0 %v469
    %612 = vmatpush1.bf16.msra.mxu0 %v468
    %613 = vmatprep.subr.bf16.mxu0 %v485
    %614 = vmatpush1.bf16.msra.mxu0 %v484
    %615 = vmatprep.subr.bf16.mxu0 0
    %616 = vmatpush1.bf16.msra.mxu0 0
    %617 = vmatprep.subr.bf16.mxu0 0
    %618 = vmatpush1.bf16.msra.mxu0 0
    %619 = vmatprep.subr.bf16.mxu0 0
    %620 = vmatpush1.bf16.msra.mxu0 0
    %621 = vmatprep.subr.bf16.mxu0 0
    %622 = vmatpush1.bf16.msra.mxu0 0
    %623 = vmatprep.subr.bf16.mxu0 0
    %624 = vmatpush1.bf16.msra.mxu0 0
    %625 = vmatprep.subr.bf16.mxu0 0
    %626 = vmatpush1.bf16.msra.mxu0 0
    %627 = vmatprep.subr.bf16.mxu0 0
    %628 = vmatpush1.bf16.msra.mxu0 0
    %629 = vmatprep.subr.bf16.mxu0 0
    %630 = vmatpush1.bf16.msra.mxu0 0
    %631 = vmatprep.subr.bf16.mxu0 0
    %632 = vmatpush1.bf16.msra.mxu0 0
    %633 = vmatprep.subr.bf16.mxu0 0
    %634 = vmatpush1.bf16.msra.mxu0 0
    %635 = vmatprep.subr.bf16.mxu0 0
    %636 = vmatpush1.bf16.msra.mxu0 0
    %637 = vmatprep.subr.bf16.mxu0 0
    %638 = vmatpush1.bf16.msra.mxu0 0
    %639 = vmatprep.mubr.bf16.mxu0 0
    %640 = vmatmul.mubr.bf16.gmra.mrb[0].mxu0 %v564
    %v641 = vpop.f32.mrb[0].mxu0
    %v642 = vadd.f32 %v173, %v641
    %v643 = vpop.f32.mrb[0].mxu0
    %v644 = vadd.f32 %v177, %v643
    %v645 = vpop.f32.mrb[0].mxu0
    %v646 = vpop.f32.mrb[0].mxu0
    %647 = vdwg.mxu0
    %648 = vmatprep.subr.bf16.mxu0 %v439
    %649 = vmatpush1.bf16.msra.mxu0 %v438
    %650 = vmatprep.subr.bf16.mxu0 %v455
    %651 = vmatpush1.bf16.msra.mxu0 %v454
    %652 = vmatprep.subr.bf16.mxu0 %v471
    %653 = vmatpush1.bf16.msra.mxu0 %v470
    %654 = vmatprep.subr.bf16.mxu0 %v487
    %655 = vmatpush1.bf16.msra.mxu0 %v486
    %656 = vmatprep.subr.bf16.mxu0 0
    %657 = vmatpush1.bf16.msra.mxu0 0
    %658 = vmatprep.subr.bf16.mxu0 0
    %659 = vmatpush1.bf16.msra.mxu0 0
    %660 = vmatprep.subr.bf16.mxu0 0
    %661 = vmatpush1.bf16.msra.mxu0 0
    %662 = vmatprep.subr.bf16.mxu0 0
    %663 = vmatpush1.bf16.msra.mxu0 0
    %664 = vmatprep.subr.bf16.mxu0 0
    %665 = vmatpush1.bf16.msra.mxu0 0
    %666 = vmatprep.subr.bf16.mxu0 0
    %667 = vmatpush1.bf16.msra.mxu0 0
    %668 = vmatprep.subr.bf16.mxu0 0
    %669 = vmatpush1.bf16.msra.mxu0 0
    %670 = vmatprep.subr.bf16.mxu0 0
    %671 = vmatpush1.bf16.msra.mxu0 0
    %672 = vmatprep.subr.bf16.mxu0 0
    %673 = vmatpush1.bf16.msra.mxu0 0
    %674 = vmatprep.subr.bf16.mxu0 0
    %675 = vmatpush1.bf16.msra.mxu0 0
    %676 = vmatprep.subr.bf16.mxu0 0
    %677 = vmatpush1.bf16.msra.mxu0 0
    %678 = vmatprep.subr.bf16.mxu0 0
    %679 = vmatpush1.bf16.msra.mxu0 0
    %680 = vmatprep.mubr.bf16.mxu0 0
    %681 = vmatmul.mubr.bf16.gmra.mrb[0].mxu0 %v564
    %v682 = vpop.f32.mrb[0].mxu0
    %v683 = vadd.f32 %v181, %v682
    %v684 = vpop.f32.mrb[0].mxu0
    %v685 = vadd.f32 %v185, %v684
    %v686 = vpop.f32.mrb[0].mxu0
    %v687 = vpop.f32.mrb[0].mxu0
    %688 = vdwg.mxu0
    %689 = vmatprep.subr.bf16.mxu0 %v441
    %690 = vmatpush1.bf16.msra.mxu0 %v440
    %691 = vmatprep.subr.bf16.mxu0 %v457
    %692 = vmatpush1.bf16.msra.mxu0 %v456
    %693 = vmatprep.subr.bf16.mxu0 %v473
    %694 = vmatpush1.bf16.msra.mxu0 %v472
    %695 = vmatprep.subr.bf16.mxu0 %v489
    %696 = vmatpush1.bf16.msra.mxu0 %v488
    %697 = vmatprep.subr.bf16.mxu0 0
    %698 = vmatpush1.bf16.msra.mxu0 0
    %699 = vmatprep.subr.bf16.mxu0 0
    %700 = vmatpush1.bf16.msra.mxu0 0
    %701 = vmatprep.subr.bf16.mxu0 0
    %702 = vmatpush1.bf16.msra.mxu0 0
    %703 = vmatprep.subr.bf16.mxu0 0
    %704 = vmatpush1.bf16.msra.mxu0 0
    %705 = vmatprep.subr.bf16.mxu0 0
    %706 = vmatpush1.bf16.msra.mxu0 0
    %707 = vmatprep.subr.bf16.mxu0 0
    %708 = vmatpush1.bf16.msra.mxu0 0
    %709 = vmatprep.subr.bf16.mxu0 0
    %710 = vmatpush1.bf16.msra.mxu0 0
    %711 = vmatprep.subr.bf16.mxu0 0
    %712 = vmatpush1.bf16.msra.mxu0 0
    %713 = vmatprep.subr.bf16.mxu0 0
    %714 = vmatpush1.bf16.msra.mxu0 0
    %715 = vmatprep.subr.bf16.mxu0 0
    %716 = vmatpush1.bf16.msra.mxu0 0
    %717 = vmatprep.subr.bf16.mxu0 0
    %718 = vmatpush1.bf16.msra.mxu0 0
    %719 = vmatprep.subr.bf16.mxu0 0
    %720 = vmatpush1.bf16.msra.mxu0 0
    %721 = vmatprep.mubr.bf16.mxu0 0
    %722 = vmatmul.mubr.bf16.gmra.mrb[0].mxu0 %v564
    %v723 = vpop.f32.mrb[0].mxu0
    %v724 = vadd.f32 %v189, %v723
    %v725 = vpop.f32.mrb[0].mxu0
    %v726 = vadd.f32 %v193, %v725
    %v727 = vpop.f32.mrb[0].mxu0
    %v728 = vpop.f32.mrb[0].mxu0
    %729 = vdwg.mxu0
    %730 = vmatprep.subr.bf16.mxu0 %v443
    %731 = vmatpush1.bf16.msra.mxu0 %v442
    %732 = vmatprep.subr.bf16.mxu0 %v459
    %733 = vmatpush1.bf16.msra.mxu0 %v458
    %734 = vmatprep.subr.bf16.mxu0 %v475
    %735 = vmatpush1.bf16.msra.mxu0 %v474
    %736 = vmatprep.subr.bf16.mxu0 %v491
    %737 = vmatpush1.bf16.msra.mxu0 %v490
    %738 = vmatprep.subr.bf16.mxu0 0
    %739 = vmatpush1.bf16.msra.mxu0 0
    %740 = vmatprep.subr.bf16.mxu0 0
    %741 = vmatpush1.bf16.msra.mxu0 0
    %742 = vmatprep.subr.bf16.mxu0 0
    %743 = vmatpush1.bf16.msra.mxu0 0
    %744 = vmatprep.subr.bf16.mxu0 0
    %745 = vmatpush1.bf16.msra.mxu0 0
    %746 = vmatprep.subr.bf16.mxu0 0
    %747 = vmatpush1.bf16.msra.mxu0 0
    %748 = vmatprep.subr.bf16.mxu0 0
    %749 = vmatpush1.bf16.msra.mxu0 0
    %750 = vmatprep.subr.bf16.mxu0 0
    %751 = vmatpush1.bf16.msra.mxu0 0
    %752 = vmatprep.subr.bf16.mxu0 0
    %753 = vmatpush1.bf16.msra.mxu0 0
    %754 = vmatprep.subr.bf16.mxu0 0
    %755 = vmatpush1.bf16.msra.mxu0 0
    %756 = vmatprep.subr.bf16.mxu0 0
    %757 = vmatpush1.bf16.msra.mxu0 0
    %758 = vmatprep.subr.bf16.mxu0 0
    %759 = vmatpush1.bf16.msra.mxu0 0
    %760 = vmatprep.subr.bf16.mxu0 0
    %761 = vmatpush1.bf16.msra.mxu0 0
    %762 = vmatprep.mubr.bf16.mxu0 0
    %763 = vmatmul.mubr.bf16.gmra.mrb[0].mxu0 %v564
    %v764 = vpop.f32.mrb[0].mxu0
    %v765 = vadd.f32 %v197, %v764
    %v766 = vpop.f32.mrb[0].mxu0
    %v767 = vadd.f32 %v201, %v766
    %v768 = vpop.f32.mrb[0].mxu0
    %v769 = vpop.f32.mrb[0].mxu0
    %770 = vdwg.mxu0
    %771 = vmatprep.subr.bf16.mxu0 %v445
    %772 = vmatpush1.bf16.msra.mxu0 %v444
    %773 = vmatprep.subr.bf16.mxu0 %v461
    %774 = vmatpush1.bf16.msra.mxu0 %v460
    %775 = vmatprep.subr.bf16.mxu0 %v477
    %776 = vmatpush1.bf16.msra.mxu0 %v476
    %777 = vmatprep.subr.bf16.mxu0 %v493
    %778 = vmatpush1.bf16.msra.mxu0 %v492
    %779 = vmatprep.subr.bf16.mxu0 0
    %780 = vmatpush1.bf16.msra.mxu0 0
    %781 = vmatprep.subr.bf16.mxu0 0
    %782 = vmatpush1.bf16.msra.mxu0 0
    %783 = vmatprep.subr.bf16.mxu0 0
    %784 = vmatpush1.bf16.msra.mxu0 0
    %785 = vmatprep.subr.bf16.mxu0 0
    %786 = vmatpush1.bf16.msra.mxu0 0
    %787 = vmatprep.subr.bf16.mxu0 0
    %788 = vmatpush1.bf16.msra.mxu0 0
    %789 = vmatprep.subr.bf16.mxu0 0
    %790 = vmatpush1.bf16.msra.mxu0 0
    %791 = vmatprep.subr.bf16.mxu0 0
    %792 = vmatpush1.bf16.msra.mxu0 0
    %793 = vmatprep.subr.bf16.mxu0 0
    %794 = vmatpush1.bf16.msra.mxu0 0
    %795 = vmatprep.subr.bf16.mxu0 0
    %796 = vmatpush1.bf16.msra.mxu0 0
    %797 = vmatprep.subr.bf16.mxu0 0
    %798 = vmatpush1.bf16.msra.mxu0 0
    %799 = vmatprep.subr.bf16.mxu0 0
    %800 = vmatpush1.bf16.msra.mxu0 0
    %801 = vmatprep.subr.bf16.mxu0 0
    %802 = vmatpush1.bf16.msra.mxu0 0
    %803 = vmatprep.mubr.bf16.mxu0 0
    %804 = vmatmul.mubr.bf16.gmra.mrb[0].mxu0 %v564
    %v805 = vpop.f32.mrb[0].mxu0
    %v806 = vadd.f32 %v205, %v805
    %v807 = vpop.f32.mrb[0].mxu0
    %v808 = vadd.f32 %v209, %v807
    %v809 = vpop.f32.mrb[0].mxu0
    %v810 = vpop.f32.mrb[0].mxu0
    %811 = vdwg.mxu0
    %812 = vmatprep.subr.bf16.mxu0 %v447
    %813 = vmatpush1.bf16.msra.mxu0 %v446
    %814 = vmatprep.subr.bf16.mxu0 %v463
    %815 = vmatpush1.bf16.msra.mxu0 %v462
    %816 = vmatprep.subr.bf16.mxu0 %v479
    %817 = vmatpush1.bf16.msra.mxu0 %v478
    %818 = vmatprep.subr.bf16.mxu0 %v495
    %819 = vmatpush1.bf16.msra.mxu0 %v494
    %820 = vmatprep.subr.bf16.mxu0 0
    %821 = vmatpush1.bf16.msra.mxu0 0
    %822 = vmatprep.subr.bf16.mxu0 0
    %823 = vmatpush1.bf16.msra.mxu0 0
    %824 = vmatprep.subr.bf16.mxu0 0
    %825 = vmatpush1.bf16.msra.mxu0 0
    %826 = vmatprep.subr.bf16.mxu0 0
    %827 = vmatpush1.bf16.msra.mxu0 0
    %828 = vmatprep.subr.bf16.mxu0 0
    %829 = vmatpush1.bf16.msra.mxu0 0
    %830 = vmatprep.subr.bf16.mxu0 0
    %831 = vmatpush1.bf16.msra.mxu0 0
    %832 = vmatprep.subr.bf16.mxu0 0
    %833 = vmatpush1.bf16.msra.mxu0 0
    %834 = vmatprep.subr.bf16.mxu0 0
    %835 = vmatpush1.bf16.msra.mxu0 0
    %836 = vmatprep.subr.bf16.mxu0 0
    %837 = vmatpush1.bf16.msra.mxu0 0
    %838 = vmatprep.subr.bf16.mxu0 0
    %839 = vmatpush1.bf16.msra.mxu0 0
    %840 = vmatprep.subr.bf16.mxu0 0
    %841 = vmatpush1.bf16.msra.mxu0 0
    %842 = vmatprep.subr.bf16.mxu0 0
    %843 = vmatpush1.bf16.msra.mxu0 0
    %844 = vmatprep.mubr.bf16.mxu0 0
    %845 = vmatmul.mubr.bf16.gmra.mrb[0].mxu0 %v564
    %v846 = vpop.f32.mrb[0].mxu0
    %v847 = vadd.f32 %v213, %v846
    %v848 = vpop.f32.mrb[0].mxu0
    %v849 = vadd.f32 %v217, %v848
    %v850 = vpop.f32.mrb[0].mxu0
    %v851 = vpop.f32.mrb[0].mxu0
    %852 = vdwg.mxu0
    %853 = vmatprep.subr.bf16.mxu0 %v449
    %854 = vmatpush1.bf16.msra.mxu0 %v448
    %855 = vmatprep.subr.bf16.mxu0 %v465
    %856 = vmatpush1.bf16.msra.mxu0 %v464
    %857 = vmatprep.subr.bf16.mxu0 %v481
    %858 = vmatpush1.bf16.msra.mxu0 %v480
    %859 = vmatprep.subr.bf16.mxu0 %v497
    %860 = vmatpush1.bf16.msra.mxu0 %v496
    %861 = vmatprep.subr.bf16.mxu0 0
    %862 = vmatpush1.bf16.msra.mxu0 0
    %863 = vmatprep.subr.bf16.mxu0 0
    %864 = vmatpush1.bf16.msra.mxu0 0
    %865 = vmatprep.subr.bf16.mxu0 0
    %866 = vmatpush1.bf16.msra.mxu0 0
    %867 = vmatprep.subr.bf16.mxu0 0
    %868 = vmatpush1.bf16.msra.mxu0 0
    %869 = vmatprep.subr.bf16.mxu0 0
    %870 = vmatpush1.bf16.msra.mxu0 0
    %871 = vmatprep.subr.bf16.mxu0 0
    %872 = vmatpush1.bf16.msra.mxu0 0
    %873 = vmatprep.subr.bf16.mxu0 0
    %874 = vmatpush1.bf16.msra.mxu0 0
    %875 = vmatprep.subr.bf16.mxu0 0
    %876 = vmatpush1.bf16.msra.mxu0 0
    %877 = vmatprep.subr.bf16.mxu0 0
    %878 = vmatpush1.bf16.msra.mxu0 0
    %879 = vmatprep.subr.bf16.mxu0 0
    %880 = vmatpush1.bf16.msra.mxu0 0
    %881 = vmatprep.subr.bf16.mxu0 0
    %882 = vmatpush1.bf16.msra.mxu0 0
    %883 = vmatprep.subr.bf16.mxu0 0
    %884 = vmatpush1.bf16.msra.mxu0 0
    %885 = vmatprep.mubr.bf16.mxu0 0
    %886 = vmatmul.mubr.bf16.gmra.mrb[0].mxu0 %v564
    %v887 = vpop.f32.mrb[0].mxu0
    %v888 = vadd.f32 %v221, %v887
    %v889 = vpop.f32.mrb[0].mxu0
    %v890 = vadd.f32 %v225, %v889
    %v891 = vpop.f32.mrb[0].mxu0
    %v892 = vpop.f32.mrb[0].mxu0
    %893 = vdwg.mxu0
    %v894 = vmax.f32 %v601, 0.0
    %v895 = vmax.f32 %v603, 0.0
    %v896 = vmax.f32 %v642, 0.0
    %v897 = vmax.f32 %v644, 0.0
    %v898 = vmax.f32 %v683, 0.0
    %v899 = vmax.f32 %v685, 0.0
    %v900 = vmax.f32 %v724, 0.0
    %v901 = vmax.f32 %v726, 0.0
    %v902 = vmax.f32 %v765, 0.0
    %v903 = vmax.f32 %v767, 0.0
    %v904 = vmax.f32 %v806, 0.0
    %v905 = vmax.f32 %v808, 0.0
    %v906 = vmax.f32 %v847, 0.0
    %v907 = vmax.f32 %v849, 0.0
    %v908 = vmax.f32 %v888, 0.0
    %v909 = vmax.f32 %v890, 0.0
    %v910 = vpack.c.bf16 %v894, %v894
    %v911 = vpack.c.bf16 %v895, %v895
    %v912 = vpack.c.bf16 %v896, %v896
    %v913 = vpack.c.bf16 %v897, %v897
    %v914 = vpack.c.bf16 %v898, %v898
    %v915 = vpack.c.bf16 %v899, %v899
    %v916 = vpack.c.bf16 %v900, %v900
    %v917 = vpack.c.bf16 %v901, %v901
    %v918 = vpack.c.bf16 %v902, %v902
    %v919 = vpack.c.bf16 %v903, %v903
    %v920 = vpack.c.bf16 %v904, %v904
    %v921 = vpack.c.bf16 %v905, %v905
    %v922 = vpack.c.bf16 %v906, %v906
    %v923 = vpack.c.bf16 %v907, %v907
    %v924 = vpack.c.bf16 %v908, %v908
    %v925 = vpack.c.bf16 %v909, %v909
    %v926 = vld [vmem:[%s3] sm:$0xf]
    %v927 = vld [vmem:[%s3 + $0x4] sm:$0xf]
    %v928 = vld [vmem:[%s3 + $0x8] sm:$0xf]
    %v929 = vld [vmem:[%s3 + $0xc] sm:$0xf]
    %v930 = vld [vmem:[%s3 + $0x10] sm:$0xf]
    %v931 = vld [vmem:[%s3 + $0x14] sm:$0xf]
    %v932 = vld [vmem:[%s3 + $0x18] sm:$0xf]
    %v933 = vld [vmem:[%s3 + $0x1c] sm:$0xf]
    %v934 = vld [vmem:[%s3 + $0x20] sm:$0xf]
    %v935 = vld [vmem:[%s3 + $0x24] sm:$0xf]
    %v936 = vld [vmem:[%s3 + $0x28] sm:$0xf]
    %v937 = vld [vmem:[%s3 + $0x2c] sm:$0xf]
    %v938 = vld [vmem:[%s3 + $0x30] sm:$0xf]
    %v939 = vld [vmem:[%s3 + $0x34] sm:$0xf]
    %v940 = vld [vmem:[%s3 + $0x38] sm:$0xf]
    %v941 = vld [vmem:[%s3 + $0x3c] sm:$0xf]
    %v942 = vld [vmem:[%s3 + $0x40] sm:$0xf]
    %v943 = vld [vmem:[%s3 + $0x44] sm:$0xf]
    %v944 = vld [vmem:[%s3 + $0x48] sm:$0xf]
    %v945 = vld [vmem:[%s3 + $0x4c] sm:$0xf]
    %v946 = vld [vmem:[%s3 + $0x50] sm:$0xf]
    %v947 = vld [vmem:[%s3 + $0x54] sm:$0xf]
    %v948 = vld [vmem:[%s3 + $0x58] sm:$0xf]
    %v949 = vld [vmem:[%s3 + $0x5c] sm:$0xf]
    %v950 = vld [vmem:[%s3 + $0x60] sm:$0xf]
    %v951 = vld [vmem:[%s3 + $0x64] sm:$0xf]
    %v952 = vld [vmem:[%s3 + $0x68] sm:$0xf]
    %v953 = vld [vmem:[%s3 + $0x6c] sm:$0xf]
    %v954 = vld [vmem:[%s3 + $0x70] sm:$0xf]
    %v955 = vld [vmem:[%s3 + $0x74] sm:$0xf]
    %v956 = vld [vmem:[%s3 + $0x78] sm:$0xf]
    %v957 = vld [vmem:[%s3 + $0x7c] sm:$0xf]
    %v958 = vld [vmem:[%s3 + $0x80] sm:$0xf]
    %v959 = vld [vmem:[%s3 + $0x84] sm:$0xf]
    %v960 = vld [vmem:[%s3 + $0x88] sm:$0xf]
    %v961 = vld [vmem:[%s3 + $0x8c] sm:$0xf]
    %v962 = vld [vmem:[%s3 + $0x90] sm:$0xf]
    %v963 = vld [vmem:[%s3 + $0x94] sm:$0xf]
    %v964 = vld [vmem:[%s3 + $0x98] sm:$0xf]
    %v965 = vld [vmem:[%s3 + $0x9c] sm:$0xf]
    %v966 = vld [vmem:[%s3 + $0xa0] sm:$0xf]
    %v967 = vld [vmem:[%s3 + $0xa4] sm:$0xf]
    %v968 = vld [vmem:[%s3 + $0xa8] sm:$0xf]
    %v969 = vld [vmem:[%s3 + $0xac] sm:$0xf]
    %v970 = vld [vmem:[%s3 + $0xb0] sm:$0xf]
    %v971 = vld [vmem:[%s3 + $0xb4] sm:$0xf]
    %v972 = vld [vmem:[%s3 + $0xb8] sm:$0xf]
    %v973 = vld [vmem:[%s3 + $0xbc] sm:$0xf]
    %v974 = vld [vmem:[%s3 + $0xc0] sm:$0xf]
    %v975 = vld [vmem:[%s3 + $0xc4] sm:$0xf]
    %v976 = vld [vmem:[%s3 + $0xc8] sm:$0xf]
    %v977 = vld [vmem:[%s3 + $0xcc] sm:$0xf]
    %v978 = vld [vmem:[%s3 + $0xd0] sm:$0xf]
    %v979 = vld [vmem:[%s3 + $0xd4] sm:$0xf]
    %v980 = vld [vmem:[%s3 + $0xd8] sm:$0xf]
    %v981 = vld [vmem:[%s3 + $0xdc] sm:$0xf]
    %v982 = vld [vmem:[%s3 + $0xe0] sm:$0xf]
    %v983 = vld [vmem:[%s3 + $0xe4] sm:$0xf]
    %v984 = vld [vmem:[%s3 + $0xe8] sm:$0xf]
    %v985 = vld [vmem:[%s3 + $0xec] sm:$0xf]
    %v986 = vld [vmem:[%s3 + $0xf0] sm:$0xf]
    %v987 = vld [vmem:[%s3 + $0xf4] sm:$0xf]
    %v988 = vld [vmem:[%s3 + $0xf8] sm:$0xf]
    %v989 = vld [vmem:[%s3 + $0xfc] sm:$0xf]
    %v990 = vld [vmem:[%s3 + $0x100] sm:$0xf]
    %v991 = vld [vmem:[%s3 + $0x104] sm:$0xf]
    %v992 = vld [vmem:[%s3 + $0x108] sm:$0xf]
    %v993 = vld [vmem:[%s3 + $0x10c] sm:$0xf]
    %v994 = vld [vmem:[%s3 + $0x110] sm:$0xf]
    %v995 = vld [vmem:[%s3 + $0x114] sm:$0xf]
    %v996 = vld [vmem:[%s3 + $0x118] sm:$0xf]
    %v997 = vld [vmem:[%s3 + $0x11c] sm:$0xf]
    %v998 = vld [vmem:[%s3 + $0x120] sm:$0xf]
    %v999 = vld [vmem:[%s3 + $0x124] sm:$0xf]
    %v1000 = vld [vmem:[%s3 + $0x128] sm:$0xf]
    %v1001 = vld [vmem:[%s3 + $0x12c] sm:$0xf]
    %v1002 = vld [vmem:[%s3 + $0x130] sm:$0xf]
    %v1003 = vld [vmem:[%s3 + $0x134] sm:$0xf]
    %v1004 = vld [vmem:[%s3 + $0x138] sm:$0xf]
    %v1005 = vld [vmem:[%s3 + $0x13c] sm:$0xf]
    %v1006 = vld [vmem:[%s3 + $0x140] sm:$0xf]
    %v1007 = vld [vmem:[%s3 + $0x144] sm:$0xf]
    %v1008 = vld [vmem:[%s3 + $0x148] sm:$0xf]
    %v1009 = vld [vmem:[%s3 + $0x14c] sm:$0xf]
    %v1010 = vld [vmem:[%s3 + $0x150] sm:$0xf]
    %v1011 = vld [vmem:[%s3 + $0x154] sm:$0xf]
    %v1012 = vld [vmem:[%s3 + $0x158] sm:$0xf]
    %v1013 = vld [vmem:[%s3 + $0x15c] sm:$0xf]
    %v1014 = vld [vmem:[%s3 + $0x160] sm:$0xf]
    %v1015 = vld [vmem:[%s3 + $0x164] sm:$0xf]
    %v1016 = vld [vmem:[%s3 + $0x168] sm:$0xf]
    %v1017 = vld [vmem:[%s3 + $0x16c] sm:$0xf]
    %v1018 = vld [vmem:[%s3 + $0x170] sm:$0xf]
    %v1019 = vld [vmem:[%s3 + $0x174] sm:$0xf]
    %v1020 = vld [vmem:[%s3 + $0x178] sm:$0xf]
    %v1021 = vld [vmem:[%s3 + $0x17c] sm:$0xf]
    %v1022 = vld [vmem:[%s3 + $0x180] sm:$0xf]
    %v1023 = vld [vmem:[%s3 + $0x184] sm:$0xf]
    %v1024 = vld [vmem:[%s3 + $0x188] sm:$0xf]
    %v1025 = vld [vmem:[%s3 + $0x18c] sm:$0xf]
    %v1026 = vld [vmem:[%s3 + $0x190] sm:$0xf]
    %v1027 = vld [vmem:[%s3 + $0x194] sm:$0xf]
    %v1028 = vld [vmem:[%s3 + $0x198] sm:$0xf]
    %v1029 = vld [vmem:[%s3 + $0x19c] sm:$0xf]
    %v1030 = vld [vmem:[%s3 + $0x1a0] sm:$0xf]
    %v1031 = vld [vmem:[%s3 + $0x1a4] sm:$0xf]
    %v1032 = vld [vmem:[%s3 + $0x1a8] sm:$0xf]
    %v1033 = vld [vmem:[%s3 + $0x1ac] sm:$0xf]
    %v1034 = vld [vmem:[%s3 + $0x1b0] sm:$0xf]
    %v1035 = vld [vmem:[%s3 + $0x1b4] sm:$0xf]
    %v1036 = vld [vmem:[%s3 + $0x1b8] sm:$0xf]
    %v1037 = vld [vmem:[%s3 + $0x1bc] sm:$0xf]
    %v1038 = vld [vmem:[%s3 + $0x1c0] sm:$0xf]
    %v1039 = vld [vmem:[%s3 + $0x1c4] sm:$0xf]
    %v1040 = vld [vmem:[%s3 + $0x1c8] sm:$0xf]
    %v1041 = vld [vmem:[%s3 + $0x1cc] sm:$0xf]
    %v1042 = vld [vmem:[%s3 + $0x1d0] sm:$0xf]
    %v1043 = vld [vmem:[%s3 + $0x1d4] sm:$0xf]
    %v1044 = vld [vmem:[%s3 + $0x1d8] sm:$0xf]
    %v1045 = vld [vmem:[%s3 + $0x1dc] sm:$0xf]
    %v1046 = vld [vmem:[%s3 + $0x1e0] sm:$0xf]
    %v1047 = vld [vmem:[%s3 + $0x1e4] sm:$0xf]
    %v1048 = vld [vmem:[%s3 + $0x1e8] sm:$0xf]
    %v1049 = vld [vmem:[%s3 + $0x1ec] sm:$0xf]
    %v1050 = vld [vmem:[%s3 + $0x1f0] sm:$0xf]
    %v1051 = vld [vmem:[%s3 + $0x1f4] sm:$0xf]
    %v1052 = vld [vmem:[%s3 + $0x1f8] sm:$0xf]
    %v1053 = vld [vmem:[%s3 + $0x1fc] sm:$0xf]
    %v1054 = vld [vmem:[%s3 + $0x200] sm:$0xf]
    %v1055 = vld [vmem:[%s3 + $0x204] sm:$0xf]
    %v1056 = vld [vmem:[%s3 + $0x208] sm:$0xf]
    %v1057 = vld [vmem:[%s3 + $0x20c] sm:$0xf]
    %v1058 = vld [vmem:[%s3 + $0x210] sm:$0xf]
    %v1059 = vld [vmem:[%s3 + $0x214] sm:$0xf]
    %v1060 = vld [vmem:[%s3 + $0x218] sm:$0xf]
    %v1061 = vld [vmem:[%s3 + $0x21c] sm:$0xf]
    %v1062 = vld [vmem:[%s3 + $0x220] sm:$0xf]
    %v1063 = vld [vmem:[%s3 + $0x224] sm:$0xf]
    %v1064 = vld [vmem:[%s3 + $0x228] sm:$0xf]
    %v1065 = vld [vmem:[%s3 + $0x22c] sm:$0xf]
    %v1066 = vld [vmem:[%s3 + $0x230] sm:$0xf]
    %v1067 = vld [vmem:[%s3 + $0x234] sm:$0xf]
    %v1068 = vld [vmem:[%s3 + $0x238] sm:$0xf]
    %v1069 = vld [vmem:[%s3 + $0x23c] sm:$0xf]
    %v1070 = vld [vmem:[%s3 + $0x240] sm:$0xf]
    %v1071 = vld [vmem:[%s3 + $0x244] sm:$0xf]
    %v1072 = vld [vmem:[%s3 + $0x248] sm:$0xf]
    %v1073 = vld [vmem:[%s3 + $0x24c] sm:$0xf]
    %v1074 = vld [vmem:[%s3 + $0x250] sm:$0xf]
    %v1075 = vld [vmem:[%s3 + $0x254] sm:$0xf]
    %v1076 = vld [vmem:[%s3 + $0x258] sm:$0xf]
    %v1077 = vld [vmem:[%s3 + $0x25c] sm:$0xf]
    %v1078 = vld [vmem:[%s3 + $0x260] sm:$0xf]
    %v1079 = vld [vmem:[%s3 + $0x264] sm:$0xf]
    %v1080 = vld [vmem:[%s3 + $0x268] sm:$0xf]
    %v1081 = vld [vmem:[%s3 + $0x26c] sm:$0xf]
    %v1082 = vld [vmem:[%s3 + $0x270] sm:$0xf]
    %v1083 = vld [vmem:[%s3 + $0x274] sm:$0xf]
    %v1084 = vld [vmem:[%s3 + $0x278] sm:$0xf]
    %v1085 = vld [vmem:[%s3 + $0x27c] sm:$0xf]
    %v1086 = vld [vmem:[%s3 + $0x280] sm:$0xf]
    %v1087 = vld [vmem:[%s3 + $0x284] sm:$0xf]
    %v1088 = vld [vmem:[%s3 + $0x288] sm:$0xf]
    %v1089 = vld [vmem:[%s3 + $0x28c] sm:$0xf]
    %v1090 = vld [vmem:[%s3 + $0x290] sm:$0xf]
    %v1091 = vld [vmem:[%s3 + $0x294] sm:$0xf]
    %v1092 = vld [vmem:[%s3 + $0x298] sm:$0xf]
    %v1093 = vld [vmem:[%s3 + $0x29c] sm:$0xf]
    %v1094 = vld [vmem:[%s3 + $0x2a0] sm:$0xf]
    %v1095 = vld [vmem:[%s3 + $0x2a4] sm:$0xf]
    %v1096 = vld [vmem:[%s3 + $0x2a8] sm:$0xf]
    %v1097 = vld [vmem:[%s3 + $0x2ac] sm:$0xf]
    %v1098 = vld [vmem:[%s3 + $0x2b0] sm:$0xf]
    %v1099 = vld [vmem:[%s3 + $0x2b4] sm:$0xf]
    %v1100 = vld [vmem:[%s3 + $0x2b8] sm:$0xf]
    %v1101 = vld [vmem:[%s3 + $0x2bc] sm:$0xf]
    %v1102 = vld [vmem:[%s3 + $0x2c0] sm:$0xf]
    %v1103 = vld [vmem:[%s3 + $0x2c4] sm:$0xf]
    %v1104 = vld [vmem:[%s3 + $0x2c8] sm:$0xf]
    %v1105 = vld [vmem:[%s3 + $0x2cc] sm:$0xf]
    %v1106 = vld [vmem:[%s3 + $0x2d0] sm:$0xf]
    %v1107 = vld [vmem:[%s3 + $0x2d4] sm:$0xf]
    %v1108 = vld [vmem:[%s3 + $0x2d8] sm:$0xf]
    %v1109 = vld [vmem:[%s3 + $0x2dc] sm:$0xf]
    %v1110 = vld [vmem:[%s3 + $0x2e0] sm:$0xf]
    %v1111 = vld [vmem:[%s3 + $0x2e4] sm:$0xf]
    %v1112 = vld [vmem:[%s3 + $0x2e8] sm:$0xf]
    %v1113 = vld [vmem:[%s3 + $0x2ec] sm:$0xf]
    %v1114 = vld [vmem:[%s3 + $0x2f0] sm:$0xf]
    %v1115 = vld [vmem:[%s3 + $0x2f4] sm:$0xf]
    %v1116 = vld [vmem:[%s3 + $0x2f8] sm:$0xf]
    %v1117 = vld [vmem:[%s3 + $0x2fc] sm:$0xf]
    %v1118 = vld [vmem:[%s3 + $0x300] sm:$0xf]
    %v1119 = vld [vmem:[%s3 + $0x304] sm:$0xf]
    %v1120 = vld [vmem:[%s3 + $0x308] sm:$0xf]
    %v1121 = vld [vmem:[%s3 + $0x30c] sm:$0xf]
    %v1122 = vld [vmem:[%s3 + $0x310] sm:$0xf]
    %v1123 = vld [vmem:[%s3 + $0x314] sm:$0xf]
    %v1124 = vld [vmem:[%s3 + $0x318] sm:$0xf]
    %v1125 = vld [vmem:[%s3 + $0x31c] sm:$0xf]
    %v1126 = vld [vmem:[%s3 + $0x320] sm:$0xf]
    %v1127 = vld [vmem:[%s3 + $0x324] sm:$0xf]
    %v1128 = vld [vmem:[%s3 + $0x328] sm:$0xf]
    %v1129 = vld [vmem:[%s3 + $0x32c] sm:$0xf]
    %v1130 = vld [vmem:[%s3 + $0x330] sm:$0xf]
    %v1131 = vld [vmem:[%s3 + $0x334] sm:$0xf]
    %v1132 = vld [vmem:[%s3 + $0x338] sm:$0xf]
    %v1133 = vld [vmem:[%s3 + $0x33c] sm:$0xf]
    %v1134 = vld [vmem:[%s3 + $0x340] sm:$0xf]
    %v1135 = vld [vmem:[%s3 + $0x344] sm:$0xf]
    %v1136 = vld [vmem:[%s3 + $0x348] sm:$0xf]
    %v1137 = vld [vmem:[%s3 + $0x34c] sm:$0xf]
    %v1138 = vld [vmem:[%s3 + $0x350] sm:$0xf]
    %v1139 = vld [vmem:[%s3 + $0x354] sm:$0xf]
    %v1140 = vld [vmem:[%s3 + $0x358] sm:$0xf]
    %v1141 = vld [vmem:[%s3 + $0x35c] sm:$0xf]
    %v1142 = vld [vmem:[%s3 + $0x360] sm:$0xf]
    %v1143 = vld [vmem:[%s3 + $0x364] sm:$0xf]
    %v1144 = vld [vmem:[%s3 + $0x368] sm:$0xf]
    %v1145 = vld [vmem:[%s3 + $0x36c] sm:$0xf]
    %v1146 = vld [vmem:[%s3 + $0x370] sm:$0xf]
    %v1147 = vld [vmem:[%s3 + $0x374] sm:$0xf]
    %v1148 = vld [vmem:[%s3 + $0x378] sm:$0xf]
    %v1149 = vld [vmem:[%s3 + $0x37c] sm:$0xf]
    %v1150 = vld [vmem:[%s3 + $0x380] sm:$0xf]
    %v1151 = vld [vmem:[%s3 + $0x384] sm:$0xf]
    %v1152 = vld [vmem:[%s3 + $0x388] sm:$0xf]
    %v1153 = vld [vmem:[%s3 + $0x38c] sm:$0xf]
    %v1154 = vld [vmem:[%s3 + $0x390] sm:$0xf]
    %v1155 = vld [vmem:[%s3 + $0x394] sm:$0xf]
    %v1156 = vld [vmem:[%s3 + $0x398] sm:$0xf]
    %v1157 = vld [vmem:[%s3 + $0x39c] sm:$0xf]
    %v1158 = vld [vmem:[%s3 + $0x3a0] sm:$0xf]
    %v1159 = vld [vmem:[%s3 + $0x3a4] sm:$0xf]
    %v1160 = vld [vmem:[%s3 + $0x3a8] sm:$0xf]
    %v1161 = vld [vmem:[%s3 + $0x3ac] sm:$0xf]
    %v1162 = vld [vmem:[%s3 + $0x3b0] sm:$0xf]
    %v1163 = vld [vmem:[%s3 + $0x3b4] sm:$0xf]
    %v1164 = vld [vmem:[%s3 + $0x3b8] sm:$0xf]
    %v1165 = vld [vmem:[%s3 + $0x3bc] sm:$0xf]
    %v1166 = vld [vmem:[%s3 + $0x3c0] sm:$0xf]
    %v1167 = vld [vmem:[%s3 + $0x3c4] sm:$0xf]
    %v1168 = vld [vmem:[%s3 + $0x3c8] sm:$0xf]
    %v1169 = vld [vmem:[%s3 + $0x3cc] sm:$0xf]
    %v1170 = vld [vmem:[%s3 + $0x3d0] sm:$0xf]
    %v1171 = vld [vmem:[%s3 + $0x3d4] sm:$0xf]
    %v1172 = vld [vmem:[%s3 + $0x3d8] sm:$0xf]
    %v1173 = vld [vmem:[%s3 + $0x3dc] sm:$0xf]
    %v1174 = vld [vmem:[%s3 + $0x3e0] sm:$0xf]
    %v1175 = vld [vmem:[%s3 + $0x3e4] sm:$0xf]
    %v1176 = vld [vmem:[%s3 + $0x3e8] sm:$0xf]
    %v1177 = vld [vmem:[%s3 + $0x3ec] sm:$0xf]
    %v1178 = vld [vmem:[%s3 + $0x3f0] sm:$0xf]
    %v1179 = vld [vmem:[%s3 + $0x3f4] sm:$0xf]
    %v1180 = vld [vmem:[%s3 + $0x3f8] sm:$0xf]
    %v1181 = vld [vmem:[%s3 + $0x3fc] sm:$0xf]
    %v1182 = vld [vmem:[%s4] sm:$0x1]
    %v1184 = vlaneseq
    %v1185 = vshrl.u32 %v1184, 7
    %v1186 = vsub.s32 0, %v1185
    %v1187 = vrot.slane %v1182, %v1186
    %v1445 = vunpack.c.l.b16 %v926
    %v1446 = vunpack.c.l.b16 %v927
    %v1447 = vunpack.c.l.b16 %v928
    %v1448 = vunpack.c.l.b16 %v929
    %v1449 = vunpack.c.l.b16 %v930
    %v1450 = vunpack.c.l.b16 %v931
    %v1451 = vunpack.c.l.b16 %v932
    %v1452 = vunpack.c.l.b16 %v933
    %v1453 = vunpack.c.l.b16 %v934
    %v1454 = vunpack.c.l.b16 %v935
    %v1455 = vunpack.c.l.b16 %v936
    %v1456 = vunpack.c.l.b16 %v937
    %v1457 = vunpack.c.l.b16 %v938
    %v1458 = vunpack.c.l.b16 %v939
    %v1459 = vunpack.c.l.b16 %v940
    %v1460 = vunpack.c.l.b16 %v941
    %v1461 = vunpack.c.l.b16 %v942
    %v1462 = vunpack.c.l.b16 %v943
    %v1463 = vunpack.c.l.b16 %v944
    %v1464 = vunpack.c.l.b16 %v945
    %v1465 = vunpack.c.l.b16 %v946
    %v1466 = vunpack.c.l.b16 %v947
    %v1467 = vunpack.c.l.b16 %v948
    %v1468 = vunpack.c.l.b16 %v949
    %v1469 = vunpack.c.l.b16 %v950
    %v1470 = vunpack.c.l.b16 %v951
    %v1471 = vunpack.c.l.b16 %v952
    %v1472 = vunpack.c.l.b16 %v953
    %v1473 = vunpack.c.l.b16 %v954
    %v1474 = vunpack.c.l.b16 %v955
    %v1475 = vunpack.c.l.b16 %v956
    %v1476 = vunpack.c.l.b16 %v957
    %v1477 = vunpack.c.l.b16 %v958
    %v1478 = vunpack.c.l.b16 %v959
    %v1479 = vunpack.c.l.b16 %v960
    %v1480 = vunpack.c.l.b16 %v961
    %v1481 = vunpack.c.l.b16 %v962
    %v1482 = vunpack.c.l.b16 %v963
    %v1483 = vunpack.c.l.b16 %v964
    %v1484 = vunpack.c.l.b16 %v965
    %v1485 = vunpack.c.l.b16 %v966
    %v1486 = vunpack.c.l.b16 %v967
    %v1487 = vunpack.c.l.b16 %v968
    %v1488 = vunpack.c.l.b16 %v969
    %v1489 = vunpack.c.l.b16 %v970
    %v1490 = vunpack.c.l.b16 %v971
    %v1491 = vunpack.c.l.b16 %v972
    %v1492 = vunpack.c.l.b16 %v973
    %v1493 = vunpack.c.l.b16 %v974
    %v1494 = vunpack.c.l.b16 %v975
    %v1495 = vunpack.c.l.b16 %v976
    %v1496 = vunpack.c.l.b16 %v977
    %v1497 = vunpack.c.l.b16 %v978
    %v1498 = vunpack.c.l.b16 %v979
    %v1499 = vunpack.c.l.b16 %v980
    %v1500 = vunpack.c.l.b16 %v981
    %v1501 = vunpack.c.l.b16 %v982
    %v1502 = vunpack.c.l.b16 %v983
    %v1503 = vunpack.c.l.b16 %v984
    %v1504 = vunpack.c.l.b16 %v985
    %v1505 = vunpack.c.l.b16 %v986
    %v1506 = vunpack.c.l.b16 %v987
    %v1507 = vunpack.c.l.b16 %v988
    %v1508 = vunpack.c.l.b16 %v989
    %v1509 = vunpack.c.l.b16 %v990
    %v1510 = vunpack.c.l.b16 %v991
    %v1511 = vunpack.c.l.b16 %v992
    %v1512 = vunpack.c.l.b16 %v993
    %v1513 = vunpack.c.l.b16 %v994
    %v1514 = vunpack.c.l.b16 %v995
    %v1515 = vunpack.c.l.b16 %v996
    %v1516 = vunpack.c.l.b16 %v997
    %v1517 = vunpack.c.l.b16 %v998
    %v1518 = vunpack.c.l.b16 %v999
    %v1519 = vunpack.c.l.b16 %v1000
    %v1520 = vunpack.c.l.b16 %v1001
    %v1521 = vunpack.c.l.b16 %v1002
    %v1522 = vunpack.c.l.b16 %v1003
    %v1523 = vunpack.c.l.b16 %v1004
    %v1524 = vunpack.c.l.b16 %v1005
    %v1525 = vunpack.c.l.b16 %v1006
    %v1526 = vunpack.c.l.b16 %v1007
    %v1527 = vunpack.c.l.b16 %v1008
    %v1528 = vunpack.c.l.b16 %v1009
    %v1529 = vunpack.c.l.b16 %v1010
    %v1530 = vunpack.c.l.b16 %v1011
    %v1531 = vunpack.c.l.b16 %v1012
    %v1532 = vunpack.c.l.b16 %v1013
    %v1533 = vunpack.c.l.b16 %v1014
    %v1534 = vunpack.c.l.b16 %v1015
    %v1535 = vunpack.c.l.b16 %v1016
    %v1536 = vunpack.c.l.b16 %v1017
    %v1537 = vunpack.c.l.b16 %v1018
    %v1538 = vunpack.c.l.b16 %v1019
    %v1539 = vunpack.c.l.b16 %v1020
    %v1540 = vunpack.c.l.b16 %v1021
    %v1541 = vunpack.c.l.b16 %v1022
    %v1542 = vunpack.c.l.b16 %v1023
    %v1543 = vunpack.c.l.b16 %v1024
    %v1544 = vunpack.c.l.b16 %v1025
    %v1545 = vunpack.c.l.b16 %v1026
    %v1546 = vunpack.c.l.b16 %v1027
    %v1547 = vunpack.c.l.b16 %v1028
    %v1548 = vunpack.c.l.b16 %v1029
    %v1549 = vunpack.c.l.b16 %v1030
    %v1550 = vunpack.c.l.b16 %v1031
    %v1551 = vunpack.c.l.b16 %v1032
    %v1552 = vunpack.c.l.b16 %v1033
    %v1553 = vunpack.c.l.b16 %v1034
    %v1554 = vunpack.c.l.b16 %v1035
    %v1555 = vunpack.c.l.b16 %v1036
    %v1556 = vunpack.c.l.b16 %v1037
    %v1557 = vunpack.c.l.b16 %v1038
    %v1558 = vunpack.c.l.b16 %v1039
    %v1559 = vunpack.c.l.b16 %v1040
    %v1560 = vunpack.c.l.b16 %v1041
    %v1561 = vunpack.c.l.b16 %v1042
    %v1562 = vunpack.c.l.b16 %v1043
    %v1563 = vunpack.c.l.b16 %v1044
    %v1564 = vunpack.c.l.b16 %v1045
    %v1565 = vunpack.c.l.b16 %v1046
    %v1566 = vunpack.c.l.b16 %v1047
    %v1567 = vunpack.c.l.b16 %v1048
    %v1568 = vunpack.c.l.b16 %v1049
    %v1569 = vunpack.c.l.b16 %v1050
    %v1570 = vunpack.c.l.b16 %v1051
    %v1571 = vunpack.c.l.b16 %v1052
    %v1572 = vunpack.c.l.b16 %v1053
    %v1573 = vunpack.c.l.b16 %v1054
    %v1574 = vunpack.c.l.b16 %v1055
    %v1575 = vunpack.c.l.b16 %v1056
    %v1576 = vunpack.c.l.b16 %v1057
    %v1577 = vunpack.c.l.b16 %v1058
    %v1578 = vunpack.c.l.b16 %v1059
    %v1579 = vunpack.c.l.b16 %v1060
    %v1580 = vunpack.c.l.b16 %v1061
    %v1581 = vunpack.c.l.b16 %v1062
    %v1582 = vunpack.c.l.b16 %v1063
    %v1583 = vunpack.c.l.b16 %v1064
    %v1584 = vunpack.c.l.b16 %v1065
    %v1585 = vunpack.c.l.b16 %v1066
    %v1586 = vunpack.c.l.b16 %v1067
    %v1587 = vunpack.c.l.b16 %v1068
    %v1588 = vunpack.c.l.b16 %v1069
    %v1589 = vunpack.c.l.b16 %v1070
    %v1590 = vunpack.c.l.b16 %v1071
    %v1591 = vunpack.c.l.b16 %v1072
    %v1592 = vunpack.c.l.b16 %v1073
    %v1593 = vunpack.c.l.b16 %v1074
    %v1594 = vunpack.c.l.b16 %v1075
    %v1595 = vunpack.c.l.b16 %v1076
    %v1596 = vunpack.c.l.b16 %v1077
    %v1597 = vunpack.c.l.b16 %v1078
    %v1598 = vunpack.c.l.b16 %v1079
    %v1599 = vunpack.c.l.b16 %v1080
    %v1600 = vunpack.c.l.b16 %v1081
    %v1601 = vunpack.c.l.b16 %v1082
    %v1602 = vunpack.c.l.b16 %v1083
    %v1603 = vunpack.c.l.b16 %v1084
    %v1604 = vunpack.c.l.b16 %v1085
    %v1605 = vunpack.c.l.b16 %v1086
    %v1606 = vunpack.c.l.b16 %v1087
    %v1607 = vunpack.c.l.b16 %v1088
    %v1608 = vunpack.c.l.b16 %v1089
    %v1609 = vunpack.c.l.b16 %v1090
    %v1610 = vunpack.c.l.b16 %v1091
    %v1611 = vunpack.c.l.b16 %v1092
    %v1612 = vunpack.c.l.b16 %v1093
    %v1613 = vunpack.c.l.b16 %v1094
    %v1614 = vunpack.c.l.b16 %v1095
    %v1615 = vunpack.c.l.b16 %v1096
    %v1616 = vunpack.c.l.b16 %v1097
    %v1617 = vunpack.c.l.b16 %v1098
    %v1618 = vunpack.c.l.b16 %v1099
    %v1619 = vunpack.c.l.b16 %v1100
    %v1620 = vunpack.c.l.b16 %v1101
    %v1621 = vunpack.c.l.b16 %v1102
    %v1622 = vunpack.c.l.b16 %v1103
    %v1623 = vunpack.c.l.b16 %v1104
    %v1624 = vunpack.c.l.b16 %v1105
    %v1625 = vunpack.c.l.b16 %v1106
    %v1626 = vunpack.c.l.b16 %v1107
    %v1627 = vunpack.c.l.b16 %v1108
    %v1628 = vunpack.c.l.b16 %v1109
    %v1629 = vunpack.c.l.b16 %v1110
    %v1630 = vunpack.c.l.b16 %v1111
    %v1631 = vunpack.c.l.b16 %v1112
    %v1632 = vunpack.c.l.b16 %v1113
    %v1633 = vunpack.c.l.b16 %v1114
    %v1634 = vunpack.c.l.b16 %v1115
    %v1635 = vunpack.c.l.b16 %v1116
    %v1636 = vunpack.c.l.b16 %v1117
    %v1637 = vunpack.c.l.b16 %v1118
    %v1638 = vunpack.c.l.b16 %v1119
    %v1639 = vunpack.c.l.b16 %v1120
    %v1640 = vunpack.c.l.b16 %v1121
    %v1641 = vunpack.c.l.b16 %v1122
    %v1642 = vunpack.c.l.b16 %v1123
    %v1643 = vunpack.c.l.b16 %v1124
    %v1644 = vunpack.c.l.b16 %v1125
    %v1645 = vunpack.c.l.b16 %v1126
    %v1646 = vunpack.c.l.b16 %v1127
    %v1647 = vunpack.c.l.b16 %v1128
    %v1648 = vunpack.c.l.b16 %v1129
    %v1649 = vunpack.c.l.b16 %v1130
    %v1650 = vunpack.c.l.b16 %v1131
    %v1651 = vunpack.c.l.b16 %v1132
    %v1652 = vunpack.c.l.b16 %v1133
    %v1653 = vunpack.c.l.b16 %v1134
    %v1654 = vunpack.c.l.b16 %v1135
    %v1655 = vunpack.c.l.b16 %v1136
    %v1656 = vunpack.c.l.b16 %v1137
    %v1657 = vunpack.c.l.b16 %v1138
    %v1658 = vunpack.c.l.b16 %v1139
    %v1659 = vunpack.c.l.b16 %v1140
    %v1660 = vunpack.c.l.b16 %v1141
    %v1661 = vunpack.c.l.b16 %v1142
    %v1662 = vunpack.c.l.b16 %v1143
    %v1663 = vunpack.c.l.b16 %v1144
    %v1664 = vunpack.c.l.b16 %v1145
    %v1665 = vunpack.c.l.b16 %v1146
    %v1666 = vunpack.c.l.b16 %v1147
    %v1667 = vunpack.c.l.b16 %v1148
    %v1668 = vunpack.c.l.b16 %v1149
    %v1669 = vunpack.c.l.b16 %v1150
    %v1670 = vunpack.c.l.b16 %v1151
    %v1671 = vunpack.c.l.b16 %v1152
    %v1672 = vunpack.c.l.b16 %v1153
    %v1673 = vunpack.c.l.b16 %v1154
    %v1674 = vunpack.c.l.b16 %v1155
    %v1675 = vunpack.c.l.b16 %v1156
    %v1676 = vunpack.c.l.b16 %v1157
    %v1677 = vunpack.c.l.b16 %v1158
    %v1678 = vunpack.c.l.b16 %v1159
    %v1679 = vunpack.c.l.b16 %v1160
    %v1680 = vunpack.c.l.b16 %v1161
    %v1681 = vunpack.c.l.b16 %v1162
    %v1682 = vunpack.c.l.b16 %v1163
    %v1683 = vunpack.c.l.b16 %v1164
    %v1684 = vunpack.c.l.b16 %v1165
    %v1685 = vunpack.c.l.b16 %v1166
    %v1686 = vunpack.c.l.b16 %v1167
    %v1687 = vunpack.c.l.b16 %v1168
    %v1688 = vunpack.c.l.b16 %v1169
    %v1689 = vunpack.c.l.b16 %v1170
    %v1690 = vunpack.c.l.b16 %v1171
    %v1691 = vunpack.c.l.b16 %v1172
    %v1692 = vunpack.c.l.b16 %v1173
    %v1693 = vunpack.c.l.b16 %v1174
    %v1694 = vunpack.c.l.b16 %v1175
    %v1695 = vunpack.c.l.b16 %v1176
    %v1696 = vunpack.c.l.b16 %v1177
    %v1697 = vunpack.c.l.b16 %v1178
    %v1698 = vunpack.c.l.b16 %v1179
    %v1699 = vunpack.c.l.b16 %v1180
    %v1700 = vunpack.c.l.b16 %v1181
    %v1701 = vpack.c.b16 %v1446, %v1445
    %v1702 = vpack.c.b16 %v1448, %v1447
    %v1703 = vpack.c.b16 %v1450, %v1449
    %v1704 = vpack.c.b16 %v1452, %v1451
    %v1705 = vpack.c.b16 %v1454, %v1453
    %v1706 = vpack.c.b16 %v1456, %v1455
    %v1707 = vpack.c.b16 %v1458, %v1457
    %v1708 = vpack.c.b16 %v1460, %v1459
    %v1709 = vpack.c.b16 %v1462, %v1461
    %v1710 = vpack.c.b16 %v1464, %v1463
    %v1711 = vpack.c.b16 %v1466, %v1465
    %v1712 = vpack.c.b16 %v1468, %v1467
    %v1713 = vpack.c.b16 %v1470, %v1469
    %v1714 = vpack.c.b16 %v1472, %v1471
    %v1715 = vpack.c.b16 %v1474, %v1473
    %v1716 = vpack.c.b16 %v1476, %v1475
    %v1717 = vpack.c.b16 %v1478, %v1477
    %v1718 = vpack.c.b16 %v1480, %v1479
    %v1719 = vpack.c.b16 %v1482, %v1481
    %v1720 = vpack.c.b16 %v1484, %v1483
    %v1721 = vpack.c.b16 %v1486, %v1485
    %v1722 = vpack.c.b16 %v1488, %v1487
    %v1723 = vpack.c.b16 %v1490, %v1489
    %v1724 = vpack.c.b16 %v1492, %v1491
    %v1725 = vpack.c.b16 %v1494, %v1493
    %v1726 = vpack.c.b16 %v1496, %v1495
    %v1727 = vpack.c.b16 %v1498, %v1497
    %v1728 = vpack.c.b16 %v1500, %v1499
    %v1729 = vpack.c.b16 %v1502, %v1501
    %v1730 = vpack.c.b16 %v1504, %v1503
    %v1731 = vpack.c.b16 %v1506, %v1505
    %v1732 = vpack.c.b16 %v1508, %v1507
    %v1733 = vpack.c.b16 %v1510, %v1509
    %v1734 = vpack.c.b16 %v1512, %v1511
    %v1735 = vpack.c.b16 %v1514, %v1513
    %v1736 = vpack.c.b16 %v1516, %v1515
    %v1737 = vpack.c.b16 %v1518, %v1517
    %v1738 = vpack.c.b16 %v1520, %v1519
    %v1739 = vpack.c.b16 %v1522, %v1521
    %v1740 = vpack.c.b16 %v1524, %v1523
    %v1741 = vpack.c.b16 %v1526, %v1525
    %v1742 = vpack.c.b16 %v1528, %v1527
    %v1743 = vpack.c.b16 %v1530, %v1529
    %v1744 = vpack.c.b16 %v1532, %v1531
    %v1745 = vpack.c.b16 %v1534, %v1533
    %v1746 = vpack.c.b16 %v1536, %v1535
    %v1747 = vpack.c.b16 %v1538, %v1537
    %v1748 = vpack.c.b16 %v1540, %v1539
    %v1749 = vpack.c.b16 %v1542, %v1541
    %v1750 = vpack.c.b16 %v1544, %v1543
    %v1751 = vpack.c.b16 %v1546, %v1545
    %v1752 = vpack.c.b16 %v1548, %v1547
    %v1753 = vpack.c.b16 %v1550, %v1549
    %v1754 = vpack.c.b16 %v1552, %v1551
    %v1755 = vpack.c.b16 %v1554, %v1553
    %v1756 = vpack.c.b16 %v1556, %v1555
    %v1757 = vpack.c.b16 %v1558, %v1557
    %v1758 = vpack.c.b16 %v1560, %v1559
    %v1759 = vpack.c.b16 %v1562, %v1561
    %v1760 = vpack.c.b16 %v1564, %v1563
    %v1761 = vpack.c.b16 %v1566, %v1565
    %v1762 = vpack.c.b16 %v1568, %v1567
    %v1763 = vpack.c.b16 %v1570, %v1569
    %v1764 = vpack.c.b16 %v1572, %v1571
    %v1765 = vpack.c.b16 %v1574, %v1573
    %v1766 = vpack.c.b16 %v1576, %v1575
    %v1767 = vpack.c.b16 %v1578, %v1577
    %v1768 = vpack.c.b16 %v1580, %v1579
    %v1769 = vpack.c.b16 %v1582, %v1581
    %v1770 = vpack.c.b16 %v1584, %v1583
    %v1771 = vpack.c.b16 %v1586, %v1585
    %v1772 = vpack.c.b16 %v1588, %v1587
    %v1773 = vpack.c.b16 %v1590, %v1589
    %v1774 = vpack.c.b16 %v1592, %v1591
    %v1775 = vpack.c.b16 %v1594, %v1593
    %v1776 = vpack.c.b16 %v1596, %v1595
    %v1777 = vpack.c.b16 %v1598, %v1597
    %v1778 = vpack.c.b16 %v1600, %v1599
    %v1779 = vpack.c.b16 %v1602, %v1601
    %v1780 = vpack.c.b16 %v1604, %v1603
    %v1781 = vpack.c.b16 %v1606, %v1605
    %v1782 = vpack.c.b16 %v1608, %v1607
    %v1783 = vpack.c.b16 %v1610, %v1609
    %v1784 = vpack.c.b16 %v1612, %v1611
    %v1785 = vpack.c.b16 %v1614, %v1613
    %v1786 = vpack.c.b16 %v1616, %v1615
    %v1787 = vpack.c.b16 %v1618, %v1617
    %v1788 = vpack.c.b16 %v1620, %v1619
    %v1789 = vpack.c.b16 %v1622, %v1621
    %v1790 = vpack.c.b16 %v1624, %v1623
    %v1791 = vpack.c.b16 %v1626, %v1625
    %v1792 = vpack.c.b16 %v1628, %v1627
    %v1793 = vpack.c.b16 %v1630, %v1629
    %v1794 = vpack.c.b16 %v1632, %v1631
    %v1795 = vpack.c.b16 %v1634, %v1633
    %v1796 = vpack.c.b16 %v1636, %v1635
    %v1797 = vpack.c.b16 %v1638, %v1637
    %v1798 = vpack.c.b16 %v1640, %v1639
    %v1799 = vpack.c.b16 %v1642, %v1641
    %v1800 = vpack.c.b16 %v1644, %v1643
    %v1801 = vpack.c.b16 %v1646, %v1645
    %v1802 = vpack.c.b16 %v1648, %v1647
    %v1803 = vpack.c.b16 %v1650, %v1649
    %v1804 = vpack.c.b16 %v1652, %v1651
    %v1805 = vpack.c.b16 %v1654, %v1653
    %v1806 = vpack.c.b16 %v1656, %v1655
    %v1807 = vpack.c.b16 %v1658, %v1657
    %v1808 = vpack.c.b16 %v1660, %v1659
    %v1809 = vpack.c.b16 %v1662, %v1661
    %v1810 = vpack.c.b16 %v1664, %v1663
    %v1811 = vpack.c.b16 %v1666, %v1665
    %v1812 = vpack.c.b16 %v1668, %v1667
    %v1813 = vpack.c.b16 %v1670, %v1669
    %v1814 = vpack.c.b16 %v1672, %v1671
    %v1815 = vpack.c.b16 %v1674, %v1673
    %v1816 = vpack.c.b16 %v1676, %v1675
    %v1817 = vpack.c.b16 %v1678, %v1677
    %v1818 = vpack.c.b16 %v1680, %v1679
    %v1819 = vpack.c.b16 %v1682, %v1681
    %v1820 = vpack.c.b16 %v1684, %v1683
    %v1821 = vpack.c.b16 %v1686, %v1685
    %v1822 = vpack.c.b16 %v1688, %v1687
    %v1823 = vpack.c.b16 %v1690, %v1689
    %v1824 = vpack.c.b16 %v1692, %v1691
    %v1825 = vpack.c.b16 %v1694, %v1693
    %v1826 = vpack.c.b16 %v1696, %v1695
    %v1827 = vpack.c.b16 %v1698, %v1697
    %v1828 = vpack.c.b16 %v1700, %v1699
    %1957 = vmatprep.subr.bf16.mxu0 0
    %1958 = vmatpush1.bf16.msra.mxu0 %v1701
    %1959 = vmatprep.subr.bf16.mxu0 0
    %1960 = vmatpush1.bf16.msra.mxu0 %v1702
    %1961 = vmatprep.subr.bf16.mxu0 0
    %1962 = vmatpush1.bf16.msra.mxu0 %v1703
    %1963 = vmatprep.subr.bf16.mxu0 0
    %1964 = vmatpush1.bf16.msra.mxu0 %v1704
    %1965 = vmatprep.subr.bf16.mxu0 0
    %1966 = vmatpush1.bf16.msra.mxu0 %v1705
    %1967 = vmatprep.subr.bf16.mxu0 0
    %1968 = vmatpush1.bf16.msra.mxu0 %v1706
    %1969 = vmatprep.subr.bf16.mxu0 0
    %1970 = vmatpush1.bf16.msra.mxu0 %v1707
    %1971 = vmatprep.subr.bf16.mxu0 0
    %1972 = vmatpush1.bf16.msra.mxu0 %v1708
    %1973 = vmatprep.subr.bf16.mxu0 0
    %1974 = vmatpush1.bf16.msra.mxu0 %v1709
    %1975 = vmatprep.subr.bf16.mxu0 0
    %1976 = vmatpush1.bf16.msra.mxu0 %v1710
    %1977 = vmatprep.subr.bf16.mxu0 0
    %1978 = vmatpush1.bf16.msra.mxu0 %v1711
    %1979 = vmatprep.subr.bf16.mxu0 0
    %1980 = vmatpush1.bf16.msra.mxu0 %v1712
    %1981 = vmatprep.subr.bf16.mxu0 0
    %1982 = vmatpush1.bf16.msra.mxu0 %v1713
    %1983 = vmatprep.subr.bf16.mxu0 0
    %1984 = vmatpush1.bf16.msra.mxu0 %v1714
    %1985 = vmatprep.subr.bf16.mxu0 0
    %1986 = vmatpush1.bf16.msra.mxu0 %v1715
    %1987 = vmatprep.subr.bf16.mxu0 0
    %1988 = vmatpush1.bf16.msra.mxu0 %v1716
    %1989 = vmatprep.mubr.bf16.mxu0 %v911
    %1990 = vmatmul.mubr.bf16.gmra.mrb[0].mxu0 %v910
    %v1991 = vpop.f32.mrb[0].mxu0
    %v1992 = vadd.f32 %v1187, %v1991
    %v1993 = vpop.f32.mrb[0].mxu0
    %v1994 = vpop.f32.mrb[0].mxu0
    %v1995 = vpop.f32.mrb[0].mxu0
    %1996 = vdwg.mxu0
    %1997 = vmatprep.subr.bf16.mxu0 0
    %1998 = vmatpush1.bf16.msra.mxu0 %v1717
    %1999 = vmatprep.subr.bf16.mxu0 0
    %2000 = vmatpush1.bf16.msra.mxu0 %v1718
    %2001 = vmatprep.subr.bf16.mxu0 0
    %2002 = vmatpush1.bf16.msra.mxu0 %v1719
    %2003 = vmatprep.subr.bf16.mxu0 0
    %2004 = vmatpush1.bf16.msra.mxu0 %v1720
    %2005 = vmatprep.subr.bf16.mxu0 0
    %2006 = vmatpush1.bf16.msra.mxu0 %v1721
    %2007 = vmatprep.subr.bf16.mxu0 0
    %2008 = vmatpush1.bf16.msra.mxu0 %v1722
    %2009 = vmatprep.subr.bf16.mxu0 0
    %2010 = vmatpush1.bf16.msra.mxu0 %v1723
    %2011 = vmatprep.subr.bf16.mxu0 0
    %2012 = vmatpush1.bf16.msra.mxu0 %v1724
    %2013 = vmatprep.subr.bf16.mxu0 0
    %2014 = vmatpush1.bf16.msra.mxu0 %v1725
    %2015 = vmatprep.subr.bf16.mxu0 0
    %2016 = vmatpush1.bf16.msra.mxu0 %v1726
    %2017 = vmatprep.subr.bf16.mxu0 0
    %2018 = vmatpush1.bf16.msra.mxu0 %v1727
    %2019 = vmatprep.subr.bf16.mxu0 0
    %2020 = vmatpush1.bf16.msra.mxu0 %v1728
    %2021 = vmatprep.subr.bf16.mxu0 0
    %2022 = vmatpush1.bf16.msra.mxu0 %v1729
    %2023 = vmatprep.subr.bf16.mxu0 0
    %2024 = vmatpush1.bf16.msra.mxu0 %v1730
    %2025 = vmatprep.subr.bf16.mxu0 0
    %2026 = vmatpush1.bf16.msra.mxu0 %v1731
    %2027 = vmatprep.subr.bf16.mxu0 0
    %2028 = vmatpush1.bf16.msra.mxu0 %v1732
    %2029 = vmatprep.mubr.bf16.mxu0 %v913
    %2030 = vmatmul.mubr.bf16.gmra.mrb[0].mxu0 %v912
    %v2031 = vpop.f32.mrb[0].mxu0
    %v2032 = vadd.f32 %v1992, %v2031
    %v2033 = vpop.f32.mrb[0].mxu0
    %v2034 = vpop.f32.mrb[0].mxu0
    %v2035 = vpop.f32.mrb[0].mxu0
    %2036 = vdwg.mxu0
    %2037 = vmatprep.subr.bf16.mxu0 0
    %2038 = vmatpush1.bf16.msra.mxu0 %v1733
    %2039 = vmatprep.subr.bf16.mxu0 0
    %2040 = vmatpush1.bf16.msra.mxu0 %v1734
    %2041 = vmatprep.subr.bf16.mxu0 0
    %2042 = vmatpush1.bf16.msra.mxu0 %v1735
    %2043 = vmatprep.subr.bf16.mxu0 0
    %2044 = vmatpush1.bf16.msra.mxu0 %v1736
    %2045 = vmatprep.subr.bf16.mxu0 0
    %2046 = vmatpush1.bf16.msra.mxu0 %v1737
    %2047 = vmatprep.subr.bf16.mxu0 0
    %2048 = vmatpush1.bf16.msra.mxu0 %v1738
    %2049 = vmatprep.subr.bf16.mxu0 0
    %2050 = vmatpush1.bf16.msra.mxu0 %v1739
    %2051 = vmatprep.subr.bf16.mxu0 0
    %2052 = vmatpush1.bf16.msra.mxu0 %v1740
    %2053 = vmatprep.subr.bf16.mxu0 0
    %2054 = vmatpush1.bf16.msra.mxu0 %v1741
    %2055 = vmatprep.subr.bf16.mxu0 0
    %2056 = vmatpush1.bf16.msra.mxu0 %v1742
    %2057 = vmatprep.subr.bf16.mxu0 0
    %2058 = vmatpush1.bf16.msra.mxu0 %v1743
    %2059 = vmatprep.subr.bf16.mxu0 0
    %2060 = vmatpush1.bf16.msra.mxu0 %v1744
    %2061 = vmatprep.subr.bf16.mxu0 0
    %2062 = vmatpush1.bf16.msra.mxu0 %v1745
    %2063 = vmatprep.subr.bf16.mxu0 0
    %2064 = vmatpush1.bf16.msra.mxu0 %v1746
    %2065 = vmatprep.subr.bf16.mxu0 0
    %2066 = vmatpush1.bf16.msra.mxu0 %v1747
    %2067 = vmatprep.subr.bf16.mxu0 0
    %2068 = vmatpush1.bf16.msra.mxu0 %v1748
    %2069 = vmatprep.mubr.bf16.mxu0 %v915
    %2070 = vmatmul.mubr.bf16.gmra.mrb[0].mxu0 %v914
    %v2071 = vpop.f32.mrb[0].mxu0
    %v2072 = vadd.f32 %v2032, %v2071
    %v2073 = vpop.f32.mrb[0].mxu0
    %v2074 = vpop.f32.mrb[0].mxu0
    %v2075 = vpop.f32.mrb[0].mxu0
    %2076 = vdwg.mxu0
    %2077 = vmatprep.subr.bf16.mxu0 0
    %2078 = vmatpush1.bf16.msra.mxu0 %v1749
    %2079 = vmatprep.subr.bf16.mxu0 0
    %2080 = vmatpush1.bf16.msra.mxu0 %v1750
    %2081 = vmatprep.subr.bf16.mxu0 0
    %2082 = vmatpush1.bf16.msra.mxu0 %v1751
    %2083 = vmatprep.subr.bf16.mxu0 0
    %2084 = vmatpush1.bf16.msra.mxu0 %v1752
    %2085 = vmatprep.subr.bf16.mxu0 0
    %2086 = vmatpush1.bf16.msra.mxu0 %v1753
    %2087 = vmatprep.subr.bf16.mxu0 0
    %2088 = vmatpush1.bf16.msra.mxu0 %v1754
    %2089 = vmatprep.subr.bf16.mxu0 0
    %2090 = vmatpush1.bf16.msra.mxu0 %v1755
    %2091 = vmatprep.subr.bf16.mxu0 0
    %2092 = vmatpush1.bf16.msra.mxu0 %v1756
    %2093 = vmatprep.subr.bf16.mxu0 0
    %2094 = vmatpush1.bf16.msra.mxu0 %v1757
    %2095 = vmatprep.subr.bf16.mxu0 0
    %2096 = vmatpush1.bf16.msra.mxu0 %v1758
    %2097 = vmatprep.subr.bf16.mxu0 0
    %2098 = vmatpush1.bf16.msra.mxu0 %v1759
    %2099 = vmatprep.subr.bf16.mxu0 0
    %2100 = vmatpush1.bf16.msra.mxu0 %v1760
    %2101 = vmatprep.subr.bf16.mxu0 0
    %2102 = vmatpush1.bf16.msra.mxu0 %v1761
    %2103 = vmatprep.subr.bf16.mxu0 0
    %2104 = vmatpush1.bf16.msra.mxu0 %v1762
    %2105 = vmatprep.subr.bf16.mxu0 0
    %2106 = vmatpush1.bf16.msra.mxu0 %v1763
    %2107 = vmatprep.subr.bf16.mxu0 0
    %2108 = vmatpush1.bf16.msra.mxu0 %v1764
    %2109 = vmatprep.mubr.bf16.mxu0 %v917
    %2110 = vmatmul.mubr.bf16.gmra.mrb[0].mxu0 %v916
    %v2111 = vpop.f32.mrb[0].mxu0
    %v2112 = vadd.f32 %v2072, %v2111
    %v2113 = vpop.f32.mrb[0].mxu0
    %v2114 = vpop.f32.mrb[0].mxu0
    %v2115 = vpop.f32.mrb[0].mxu0
    %2116 = vdwg.mxu0
    %2117 = vmatprep.subr.bf16.mxu0 0
    %2118 = vmatpush1.bf16.msra.mxu0 %v1765
    %2119 = vmatprep.subr.bf16.mxu0 0
    %2120 = vmatpush1.bf16.msra.mxu0 %v1766
    %2121 = vmatprep.subr.bf16.mxu0 0
    %2122 = vmatpush1.bf16.msra.mxu0 %v1767
    %2123 = vmatprep.subr.bf16.mxu0 0
    %2124 = vmatpush1.bf16.msra.mxu0 %v1768
    %2125 = vmatprep.subr.bf16.mxu0 0
    %2126 = vmatpush1.bf16.msra.mxu0 %v1769
    %2127 = vmatprep.subr.bf16.mxu0 0
    %2128 = vmatpush1.bf16.msra.mxu0 %v1770
    %2129 = vmatprep.subr.bf16.mxu0 0
    %2130 = vmatpush1.bf16.msra.mxu0 %v1771
    %2131 = vmatprep.subr.bf16.mxu0 0
    %2132 = vmatpush1.bf16.msra.mxu0 %v1772
    %2133 = vmatprep.subr.bf16.mxu0 0
    %2134 = vmatpush1.bf16.msra.mxu0 %v1773
    %2135 = vmatprep.subr.bf16.mxu0 0
    %2136 = vmatpush1.bf16.msra.mxu0 %v1774
    %2137 = vmatprep.subr.bf16.mxu0 0
    %2138 = vmatpush1.bf16.msra.mxu0 %v1775
    %2139 = vmatprep.subr.bf16.mxu0 0
    %2140 = vmatpush1.bf16.msra.mxu0 %v1776
    %2141 = vmatprep.subr.bf16.mxu0 0
    %2142 = vmatpush1.bf16.msra.mxu0 %v1777
    %2143 = vmatprep.subr.bf16.mxu0 0
    %2144 = vmatpush1.bf16.msra.mxu0 %v1778
    %2145 = vmatprep.subr.bf16.mxu0 0
    %2146 = vmatpush1.bf16.msra.mxu0 %v1779
    %2147 = vmatprep.subr.bf16.mxu0 0
    %2148 = vmatpush1.bf16.msra.mxu0 %v1780
    %2149 = vmatprep.mubr.bf16.mxu0 %v919
    %2150 = vmatmul.mubr.bf16.gmra.mrb[0].mxu0 %v918
    %v2151 = vpop.f32.mrb[0].mxu0
    %v2152 = vadd.f32 %v2112, %v2151
    %v2153 = vpop.f32.mrb[0].mxu0
    %v2154 = vpop.f32.mrb[0].mxu0
    %v2155 = vpop.f32.mrb[0].mxu0
    %2156 = vdwg.mxu0
    %2157 = vmatprep.subr.bf16.mxu0 0
    %2158 = vmatpush1.bf16.msra.mxu0 %v1781
    %2159 = vmatprep.subr.bf16.mxu0 0
    %2160 = vmatpush1.bf16.msra.mxu0 %v1782
    %2161 = vmatprep.subr.bf16.mxu0 0
    %2162 = vmatpush1.bf16.msra.mxu0 %v1783
    %2163 = vmatprep.subr.bf16.mxu0 0
    %2164 = vmatpush1.bf16.msra.mxu0 %v1784
    %2165 = vmatprep.subr.bf16.mxu0 0
    %2166 = vmatpush1.bf16.msra.mxu0 %v1785
    %2167 = vmatprep.subr.bf16.mxu0 0
    %2168 = vmatpush1.bf16.msra.mxu0 %v1786
    %2169 = vmatprep.subr.bf16.mxu0 0
    %2170 = vmatpush1.bf16.msra.mxu0 %v1787
    %2171 = vmatprep.subr.bf16.mxu0 0
    %2172 = vmatpush1.bf16.msra.mxu0 %v1788
    %2173 = vmatprep.subr.bf16.mxu0 0
    %2174 = vmatpush1.bf16.msra.mxu0 %v1789
    %2175 = vmatprep.subr.bf16.mxu0 0
    %2176 = vmatpush1.bf16.msra.mxu0 %v1790
    %2177 = vmatprep.subr.bf16.mxu0 0
    %2178 = vmatpush1.bf16.msra.mxu0 %v1791
    %2179 = vmatprep.subr.bf16.mxu0 0
    %2180 = vmatpush1.bf16.msra.mxu0 %v1792
    %2181 = vmatprep.subr.bf16.mxu0 0
    %2182 = vmatpush1.bf16.msra.mxu0 %v1793
    %2183 = vmatprep.subr.bf16.mxu0 0
    %2184 = vmatpush1.bf16.msra.mxu0 %v1794
    %2185 = vmatprep.subr.bf16.mxu0 0
    %2186 = vmatpush1.bf16.msra.mxu0 %v1795
    %2187 = vmatprep.subr.bf16.mxu0 0
    %2188 = vmatpush1.bf16.msra.mxu0 %v1796
    %2189 = vmatprep.mubr.bf16.mxu0 %v921
    %2190 = vmatmul.mubr.bf16.gmra.mrb[0].mxu0 %v920
    %v2191 = vpop.f32.mrb[0].mxu0
    %v2192 = vadd.f32 %v2152, %v2191
    %v2193 = vpop.f32.mrb[0].mxu0
    %v2194 = vpop.f32.mrb[0].mxu0
    %v2195 = vpop.f32.mrb[0].mxu0
    %2196 = vdwg.mxu0
    %2197 = vmatprep.subr.bf16.mxu0 0
    %2198 = vmatpush1.bf16.msra.mxu0 %v1797
    %2199 = vmatprep.subr.bf16.mxu0 0
    %2200 = vmatpush1.bf16.msra.mxu0 %v1798
    %2201 = vmatprep.subr.bf16.mxu0 0
    %2202 = vmatpush1.bf16.msra.mxu0 %v1799
    %2203 = vmatprep.subr.bf16.mxu0 0
    %2204 = vmatpush1.bf16.msra.mxu0 %v1800
    %2205 = vmatprep.subr.bf16.mxu0 0
    %2206 = vmatpush1.bf16.msra.mxu0 %v1801
    %2207 = vmatprep.subr.bf16.mxu0 0
    %2208 = vmatpush1.bf16.msra.mxu0 %v1802
    %2209 = vmatprep.subr.bf16.mxu0 0
    %2210 = vmatpush1.bf16.msra.mxu0 %v1803
    %2211 = vmatprep.subr.bf16.mxu0 0
    %2212 = vmatpush1.bf16.msra.mxu0 %v1804
    %2213 = vmatprep.subr.bf16.mxu0 0
    %2214 = vmatpush1.bf16.msra.mxu0 %v1805
    %2215 = vmatprep.subr.bf16.mxu0 0
    %2216 = vmatpush1.bf16.msra.mxu0 %v1806
    %2217 = vmatprep.subr.bf16.mxu0 0
    %2218 = vmatpush1.bf16.msra.mxu0 %v1807
    %2219 = vmatprep.subr.bf16.mxu0 0
    %2220 = vmatpush1.bf16.msra.mxu0 %v1808
    %2221 = vmatprep.subr.bf16.mxu0 0
    %2222 = vmatpush1.bf16.msra.mxu0 %v1809
    %2223 = vmatprep.subr.bf16.mxu0 0
    %2224 = vmatpush1.bf16.msra.mxu0 %v1810
    %2225 = vmatprep.subr.bf16.mxu0 0
    %2226 = vmatpush1.bf16.msra.mxu0 %v1811
    %2227 = vmatprep.subr.bf16.mxu0 0
    %2228 = vmatpush1.bf16.msra.mxu0 %v1812
    %2229 = vmatprep.mubr.bf16.mxu0 %v923
    %2230 = vmatmul.mubr.bf16.gmra.mrb[0].mxu0 %v922
    %v2231 = vpop.f32.mrb[0].mxu0
    %v2232 = vadd.f32 %v2192, %v2231
    %v2233 = vpop.f32.mrb[0].mxu0
    %v2234 = vpop.f32.mrb[0].mxu0
    %v2235 = vpop.f32.mrb[0].mxu0
    %2236 = vdwg.mxu0
    %2237 = vmatprep.subr.bf16.mxu0 0
    %2238 = vmatpush1.bf16.msra.mxu0 %v1813
    %2239 = vmatprep.subr.bf16.mxu0 0
    %2240 = vmatpush1.bf16.msra.mxu0 %v1814
    %2241 = vmatprep.subr.bf16.mxu0 0
    %2242 = vmatpush1.bf16.msra.mxu0 %v1815
    %2243 = vmatprep.subr.bf16.mxu0 0
    %2244 = vmatpush1.bf16.msra.mxu0 %v1816
    %2245 = vmatprep.subr.bf16.mxu0 0
    %2246 = vmatpush1.bf16.msra.mxu0 %v1817
    %2247 = vmatprep.subr.bf16.mxu0 0
    %2248 = vmatpush1.bf16.msra.mxu0 %v1818
    %2249 = vmatprep.subr.bf16.mxu0 0
    %2250 = vmatpush1.bf16.msra.mxu0 %v1819
    %2251 = vmatprep.subr.bf16.mxu0 0
    %2252 = vmatpush1.bf16.msra.mxu0 %v1820
    %2253 = vmatprep.subr.bf16.mxu0 0
    %2254 = vmatpush1.bf16.msra.mxu0 %v1821
    %2255 = vmatprep.subr.bf16.mxu0 0
    %2256 = vmatpush1.bf16.msra.mxu0 %v1822
    %2257 = vmatprep.subr.bf16.mxu0 0
    %2258 = vmatpush1.bf16.msra.mxu0 %v1823
    %2259 = vmatprep.subr.bf16.mxu0 0
    %2260 = vmatpush1.bf16.msra.mxu0 %v1824
    %2261 = vmatprep.subr.bf16.mxu0 0
    %2262 = vmatpush1.bf16.msra.mxu0 %v1825
    %2263 = vmatprep.subr.bf16.mxu0 0
    %2264 = vmatpush1.bf16.msra.mxu0 %v1826
    %2265 = vmatprep.subr.bf16.mxu0 0
    %2266 = vmatpush1.bf16.msra.mxu0 %v1827
    %2267 = vmatprep.subr.bf16.mxu0 0
    %2268 = vmatpush1.bf16.msra.mxu0 %v1828
    %2269 = vmatprep.mubr.bf16.mxu0 %v925
    %2270 = vmatmul.mubr.bf16.gmra.mrb[0].mxu0 %v924
    %v2271 = vpop.f32.mrb[0].mxu0
    %v2272 = vadd.f32 %v2232, %v2271
    %v2273 = vpop.f32.mrb[0].mxu0
    %v2274 = vpop.f32.mrb[0].mxu0
    %v2275 = vpop.f32.mrb[0].mxu0
    %2276 = vdwg.mxu0
    %v2277 = vmax.f32 %v2272, 0.0
    %v2278 = vld [vmem:[%s5] sm:$0xff]
    %v2279 = vld [vmem:[%s5 + $0x8] sm:$0xff]
    %v2280 = vld [vmem:[%s5 + $0x10] sm:$0xff]
    %v2281 = vld [vmem:[%s5 + $0x18] sm:$0xff]
    %v2282 = vld [vmem:[%s5 + $0x20] sm:$0xff]
    %v2283 = vld [vmem:[%s5 + $0x28] sm:$0xff]
    %v2284 = vld [vmem:[%s5 + $0x30] sm:$0xff]
    %v2285 = vld [vmem:[%s5 + $0x38] sm:$0xff]
    %v2286 = vld [vmem:[%s5 + $0x40] sm:$0xff]
    %v2287 = vld [vmem:[%s5 + $0x48] sm:$0xff]
    %v2288 = vld [vmem:[%s5 + $0x50] sm:$0xff]
    %v2289 = vld [vmem:[%s5 + $0x58] sm:$0xff]
    %v2290 = vld [vmem:[%s5 + $0x60] sm:$0xff]
    %v2291 = vld [vmem:[%s5 + $0x68] sm:$0xff]
    %v2292 = vld [vmem:[%s5 + $0x70] sm:$0xff]
    %v2293 = vld [vmem:[%s5 + $0x78] sm:$0xff]
    %v2294 = vld [vmem:[%s6] sm:$0x1]
    %v2296 = vlaneseq
    %v2297 = vshrl.u32 %v2296, 7
    %v2298 = vsub.s32 0, %v2297
    %v2299 = vrot.slane %v2294, %v2298
    %2301 = vmatprep.subr.mxu0 0.0
    %2302 = vmatpush1.msra.mxu0 %v2278
    %2303 = vmatprep.subr.mxu0 0.0
    %2304 = vmatpush1.msra.mxu0 %v2279
    %2305 = vmatprep.subr.mxu0 0.0
    %2306 = vmatpush1.msra.mxu0 %v2280
    %2307 = vmatprep.subr.mxu0 0.0
    %2308 = vmatpush1.msra.mxu0 %v2281
    %2309 = vmatprep.subr.mxu0 0.0
    %2310 = vmatpush1.msra.mxu0 %v2282
    %2311 = vmatprep.subr.mxu0 0.0
    %2312 = vmatpush1.msra.mxu0 %v2283
    %2313 = vmatprep.subr.mxu0 0.0
    %2314 = vmatpush1.msra.mxu0 %v2284
    %2315 = vmatprep.subr.mxu0 0.0
    %2316 = vmatpush1.msra.mxu0 %v2285
    %2317 = vmatprep.subr.mxu0 0.0
    %2318 = vmatpush1.msra.mxu0 %v2286
    %2319 = vmatprep.subr.mxu0 0.0
    %2320 = vmatpush1.msra.mxu0 %v2287
    %2321 = vmatprep.subr.mxu0 0.0
    %2322 = vmatpush1.msra.mxu0 %v2288
    %2323 = vmatprep.subr.mxu0 0.0
    %2324 = vmatpush1.msra.mxu0 %v2289
    %2325 = vmatprep.subr.mxu0 0.0
    %2326 = vmatpush1.msra.mxu0 %v2290
    %2327 = vmatprep.subr.mxu0 0.0
    %2328 = vmatpush1.msra.mxu0 %v2291
    %2329 = vmatprep.subr.mxu0 0.0
    %2330 = vmatpush1.msra.mxu0 %v2292
    %2331 = vmatprep.subr.mxu0 0.0
    %2332 = vmatpush1.msra.mxu0 %v2293
    %2333 = vmatprep.subr.mxu0 0.0
    %2334 = vmatpush1.msra.mxu0 0.0
    %2335 = vmatprep.subr.mxu0 0.0
    %2336 = vmatpush1.msra.mxu0 0.0
    %2337 = vmatprep.subr.mxu0 0.0
    %2338 = vmatpush1.msra.mxu0 0.0
    %2339 = vmatprep.subr.mxu0 0.0
    %2340 = vmatpush1.msra.mxu0 0.0
    %2341 = vmatprep.subr.mxu0 0.0
    %2342 = vmatpush1.msra.mxu0 0.0
    %2343 = vmatprep.subr.mxu0 0.0
    %2344 = vmatpush1.msra.mxu0 0.0
    %2345 = vmatprep.subr.mxu0 0.0
    %2346 = vmatpush1.msra.mxu0 0.0
    %2347 = vmatprep.subr.mxu0 0.0
    %2348 = vmatpush1.msra.mxu0 0.0
    %2349 = vmatprep.subr.mxu0 0.0
    %2350 = vmatpush1.msra.mxu0 0.0
    %2351 = vmatprep.subr.mxu0 0.0
    %2352 = vmatpush1.msra.mxu0 0.0
    %2353 = vmatprep.subr.mxu0 0.0
    %2354 = vmatpush1.msra.mxu0 0.0
    %2355 = vmatprep.subr.mxu0 0.0
    %2356 = vmatpush1.msra.mxu0 0.0
    %2357 = vmatprep.subr.mxu0 0.0
    %2358 = vmatpush1.msra.mxu0 0.0
    %2359 = vmatprep.subr.mxu0 0.0
    %2360 = vmatpush1.msra.mxu0 0.0
    %2361 = vmatprep.subr.mxu0 0.0
    %2362 = vmatpush1.msra.mxu0 0.0
    %2363 = vmatprep.subr.mxu0 0.0
    %2364 = vmatpush1.msra.mxu0 0.0
    %2365 = vmatprep.mubr.f32.mxu0 0.0
    %2366 = vmatmul.mubr.f32.gmra.mrb[0].mxu0 %v2277
    %v2367 = vpop.f32.mrb[0].mxu0
    %v2368 = vadd.f32 %v2299, %v2367
    %v2369 = vpop.f32.mrb[0].mxu0
    %2370 = vdwg.mxu0
    %v2371 = vmul.f32 %v2368, 0.5
    %v2372 = vand.u32 2147483647, %v2371
    %vm2373 = vcmp.le.f32.partialorder %v2372, 0.7853982
    %vm2374 = vcmp.lt.s32.totalorder %v2371, 0
    %v2375 = vand.u32 %v2371, 2139095040
    %v2376 = vshrl.u32 %v2375, 23
    %v2377 = vsub.s32 %v2376, 127
    %v2378 = vand.u32 2147483647, %v2371
    %v2379 = vand.u32 %v2378, 8388607
    %v2380 = vor.u32 %v2379, 8388608
    %v2381 = vsub.s32 0, %v2380
    %v2382 = vadd.s32 %v2377, 1
    %vm2383 = vcmp.gt.s32.totalorder %v2382, 0
    %v2384 = vsel %vm2383, %v2382, 0
    %v2385 = vshrl.u32 %v2384, 5
    %v2386 = vand.u32 %v2384, 31
    %v2387 = vsub.s32 32, %v2386
    %v2388 = vshrl.u32 683565275, %v2387
    %v2389 = vshll.u32 683565275, %v2386
    %v2390 = vshrl.u32 2475754826, %v2387
    %v2391 = vor.u32 %v2389, %v2390
    %v2392 = vshll.u32 2475754826, %v2386
    %v2393 = vshrl.u32 2131351028, %v2387
    %v2394 = vor.u32 %v2392, %v2393
    %v2395 = vshll.u32 2131351028, %v2386
    %v2396 = vshrl.u32 2102212464, %v2387
    %v2397 = vor.u32 %v2395, %v2396
    %v2398 = vshll.u32 2102212464, %v2386
    %v2399 = vshrl.u32 920167782, %v2387
    %v2400 = vor.u32 %v2398, %v2399
    %v2401 = vshll.u32 920167782, %v2386
    %v2402 = vshrl.u32 1326507024, %v2387
    %v2403 = vor.u32 %v2401, %v2402
    %vm2404 = vcmp.lt.s32.totalorder %v2385, 1
    %vm2405 = vcmp.lt.s32.totalorder %v2385, 2
    %vm2406 = vcmp.lt.s32.totalorder %v2385, 3
    %vm2407 = vcmp.lt.s32.totalorder %v2385, 4
    %v2408 = vsel %vm2404, %v2388, %v2391
    %v2409 = vsel %vm2407, %v2397, 2102212464
    %v2410 = vsel %vm2406, %v2394, %v2409
    %v2411 = vsel %vm2405, %v2408, %v2410
    %v2412 = vsel %vm2404, %v2391, %v2394
    %v2413 = vsel %vm2407, %v2400, 920167782
    %v2414 = vsel %vm2406, %v2397, %v2413
    %v2415 = vsel %vm2405, %v2412, %v2414
    %v2416 = vsel %vm2404, %v2394, %v2397
    %v2417 = vsel %vm2407, %v2403, 1326507024
    %v2418 = vsel %vm2406, %v2400, %v2417
    %v2419 = vsel %vm2405, %v2416, %v2418
    %v2420 = vshll.u32 %v2380, 8
    %v2421 = vmul.u32.u64.compose %v2420, %v2419
    %v2422 = vextract.low.u32 %v2421
    %v2423 = vextract.high.u32 %v2421
    %v2424 = vmul.u32.u64.compose %v2420, %v2415
    %v2425 = vextract.low.u32 %v2424
    %v2426 = vextract.high.u32 %v2424
    %v2427 = vmul.u32 %v2420, %v2411
    %v2428 = vadd.s32 %v2423, %v2425
    %vm2429 = vc.u32 %v2423, %v2425
    %v2430 = vadd.s32 %v2426, 1
    %v2431 = vsel %vm2429, %v2430, %v2426
    %v2432 = vadd.s32 %v2427, %v2431
    %v2433 = vadd.s32 %v2432, 536870912
    %v2434 = vshrl.u32 %v2433, 30
    %v2435 = vshll.u32 %v2434, 30
    %v2436 = vsub.s32 %v2432, %v2435
    %vm2437 = vcmp.lt.s32.totalorder %v2436, 0
    %v2438 = vsub.s32 0, %v2436
    %v2439 = vsel %vm2437, %v2438, %v2436
    %v2440 = vclz %v2439
    %v2441 = vsub.s32 %v2440, 2
    %vm2442 = vcmp.gt.s32.totalorder 0, %v2441
    %v2443 = vsel %vm2442, 0, %v2441
    %v2444 = vsub.s32 32, %v2443
    %v2445 = vshll.u32 %v2436, %v2443
    %v2446 = vshrl.u32 %v2428, %v2444
    %v2447 = vor.u32 %v2445, %v2446
    %v2448 = vsub.s32 4294967266, %v2443
    %v2449 = vadd.s32 %v2448, 127
    %v2450 = vshll.u32 %v2449, 23
    %v2451 = vor.u32 4788187, %v2450
    %v2452 = vand.u32 2147483647, %v2451
    %v2454 = vcvt.s32.f32 %v2447
    %v2455 = vmul.f32 %v2454, %v2452
    %v2456 = vxor.u32 %v2455, 2147483648
    %v2457 = vsel %vm2374, %v2456, %v2455
    %v2458 = vsub.s32 4, %v2434
    %v2459 = vsel %vm2374, %v2458, %v2434
    %v2460 = vsel %vm2373, %v2371, %v2457
    %v2461 = vsel %vm2373, 0, %v2459
    %v2462 = vcosq.f32.pop %v2460
    %v2463 = vsinq.f32.pop %v2460
    %vm2464 = vweird.f32 %v2371
    %v2465 = vand.u32 %v2461, 3
    %vm2466 = vcmp.lt.s32.totalorder %v2465, 2
    %vm2467 = vcmp.eq.s32.totalorder %v2465, 0
    %v2468 = vxor.u32 %v2463, 2147483648
    %v2469 = vsel %vm2467, %v2462, %v2468
    %vm2470 = vcmp.eq.s32.totalorder %v2465, 2
    %v2471 = vxor.u32 %v2462, 2147483648
    %v2472 = vsel %vm2470, %v2471, %v2463
    %v2473 = vsel %vm2466, %v2469, %v2472
    %v2474 = vsel %vm2464, nan, %v2473
    %v2475 = vand.u32 2147483647, %v2371
    %vm2476 = vcmp.le.f32.partialorder %v2475, 0.7853982
    %vm2477 = vcmp.lt.s32.totalorder %v2371, 0
    %v2478 = vand.u32 %v2371, 2139095040
    %v2479 = vshrl.u32 %v2478, 23
    %v2480 = vsub.s32 %v2479, 127
    %v2481 = vand.u32 2147483647, %v2371
    %v2482 = vand.u32 %v2481, 8388607
    %v2483 = vor.u32 %v2482, 8388608
    %v2484 = vsub.s32 0, %v2483
    %v2485 = vadd.s32 %v2480, 1
    %vm2486 = vcmp.gt.s32.totalorder %v2485, 0
    %v2487 = vsel %vm2486, %v2485, 0
    %v2488 = vshrl.u32 %v2487, 5
    %v2489 = vand.u32 %v2487, 31
    %v2490 = vsub.s32 32, %v2489
    %v2491 = vshrl.u32 683565275, %v2490
    %v2492 = vshll.u32 683565275, %v2489
    %v2493 = vshrl.u32 2475754826, %v2490
    %v2494 = vor.u32 %v2492, %v2493
    %v2495 = vshll.u32 2475754826, %v2489
    %v2496 = vshrl.u32 2131351028, %v2490
    %v2497 = vor.u32 %v2495, %v2496
    %v2498 = vshll.u32 2131351028, %v2489
    %v2499 = vshrl.u32 2102212464, %v2490
    %v2500 = vor.u32 %v2498, %v2499
    %v2501 = vshll.u32 2102212464, %v2489
    %v2502 = vshrl.u32 920167782, %v2490
    %v2503 = vor.u32 %v2501, %v2502
    %v2504 = vshll.u32 920167782, %v2489
    %v2505 = vshrl.u32 1326507024, %v2490
    %v2506 = vor.u32 %v2504, %v2505
    %vm2507 = vcmp.lt.s32.totalorder %v2488, 1
    %vm2508 = vcmp.lt.s32.totalorder %v2488, 2
    %vm2509 = vcmp.lt.s32.totalorder %v2488, 3
    %vm2510 = vcmp.lt.s32.totalorder %v2488, 4
    %v2511 = vsel %vm2507, %v2491, %v2494
    %v2512 = vsel %vm2510, %v2500, 2102212464
    %v2513 = vsel %vm2509, %v2497, %v2512
    %v2514 = vsel %vm2508, %v2511, %v2513
    %v2515 = vsel %vm2507, %v2494, %v2497
    %v2516 = vsel %vm2510, %v2503, 920167782
    %v2517 = vsel %vm2509, %v2500, %v2516
    %v2518 = vsel %vm2508, %v2515, %v2517
    %v2519 = vsel %vm2507, %v2497, %v2500
    %v2520 = vsel %vm2510, %v2506, 1326507024
    %v2521 = vsel %vm2509, %v2503, %v2520
    %v2522 = vsel %vm2508, %v2519, %v2521
    %v2523 = vshll.u32 %v2483, 8
    %v2524 = vmul.u32.u64.compose %v2523, %v2522
    %v2525 = vextract.low.u32 %v2524
    %v2526 = vextract.high.u32 %v2524
    %v2527 = vmul.u32.u64.compose %v2523, %v2518
    %v2528 = vextract.low.u32 %v2527
    %v2529 = vextract.high.u32 %v2527
    %v2530 = vmul.u32 %v2523, %v2514
    %v2531 = vadd.s32 %v2526, %v2528
    %vm2532 = vc.u32 %v2526, %v2528
    %v2533 = vadd.s32 %v2529, 1
    %v2534 = vsel %vm2532, %v2533, %v2529
    %v2535 = vadd.s32 %v2530, %v2534
    %v2536 = vadd.s32 %v2535, 536870912
    %v2537 = vshrl.u32 %v2536, 30
    %v2538 = vshll.u32 %v2537, 30
    %v2539 = vsub.s32 %v2535, %v2538
    %vm2540 = vcmp.lt.s32.totalorder %v2539, 0
    %v2541 = vsub.s32 0, %v2539
    %v2542 = vsel %vm2540, %v2541, %v2539
    %v2543 = vclz %v2542
    %v2544 = vsub.s32 %v2543, 2
    %vm2545 = vcmp.gt.s32.totalorder 0, %v2544
    %v2546 = vsel %vm2545, 0, %v2544
    %v2547 = vsub.s32 32, %v2546
    %v2548 = vshll.u32 %v2539, %v2546
    %v2549 = vshrl.u32 %v2531, %v2547
    %v2550 = vor.u32 %v2548, %v2549
    %v2551 = vsub.s32 4294967266, %v2546
    %v2552 = vadd.s32 %v2551, 127
    %v2553 = vshll.u32 %v2552, 23
    %v2554 = vor.u32 4788187, %v2553
    %v2555 = vand.u32 2147483647, %v2554
    %v2557 = vcvt.s32.f32 %v2550
    %v2558 = vmul.f32 %v2557, %v2555
    %v2559 = vxor.u32 %v2558, 2147483648
    %v2560 = vsel %vm2477, %v2559, %v2558
    %v2561 = vsub.s32 4, %v2537
    %v2562 = vsel %vm2477, %v2561, %v2537
    %v2563 = vsel %vm2476, %v2371, %v2560
    %v2564 = vsel %vm2476, 0, %v2562
    %v2565 = vcosq.f32.pop %v2563
    %v2566 = vsinq.f32.pop %v2563
    %vm2567 = vweird.f32 %v2371
    %v2568 = vadd.s32 %v2564, 3
    %v2569 = vand.u32 %v2568, 3
    %vm2570 = vcmp.lt.s32.totalorder %v2569, 2
    %vm2571 = vcmp.eq.s32.totalorder %v2569, 0
    %v2572 = vxor.u32 %v2566, 2147483648
    %v2573 = vsel %vm2571, %v2565, %v2572
    %vm2574 = vcmp.eq.s32.totalorder %v2569, 2
    %v2575 = vxor.u32 %v2565, 2147483648
    %v2576 = vsel %vm2574, %v2575, %v2566
    %v2577 = vsel %vm2570, %v2573, %v2576
    %v2578 = vsel %vm2567, nan, %v2577
    %v2579 = vlaneseq
    %v2580 = vand.u32 %v2579, 127
    %v2581 = vand.u32 %v2580, 63
    %v2582 = vshra.s32 %v2581, 5
    %v2583 = vand.u32 %v2582, 1
    %vm2584 = vcmp.eq.s32.totalorder %v2583, 1
    %2586 = vset.pattern.permute.xlu0 0
    %2587 = vperm.xlu0 %2586, %v2578
    %v2588 = vpop.permute.xlu0 %2587
    %2591 = vset.pattern.permute.xlu0 0
    %2592 = vperm.xlu0 %2591, %v2474
    %v2593 = vpop.permute.xlu0 %2592
    %v2595 = vsel %vm2584, %v2588, %v2593
    %v2596 = vshra.s32 %v2581, 4
    %v2597 = vand.u32 %v2596, 1
    %vm2598 = vcmp.eq.s32.totalorder %v2597, 1
    %2599 = vset.pattern.permute.xlu0 1
    %2600 = vperm.xlu0 %2599, %v2578
    %v2601 = vpop.permute.xlu0 %2600
    %2603 = vset.pattern.permute.xlu0 1
    %2604 = vperm.xlu0 %2603, %v2474
    %v2605 = vpop.permute.xlu0 %2604
    %v2607 = vsel %vm2598, %v2601, %v2605
    %v2608 = vmul.f32 %v2595, %v2607
    %v2609 = vshra.s32 %v2581, 3
    %v2610 = vand.u32 %v2609, 1
    %vm2611 = vcmp.eq.s32.totalorder %v2610, 1
    %2612 = vset.pattern.permute.xlu0 2
    %2613 = vperm.xlu0 %2612, %v2578
    %v2614 = vpop.permute.xlu0 %2613
    %2616 = vset.pattern.permute.xlu0 2
    %2617 = vperm.xlu0 %2616, %v2474
    %v2618 = vpop.permute.xlu0 %2617
    %v2620 = vsel %vm2611, %v2614, %v2618
    %v2621 = vmul.f32 %v2608, %v2620
    %v2622 = vshra.s32 %v2581, 2
    %v2623 = vand.u32 %v2622, 1
    %vm2624 = vcmp.eq.s32.totalorder %v2623, 1
    %2625 = vset.pattern.permute.xlu0 3
    %2626 = vperm.xlu0 %2625, %v2578
    %v2627 = vpop.permute.xlu0 %2626
    %2629 = vset.pattern.permute.xlu0 3
    %2630 = vperm.xlu0 %2629, %v2474
    %v2631 = vpop.permute.xlu0 %2630
    %v2633 = vsel %vm2624, %v2627, %v2631
    %v2634 = vmul.f32 %v2621, %v2633
    %v2635 = vshra.s32 %v2581, 1
    %v2636 = vand.u32 %v2635, 1
    %vm2637 = vcmp.eq.s32.totalorder %v2636, 1
    %2638 = vset.pattern.permute.xlu0 4
    %2639 = vperm.xlu0 %2638, %v2578
    %v2640 = vpop.permute.xlu0 %2639
    %2642 = vset.pattern.permute.xlu0 4
    %2643 = vperm.xlu0 %2642, %v2474
    %v2644 = vpop.permute.xlu0 %2643
    %v2646 = vsel %vm2637, %v2640, %v2644
    %v2647 = vmul.f32 %v2634, %v2646
    %v2648 = vand.u32 %v2581, 1
    %vm2649 = vcmp.eq.s32.totalorder %v2648, 1
    %2650 = vset.pattern.permute.xlu0 5
    %2651 = vperm.xlu0 %2650, %v2578
    %v2652 = vpop.permute.xlu0 %2651
    %2654 = vset.pattern.permute.xlu0 5
    %2655 = vperm.xlu0 %2654, %v2474
    %v2656 = vpop.permute.xlu0 %2655
    %v2658 = vsel %vm2649, %v2652, %v2656
    %v2659 = vmul.f32 %v2647, %v2658
    %v2660 = vld [vmem:[%s7] sm:$0xff]
    %v2661 = vld [vmem:[%s7 + $0x8] sm:$0xff]
    %v2662 = vld [vmem:[%s7 + $0x10] sm:$0xff]
    %v2663 = vld [vmem:[%s7 + $0x18] sm:$0xff]
    %v2664 = vld [vmem:[%s7 + $0x20] sm:$0xff]
    %v2665 = vld [vmem:[%s7 + $0x28] sm:$0xff]
    %v2666 = vld [vmem:[%s7 + $0x30] sm:$0xff]
    %v2667 = vld [vmem:[%s7 + $0x38] sm:$0xff]
    %v2668 = vld [vmem:[%s7 + $0x40] sm:$0xff]
    %v2669 = vld [vmem:[%s7 + $0x48] sm:$0xff]
    %v2670 = vld [vmem:[%s7 + $0x50] sm:$0xff]
    %v2671 = vld [vmem:[%s7 + $0x58] sm:$0xff]
    %v2672 = vld [vmem:[%s7 + $0x60] sm:$0xff]
    %v2673 = vld [vmem:[%s7 + $0x68] sm:$0xff]
    %v2674 = vld [vmem:[%s7 + $0x70] sm:$0xff]
    %v2675 = vld [vmem:[%s7 + $0x78] sm:$0xff]
    %2676 = vmatprep.subr.mxu0 0.0
    %2677 = vmatpush1.msra.mxu0 %v2660
    %2678 = vmatprep.subr.mxu0 0.0
    %2679 = vmatpush1.msra.mxu0 %v2661
    %2680 = vmatprep.subr.mxu0 0.0
    %2681 = vmatpush1.msra.mxu0 %v2662
    %2682 = vmatprep.subr.mxu0 0.0
    %2683 = vmatpush1.msra.mxu0 %v2663
    %2684 = vmatprep.subr.mxu0 0.0
    %2685 = vmatpush1.msra.mxu0 %v2664
    %2686 = vmatprep.subr.mxu0 0.0
    %2687 = vmatpush1.msra.mxu0 %v2665
    %2688 = vmatprep.subr.mxu0 0.0
    %2689 = vmatpush1.msra.mxu0 %v2666
    %2690 = vmatprep.subr.mxu0 0.0
    %2691 = vmatpush1.msra.mxu0 %v2667
    %2692 = vmatprep.subr.mxu0 0.0
    %2693 = vmatpush1.msra.mxu0 %v2668
    %2694 = vmatprep.subr.mxu0 0.0
    %2695 = vmatpush1.msra.mxu0 %v2669
    %2696 = vmatprep.subr.mxu0 0.0
    %2697 = vmatpush1.msra.mxu0 %v2670
    %2698 = vmatprep.subr.mxu0 0.0
    %2699 = vmatpush1.msra.mxu0 %v2671
    %2700 = vmatprep.subr.mxu0 0.0
    %2701 = vmatpush1.msra.mxu0 %v2672
    %2702 = vmatprep.subr.mxu0 0.0
    %2703 = vmatpush1.msra.mxu0 %v2673
    %2704 = vmatprep.subr.mxu0 0.0
    %2705 = vmatpush1.msra.mxu0 %v2674
    %2706 = vmatprep.subr.mxu0 0.0
    %2707 = vmatpush1.msra.mxu0 %v2675
    %2708 = vmatprep.subr.mxu0 0.0
    %2709 = vmatpush1.msra.mxu0 0.0
    %2710 = vmatprep.subr.mxu0 0.0
    %2711 = vmatpush1.msra.mxu0 0.0
    %2712 = vmatprep.subr.mxu0 0.0
    %2713 = vmatpush1.msra.mxu0 0.0
    %2714 = vmatprep.subr.mxu0 0.0
    %2715 = vmatpush1.msra.mxu0 0.0
    %2716 = vmatprep.subr.mxu0 0.0
    %2717 = vmatpush1.msra.mxu0 0.0
    %2718 = vmatprep.subr.mxu0 0.0
    %2719 = vmatpush1.msra.mxu0 0.0
    %2720 = vmatprep.subr.mxu0 0.0
    %2721 = vmatpush1.msra.mxu0 0.0
    %2722 = vmatprep.subr.mxu0 0.0
    %2723 = vmatpush1.msra.mxu0 0.0
    %2724 = vmatprep.subr.mxu0 0.0
    %2725 = vmatpush1.msra.mxu0 0.0
    %2726 = vmatprep.subr.mxu0 0.0
    %2727 = vmatpush1.msra.mxu0 0.0
    %2728 = vmatprep.subr.mxu0 0.0
    %2729 = vmatpush1.msra.mxu0 0.0
    %2730 = vmatprep.subr.mxu0 0.0
    %2731 = vmatpush1.msra.mxu0 0.0
    %2732 = vmatprep.subr.mxu0 0.0
    %2733 = vmatpush1.msra.mxu0 0.0
    %2734 = vmatprep.subr.mxu0 0.0
    %2735 = vmatpush1.msra.mxu0 0.0
    %2736 = vmatprep.subr.mxu0 0.0
    %2737 = vmatpush1.msra.mxu0 0.0
    %2738 = vmatprep.subr.mxu0 0.0
    %2739 = vmatpush1.msra.mxu0 0.0
    %2740 = vmatprep.mubr.f32.mxu0 0.0
    %2741 = vmatmul.mubr.f32.gmra.mrb[0].mxu0 %v2659
    %v2742 = vpop.f32.mrb[0].mxu0
    %v2743 = vadd.f32 0.0, %v2742
    %v2744 = vpop.f32.mrb[0].mxu0
    %2745 = vdwg.mxu0
    %v2746 = vmul.f32 %v2743, %v2743
    %v2747 = vld [vmem:[%s8] sm:$0xff]
    %v2748 = vld [vmem:[%s8 + $0x8] sm:$0xff]
    %v2749 = vld [vmem:[%s8 + $0x10] sm:$0xff]
    %v2750 = vld [vmem:[%s8 + $0x18] sm:$0xff]
    %v2751 = vld [vmem:[%s8 + $0x20] sm:$0xff]
    %v2752 = vld [vmem:[%s8 + $0x28] sm:$0xff]
    %v2753 = vld [vmem:[%s8 + $0x30] sm:$0xff]
    %v2754 = vld [vmem:[%s8 + $0x38] sm:$0xff]
    %v2755 = vld [vmem:[%s8 + $0x40] sm:$0xff]
    %v2756 = vld [vmem:[%s8 + $0x48] sm:$0xff]
    %v2757 = vld [vmem:[%s8 + $0x50] sm:$0xff]
    %v2758 = vld [vmem:[%s8 + $0x58] sm:$0xff]
    %v2759 = vld [vmem:[%s8 + $0x60] sm:$0xff]
    %v2760 = vld [vmem:[%s8 + $0x68] sm:$0xff]
    %v2761 = vld [vmem:[%s8 + $0x70] sm:$0xff]
    %v2762 = vld [vmem:[%s8 + $0x78] sm:$0xff]
    %v2763 = vld [vmem:[#allocation7] sm:$0x1]
    %v2765 = vlaneseq
    %v2766 = vshrl.u32 %v2765, 7
    %v2767 = vsub.s32 0, %v2766
    %v2768 = vrot.slane %v2763, %v2767
    %2770 = vmatprep.subr.mxu0 0.0
    %2771 = vmatpush1.msra.mxu0 %v2747
    %2772 = vmatprep.subr.mxu0 0.0
    %2773 = vmatpush1.msra.mxu0 %v2748
    %2774 = vmatprep.subr.mxu0 0.0
    %2775 = vmatpush1.msra.mxu0 %v2749
    %2776 = vmatprep.subr.mxu0 0.0
    %2777 = vmatpush1.msra.mxu0 %v2750
    %2778 = vmatprep.subr.mxu0 0.0
    %2779 = vmatpush1.msra.mxu0 %v2751
    %2780 = vmatprep.subr.mxu0 0.0
    %2781 = vmatpush1.msra.mxu0 %v2752
    %2782 = vmatprep.subr.mxu0 0.0
    %2783 = vmatpush1.msra.mxu0 %v2753
    %2784 = vmatprep.subr.mxu0 0.0
    %2785 = vmatpush1.msra.mxu0 %v2754
    %2786 = vmatprep.subr.mxu0 0.0
    %2787 = vmatpush1.msra.mxu0 %v2755
    %2788 = vmatprep.subr.mxu0 0.0
    %2789 = vmatpush1.msra.mxu0 %v2756
    %2790 = vmatprep.subr.mxu0 0.0
    %2791 = vmatpush1.msra.mxu0 %v2757
    %2792 = vmatprep.subr.mxu0 0.0
    %2793 = vmatpush1.msra.mxu0 %v2758
    %2794 = vmatprep.subr.mxu0 0.0
    %2795 = vmatpush1.msra.mxu0 %v2759
    %2796 = vmatprep.subr.mxu0 0.0
    %2797 = vmatpush1.msra.mxu0 %v2760
    %2798 = vmatprep.subr.mxu0 0.0
    %2799 = vmatpush1.msra.mxu0 %v2761
    %2800 = vmatprep.subr.mxu0 0.0
    %2801 = vmatpush1.msra.mxu0 %v2762
    %2802 = vmatprep.subr.mxu0 0.0
    %2803 = vmatpush1.msra.mxu0 0.0
    %2804 = vmatprep.subr.mxu0 0.0
    %2805 = vmatpush1.msra.mxu0 0.0
    %2806 = vmatprep.subr.mxu0 0.0
    %2807 = vmatpush1.msra.mxu0 0.0
    %2808 = vmatprep.subr.mxu0 0.0
    %2809 = vmatpush1.msra.mxu0 0.0
    %2810 = vmatprep.subr.mxu0 0.0
    %2811 = vmatpush1.msra.mxu0 0.0
    %2812 = vmatprep.subr.mxu0 0.0
    %2813 = vmatpush1.msra.mxu0 0.0
    %2814 = vmatprep.subr.mxu0 0.0
    %2815 = vmatpush1.msra.mxu0 0.0
    %2816 = vmatprep.subr.mxu0 0.0
    %2817 = vmatpush1.msra.mxu0 0.0
    %2818 = vmatprep.subr.mxu0 0.0
    %2819 = vmatpush1.msra.mxu0 0.0
    %2820 = vmatprep.subr.mxu0 0.0
    %2821 = vmatpush1.msra.mxu0 0.0
    %2822 = vmatprep.subr.mxu0 0.0
    %2823 = vmatpush1.msra.mxu0 0.0
    %2824 = vmatprep.subr.mxu0 0.0
    %2825 = vmatpush1.msra.mxu0 0.0
    %2826 = vmatprep.subr.mxu0 0.0
    %2827 = vmatpush1.msra.mxu0 0.0
    %2828 = vmatprep.subr.mxu0 0.0
    %2829 = vmatpush1.msra.mxu0 0.0
    %2830 = vmatprep.subr.mxu0 0.0
    %2831 = vmatpush1.msra.mxu0 0.0
    %2832 = vmatprep.subr.mxu0 0.0
    %2833 = vmatpush1.msra.mxu0 0.0
    %2834 = vmatprep.mubr.f32.mxu0 0.0
    %2835 = vmatmul.mubr.f32.gmra.mrb[0].mxu0 %v2746
    %v2836 = vpop.f32.mrb[0].mxu0
    %v2837 = vadd.f32 %v2768, %v2836
    %v2838 = vpop.f32.mrb[0].mxu0
    %2839 = vdwg.mxu0
    %v2840 = vmax.f32 %v2837, 0.0
    %v2841 = vld [vmem:[%s10] sm:$0xff]
    %v2842 = vld [vmem:[%s10 + $0x8] sm:$0xff]
    %v2843 = vld [vmem:[%s10 + $0x10] sm:$0xff]
    %v2844 = vld [vmem:[%s10 + $0x18] sm:$0xff]
    %v2845 = vld [vmem:[#allocation8] sm:$0x1]
    %v2847 = vlaneseq
    %v2848 = vshrl.u32 %v2847, 7
    %v2849 = vsub.s32 0, %v2848
    %v2850 = vrot.slane %v2845, %v2849
    %vm2852 = vcmask 261120
    %v2854 = vsel %vm2852, %v2840, 0
    %2856 = vmatprep.subr.mxu0 0.0
    %2857 = vmatpush1.msra.mxu0 %v2841
    %2858 = vmatprep.subr.mxu0 0.0
    %2859 = vmatpush1.msra.mxu0 %v2842
    %2860 = vmatprep.subr.mxu0 0.0
    %2861 = vmatpush1.msra.mxu0 %v2843
    %2862 = vmatprep.subr.mxu0 0.0
    %2863 = vmatpush1.msra.mxu0 %v2844
    %2864 = vmatprep.subr.mxu0 0.0
    %2865 = vmatpush1.msra.mxu0 0.0
    %2866 = vmatprep.subr.mxu0 0.0
    %2867 = vmatpush1.msra.mxu0 0.0
    %2868 = vmatprep.subr.mxu0 0.0
    %2869 = vmatpush1.msra.mxu0 0.0
    %2870 = vmatprep.subr.mxu0 0.0
    %2871 = vmatpush1.msra.mxu0 0.0
    %2872 = vmatprep.subr.mxu0 0.0
    %2873 = vmatpush1.msra.mxu0 0.0
    %2874 = vmatprep.subr.mxu0 0.0
    %2875 = vmatpush1.msra.mxu0 0.0
    %2876 = vmatprep.subr.mxu0 0.0
    %2877 = vmatpush1.msra.mxu0 0.0
    %2878 = vmatprep.subr.mxu0 0.0
    %2879 = vmatpush1.msra.mxu0 0.0
    %2880 = vmatprep.subr.mxu0 0.0
    %2881 = vmatpush1.msra.mxu0 0.0
    %2882 = vmatprep.subr.mxu0 0.0
    %2883 = vmatpush1.msra.mxu0 0.0
    %2884 = vmatprep.subr.mxu0 0.0
    %2885 = vmatpush1.msra.mxu0 0.0
    %2886 = vmatprep.subr.mxu0 0.0
    %2887 = vmatpush1.msra.mxu0 0.0
    %2888 = vmatprep.subr.mxu0 0.0
    %2889 = vmatpush1.msra.mxu0 0.0
    %2890 = vmatprep.subr.mxu0 0.0
    %2891 = vmatpush1.msra.mxu0 0.0
    %2892 = vmatprep.subr.mxu0 0.0
    %2893 = vmatpush1.msra.mxu0 0.0
    %2894 = vmatprep.subr.mxu0 0.0
    %2895 = vmatpush1.msra.mxu0 0.0
    %2896 = vmatprep.subr.mxu0 0.0
    %2897 = vmatpush1.msra.mxu0 0.0
    %2898 = vmatprep.subr.mxu0 0.0
    %2899 = vmatpush1.msra.mxu0 0.0
    %2900 = vmatprep.subr.mxu0 0.0
    %2901 = vmatpush1.msra.mxu0 0.0
    %2902 = vmatprep.subr.mxu0 0.0
    %2903 = vmatpush1.msra.mxu0 0.0
    %2904 = vmatprep.subr.mxu0 0.0
    %2905 = vmatpush1.msra.mxu0 0.0
    %2906 = vmatprep.subr.mxu0 0.0
    %2907 = vmatpush1.msra.mxu0 0.0
    %2908 = vmatprep.subr.mxu0 0.0
    %2909 = vmatpush1.msra.mxu0 0.0
    %2910 = vmatprep.subr.mxu0 0.0
    %2911 = vmatpush1.msra.mxu0 0.0
    %2912 = vmatprep.subr.mxu0 0.0
    %2913 = vmatpush1.msra.mxu0 0.0
    %2914 = vmatprep.subr.mxu0 0.0
    %2915 = vmatpush1.msra.mxu0 0.0
    %2916 = vmatprep.subr.mxu0 0.0
    %2917 = vmatpush1.msra.mxu0 0.0
    %2918 = vmatprep.subr.mxu0 0.0
    %2919 = vmatpush1.msra.mxu0 0.0
    %2920 = vmatprep.mubr.f32.mxu0 0.0
    %2921 = vmatmul.mubr.f32.gmra.mrb[0].mxu0 %v2854
    %v2922 = vpop.f32.mrb[0].mxu0
    %v2923 = vadd.f32 %v2850, %v2922
    %v2924 = vpop.f32.mrb[0].mxu0
    %2925 = vdwg.mxu0
    %2926 = vst [vmem:[#allocation10] sm:$0x3] %v2923
    // Predicated region
    $region66: #{quantum_hybrid_forward.3} parent=1 // pred_check
      _
    $region67: #{quantum_hybrid_forward.3} parent=1 // pred_check_branch
      %2928 = sbr.rel (0) target = $region69
    $region68: #{quantum_hybrid_forward.3} parent=1 // pred_region
      %s2930 = ssub.s32 32, 32
      %2931 = vsyncadd [#allocation4], %s2930
      %s2933 = sshll.u32 [#allocation10], 4
      %s2934 = int_to_ptr.vmem [resolvable:$true] %s2933
      %2936 = dma.vmem_to_hbm [thread:$0]  %s2934, 32, %s12, [#allocation4]
    $region69: #{quantum_hybrid_forward.3} parent=1 // pred_fallthru
      _
    // Predicated region
    $region70: #{quantum_hybrid_forward.3} parent=1 // pred_check
      _
    $region71: #{quantum_hybrid_forward.3} parent=1 // pred_check_branch
      %2938 = sbr.rel (0) target = $region73
    $region72: #{quantum_hybrid_forward.3} parent=1 // pred_region
      %2939 = dma.done [#allocation4], 32
    $region73: #{quantum_hybrid_forward.3} parent=1 // pred_fallthru
      _
    %2940 = vsyncpa [#allocation3], 1
    %2941 = vsyncpa [#allocation6], 1
    %2942 = vsyncpa [#allocation9], 1
    %2943 = vsyncpa [#allocation4], 1

</llo_original>
